<compile_context>
chip_gen: v7x
topology: tpu7x:2x2x1
jax: 0.10.0
libtpu: 0.0.40
codegen_flags: <defaults>
</compile_context>

<pallas_src>
import math
import numpy as np
import jax
import jax.numpy as jnp
from jax import lax
from jax.experimental import pallas as pl
from jax.experimental.pallas import tpu as pltpu

# ---------------------------------------------------------------------------
# Configuration (mirrors DCNv2(in_channels=4, out_channels=8, kernel_size=3))
# ---------------------------------------------------------------------------
N = 2
C_IN = 4
C_OUT = 8
KH = KW = 3
KK = KH * KW
STRIDE = 1
DIL = 1
PAD = KH // 2                       # autopad -> 'same'
GROUPS = 1
DEFORM_GROUPS = 1
H = W = 16
H_OUT = (H + 2 * PAD - DIL * (KH - 1) - 1) // STRIDE + 1
W_OUT = (W + 2 * PAD - DIL * (KW - 1) - 1) // STRIDE + 1
P = H_OUT * W_OUT                   # flattened output spatial positions (256)
C_OM = DEFORM_GROUPS * 3 * KK       # offset/mask conv output channels (27)
C_AUG = C_IN * KK + 1               # im2col features + ones row (bias fold)
CW = C_IN * W                       # 64: rows of the row-gather result
KCW = KK * CW                       # 576: fused contraction depth
BN_EPS = 1e-5

assert GROUPS == 1 and DEFORM_GROUPS == 1  # supported configuration


def _sigmoid_approx(v):
    # exp on the EUP; divide moved to the EUP reciprocal (approx) as well.
    return pl.reciprocal(1.0 + jnp.exp(-v), approx=True)


# ---------------------------------------------------------------------------
# Pallas kernel: one grid step == one batch sample
# ---------------------------------------------------------------------------
def dcnv2_kernel(cols_ref, x_ref, w_om_ref, wk_ref, post_ref, out_ref, prod_ref):
    cols_t = cols_ref[0]            # (C_AUG, P)   im2col + ones row (f32)
    x_cwh = x_ref[0]                # (C_IN*W, H)  x rearranged [c*W + w, h] (bf16)

    # ---- offset / mask convolution ----
    # Rows permuted in the wrapper to (dh 0..8 | dw 9..17 | mask 18..26); bias
    # AND the static tap base offsets (ki*DIL - PAD, kj*DIL - PAD) are folded
    # into the ones-row column, so y/xs below need only the output position.
    # DEFAULT matmul precision (single-pass bf16) is plenty: bilinear weights
    # are continuous in the offsets.
    om = jnp.dot(w_om_ref[...], cols_t,
                 preferred_element_type=jnp.float32)           # (C_OM, P)

    # ---- output positions generated in-kernel ----
    pcol = lax.broadcasted_iota(jnp.int32, (1, P), 1)
    if (W_OUT & (W_OUT - 1)) == 0:                             # power of two
        shift = W_OUT.bit_length() - 1
        oy_i = pcol >> shift
        ox_i = pcol & (W_OUT - 1)
    else:                                                      # generic fallback
        oy_i = pcol // W_OUT
        ox_i = pcol - oy_i * W_OUT
    oy = (oy_i * STRIDE).astype(jnp.float32)                   # (1, P)
    ox = (ox_i * STRIDE).astype(jnp.float32)                   # (1, P)

    # Block-wise (9, P) sampling coordinates + one sigmoid over all mask rows.
    y_all = oy + om[0:KK, :]                                   # (KK, P)
    x_all = ox + om[KK:2 * KK, :]                              # (KK, P)
    m_all = _sigmoid_approx(om[2 * KK:3 * KK, :])              # (KK, P)

    # Hoisted float iotas for the hat-function bilinear weights.
    iota_hf = lax.broadcasted_iota(jnp.int32, (H, P), 0).astype(jnp.float32)
    iota_wf = lax.broadcasted_iota(jnp.int32, (W, P), 0).astype(jnp.float32)

    for kidx in range(KK):          # 9 taps
        y = y_all[kidx:kidx + 1, :]                            # (1, P)
        xs = x_all[kidx:kidx + 1, :]                           # (1, P)
        msk = m_all[kidx:kidx + 1, :]                          # (1, P)

        # Hat function == the floor/one-hot bilinear weights (incl. the exact
        # torchvision out-of-image corner masking).
        row_w = jnp.maximum(1.0 - jnp.abs(iota_hf - y), 0.0)           # (H, P)
        col_w = jnp.maximum(1.0 - jnp.abs(iota_wf - xs), 0.0) * msk    # (W, P)

        # Row gather on the MXU: (C_IN*W, H) @ (H, P), f32 accumulation.
        gath = jnp.dot(x_cwh, row_w.astype(jnp.bfloat16),
                       preferred_element_type=jnp.float32)             # (CW, P)

        # Column weights applied per input channel block and written straight
        # into the fused-contraction scratch (no concatenate, no extra copy).
        base = kidx * CW
        for c in range(C_IN):
            prod_ref[base + c * W: base + (c + 1) * W, :] = (
                gath[c * W:(c + 1) * W, :] * col_w).astype(jnp.bfloat16)

    # Single fused K=576 contraction against the flattened deform-conv weight.
    acc = jnp.dot(wk_ref[...], prod_ref[...],
                  preferred_element_type=jnp.float32)          # (C_OUT, P)

    # conv bias + BatchNorm (inference) folded into scale/shift, then SiLU.
    # TODO(synk): BatchNorm is implemented in inference mode (running stats);
    # training-mode batch statistics are not reproduced.
    post = post_ref[...]
    z = acc * post[:, 0:1] + post[:, 1:2]                      # (C_OUT, P)
    out_ref[0] = z * _sigmoid_approx(z)                        # SiLU


# ---------------------------------------------------------------------------
# Wrapper (glue: im2col / layout / parameter folding)
# ---------------------------------------------------------------------------
@jax.jit
def dcnv2_forward(x, w_om, b_om, weight, bias,
                  bn_gamma, bn_beta, bn_mean, bn_var):
    n, c_in, h, w = x.shape

    # im2col for the offset/mask conv, kept transposed: (N, C_AUG, P).
    # (For large feature maps this 9x input inflation should move in-kernel;
    #  negligible at 16x16.)
    xp = jnp.pad(x, ((0, 0), (0, 0), (PAD, PAD), (PAD, PAD)))
    patches = []
    for ki in range(KH):
        for kj in range(KW):
            patches.append(
                xp[:, :,
                   ki * DIL: ki * DIL + (H_OUT - 1) * STRIDE + 1: STRIDE,
                   kj * DIL: kj * DIL + (W_OUT - 1) * STRIDE + 1: STRIDE])
    cols = jnp.stack(patches, axis=2).reshape(n, c_in * KK, P)
    ones = jnp.ones((n, 1, P), jnp.float32)
    cols_aug = jnp.concatenate([cols, ones], axis=1)            # (N, C_AUG, P)

    # Input rearranged for the row-gather matmul: x_cwh[b, c*W + w, h] (bf16).
    x_cwh = jnp.transpose(x, (0, 1, 3, 2)).reshape(n, c_in * W, H)
    x_cwh = x_cwh.astype(jnp.bfloat16)

    # Offset/mask conv weight: rows permuted to (dh | dw | mask); bias plus the
    # static tap base offsets folded into the ones-row column: (C_OM, C_AUG).
    w_flat = w_om.reshape(C_OM, c_in * KK)
    perm = np.concatenate([2 * np.arange(KK),          # dh_k  = conv row 2k
                           2 * np.arange(KK) + 1,      # dw_k  = conv row 2k+1
                           2 * KK + np.arange(KK)])    # msk_k = conv row 18+k
    tap_base = np.concatenate([
        np.array([(k // KW) * DIL - PAD for k in range(KK)], np.float32),
        np.array([(k % KW) * DIL - PAD for k in range(KK)], np.float32),
        np.zeros(KK, np.float32)])
    w_om_perm = jnp.concatenate(
        [w_flat[perm], (b_om[perm] + tap_base)[:, None]], axis=1)  # (27, 37)

    # Deform-conv weight expanded over W and flattened over taps so the whole
    # accumulation is one (C_OUT, KK*C_IN*W) @ (KK*C_IN*W, P) matmul:
    #   wk_flat[o, k*C_IN*W + c*W + w] = weight[o, c, ki, kj]
    wk = jnp.transpose(weight, (0, 2, 3, 1))                    # (C_OUT,KH,KW,C_IN)
    wk_flat = jnp.broadcast_to(wk[..., None],
                               (C_OUT, KH, KW, c_in, W)).reshape(C_OUT, KCW)
    wk_flat = wk_flat.astype(jnp.bfloat16)

    # BN (inference) with the deform-conv bias folded: z = acc*scale + shift2.
    scale = bn_gamma / jnp.sqrt(bn_var + BN_EPS)
    shift2 = bias * scale + (bn_beta - bn_mean * scale)
    post = jnp.stack([scale, shift2], axis=1)                   # (C_OUT, 2)

    out_t = pl.pallas_call(
        dcnv2_kernel,
        out_shape=jax.ShapeDtypeStruct((n, C_OUT, P), jnp.float32),
        grid=(n,),
        in_specs=[
            pl.BlockSpec((1, C_AUG, P), lambda i: (i, 0, 0)),
            pl.BlockSpec((1, c_in * W, H), lambda i: (i, 0, 0)),
            pl.BlockSpec((C_OM, C_AUG), lambda i: (0, 0)),
            pl.BlockSpec((C_OUT, KCW), lambda i: (0, 0)),
            pl.BlockSpec((C_OUT, 2), lambda i: (0, 0)),
        ],
        out_specs=pl.BlockSpec((1, C_OUT, P), lambda i: (i, 0, 0)),
        scratch_shapes=[pltpu.VMEM((KCW, P), jnp.bfloat16)],
        compiler_params=pltpu.CompilerParams(
            dimension_semantics=("parallel",)),
    )(cols_aug, x_cwh, w_om_perm, wk_flat, post)

    # Lane-dense (N, C_OUT, P) output -> NCHW by pure reshape (no transpose).
    return out_t.reshape(n, C_OUT, H_OUT, W_OUT)


# ---------------------------------------------------------------------------
# Pure numpy reference (same math, torchvision deform_conv2d semantics)
# ---------------------------------------------------------------------------
def _np_sigmoid(v):
    return 1.0 / (1.0 + np.exp(-v))


def dcnv2_reference(x, w_om, b_om, weight, bias, gamma, beta, mean, var):
    x = np.asarray(x, np.float64)
    w_om = np.asarray(w_om, np.float64)
    b_om = np.asarray(b_om, np.float64)
    weight = np.asarray(weight, np.float64)
    bias = np.asarray(bias, np.float64)
    gamma = np.asarray(gamma, np.float64)
    beta = np.asarray(beta, np.float64)
    mean = np.asarray(mean, np.float64)
    var = np.asarray(var, np.float64)

    n = x.shape[0]
    xp = np.pad(x, ((0, 0), (0, 0), (PAD, PAD), (PAD, PAD)))

    # offset / mask conv
    om = np.zeros((n, C_OM, H_OUT, W_OUT), np.float64)
    for co in range(C_OM):
        for ci in range(C_IN):
            for ki in range(KH):
                for kj in range(KW):
                    om[:, co] += w_om[co, ci, ki, kj] * xp[
                        :, ci,
                        ki * DIL: ki * DIL + (H_OUT - 1) * STRIDE + 1: STRIDE,
                        kj * DIL: kj * DIL + (W_OUT - 1) * STRIDE + 1: STRIDE]
        om[:, co] += b_om[co]

    def bilinear(im, hh, ww):
        if hh <= -1 or hh >= H or ww <= -1 or ww >= W:
            return np.zeros(im.shape[0], np.float64)
        h_low = int(math.floor(hh)); w_low = int(math.floor(ww))
        h_high = h_low + 1; w_high = w_low + 1
        lh = hh - h_low; lw = ww - w_low
        hh_w = 1 - lh; hw_w = 1 - lw
        v1 = im[:, h_low, w_low] if (h_low >= 0 and w_low >= 0) else 0.0
        v2 = im[:, h_low, w_high] if (h_low >= 0 and w_high <= W - 1) else 0.0
        v3 = im[:, h_high, w_low] if (h_high <= H - 1 and w_low >= 0) else 0.0
        v4 = im[:, h_high, w_high] if (h_high <= H - 1 and w_high <= W - 1) else 0.0
        return hh_w * hw_w * v1 + hh_w * lw * v2 + lh * hw_w * v3 + lh * lw * v4

    out = np.zeros((n, C_OUT, H_OUT, W_OUT), np.float64)
    for b in range(n):
        for oy in range(H_OUT):
            for ox in range(W_OUT):
                col = np.zeros((C_IN, KH, KW), np.float64)
                for ki in range(KH):
                    for kj in range(KW):
                        kidx = ki * KW + kj
                        dh = om[b, 2 * kidx, oy, ox]
                        dw = om[b, 2 * kidx + 1, oy, ox]
                        msk = _np_sigmoid(om[b, 2 * KK + kidx, oy, ox])
                        yy = oy * STRIDE - PAD + ki * DIL + dh
                        xx = ox * STRIDE - PAD + kj * DIL + dw
                        col[:, ki, kj] = bilinear(x[b], yy, xx) * msk
                out[b, :, oy, ox] = (
                    np.tensordot(weight, col, axes=([1, 2, 3], [0, 1, 2])) + bias)

    scale = gamma / np.sqrt(var + BN_EPS)
    shift = beta - mean * scale
    out = out * scale[None, :, None, None] + shift[None, :, None, None]
    out = out * _np_sigmoid(out)
    return out.astype(np.float32)


if __name__ == "__main__":
    key = jax.random.PRNGKey(0)
    k_x, k_w, k_b, k_wom, k_bom, k_g, k_be, k_m, k_v = jax.random.split(key, 9)

    x = jax.random.normal(k_x, (N, C_IN, H, W), jnp.float32)

    # Deterministic synthetic parameters (shapes from DCNv2.__init__).
    std = 1.0 / math.sqrt(C_IN * KH * KW)
    weight = jax.random.uniform(k_w, (C_OUT, C_IN, KH, KW), jnp.float32, -std, std)
    bias = 0.1 * jax.random.normal(k_b, (C_OUT,), jnp.float32)
    # NOTE: reset_parameters() zeroes conv_offset_mask; small random values are
    # used instead so the deformable bilinear-sampling path is exercised.
    w_om = 0.1 * jax.random.normal(k_wom, (C_OM, C_IN, KH, KW), jnp.float32)
    b_om = 0.1 * jax.random.normal(k_bom, (C_OM,), jnp.float32)
    bn_gamma = 1.0 + 0.1 * jax.random.normal(k_g, (C_OUT,), jnp.float32)
    bn_beta = 0.1 * jax.random.normal(k_be, (C_OUT,), jnp.float32)
    bn_mean = 0.1 * jax.random.normal(k_m, (C_OUT,), jnp.float32)
    bn_var = jax.random.uniform(k_v, (C_OUT,), jnp.float32, 0.5, 1.5)

    out = dcnv2_forward(x, w_om, b_om, weight, bias,
                        bn_gamma, bn_beta, bn_mean, bn_var)
    out = jax.block_until_ready(out)
    assert out.shape == (N, C_OUT, H_OUT, W_OUT)

    ref = dcnv2_reference(np.asarray(x), np.asarray(w_om), np.asarray(b_om),
                          np.asarray(weight), np.asarray(bias),
                          np.asarray(bn_gamma), np.asarray(bn_beta),
                          np.asarray(bn_mean), np.asarray(bn_var))
    np.testing.assert_allclose(np.asarray(out), ref, rtol=1e-2, atol=1e-2)
    print("KERNEL_OK")
</pallas_src>

<mosaic_0001>
module attributes {stable_mosaic.version = 11 : i64} {
  func.func @dcnv2_kernel(%arg0: i32, %arg1: memref<1x37x256xf32, #tpu.memory_space<vmem>>, %arg2: memref<1x64x16xbf16, #tpu.memory_space<vmem>>, %arg3: memref<27x37xf32, #tpu.memory_space<vmem>>, %arg4: memref<8x576xbf16, #tpu.memory_space<vmem>>, %arg5: memref<8x2xf32, #tpu.memory_space<vmem>>, %arg6: memref<1x8x256xf32, #tpu.memory_space<vmem>>, %arg7: memref<576x256xbf16, #tpu.memory_space<vmem>>) attributes {dimension_semantics = [#tpu.dimension_semantics<parallel>], iteration_bounds = array<i64: 2>, scalar_prefetch = 0 : i64, scratch_operands = 1 : i64, tpu.core_type = #tpu.core_type<tc>, window_params = [{transform_indices = @transform_0, window_bounds = array<i64: 1, 37, 256>}, {transform_indices = @transform_1, window_bounds = array<i64: 1, 64, 16>}, {pipeline_mode = #tpu.pipeline_mode<synchronous>, transform_indices = @transform_2, window_bounds = array<i64: 27, 37>}, {pipeline_mode = #tpu.pipeline_mode<synchronous>, transform_indices = @transform_3, window_bounds = array<i64: 8, 576>}, {pipeline_mode = #tpu.pipeline_mode<synchronous>, transform_indices = @transform_4, window_bounds = array<i64: 8, 2>}, {transform_indices = @transform_5, window_bounds = array<i64: 1, 8, 256>}]} {
    %c0 = arith.constant 0 : index
    %c0_0 = arith.constant 0 : index
    %c0_1 = arith.constant 0 : index
    %0 = vector.load %arg1[%c0, %c0_0, %c0_1] : memref<1x37x256xf32, #tpu.memory_space<vmem>>, vector<1x37x256xf32>
    %1 = vector.shape_cast %0 : vector<1x37x256xf32> to vector<37x256xf32>
    %c0_2 = arith.constant 0 : index
    %c0_3 = arith.constant 0 : index
    %c0_4 = arith.constant 0 : index
    %2 = vector.load %arg2[%c0_2, %c0_3, %c0_4] : memref<1x64x16xbf16, #tpu.memory_space<vmem>>, vector<1x64x16xbf16>
    %3 = vector.shape_cast %2 : vector<1x64x16xbf16> to vector<64x16xbf16>
    %c0_5 = arith.constant 0 : index
    %c0_6 = arith.constant 0 : index
    %4 = vector.load %arg3[%c0_5, %c0_6] : memref<27x37xf32, #tpu.memory_space<vmem>>, vector<27x37xf32>
    %cst = arith.constant dense<0.000000e+00> : vector<27x256xf32>
    %5 = tpu.matmul %4, %1, %cst {dimension_numbers = #tpu.dot_dimension_numbers<[1], [0], [0], [1], [0, 0, 1, 1], [], []>} : vector<27x37xf32>, vector<37x256xf32>, vector<27x256xf32> -> vector<27x256xf32>
    %6 = tpu.iota {dimensions = array<i32: 1>} : vector<1x256xi32>
    %c4_i32 = arith.constant 4 : i32
    %7 = vector.broadcast %c4_i32 : i32 to vector<1x256xi32>
    %8 = arith.shrsi %6, %7 : vector<1x256xi32>
    %c15_i32 = arith.constant 15 : i32
    %9 = vector.broadcast %c15_i32 : i32 to vector<1x256xi32>
    %10 = arith.andi %6, %9 : vector<1x256xi32>
    %c1_i32 = arith.constant 1 : i32
    %11 = vector.broadcast %c1_i32 : i32 to vector<1x256xi32>
    %12 = arith.muli %8, %11 : vector<1x256xi32>
    %13 = arith.sitofp %12 : vector<1x256xi32> to vector<1x256xf32>
    %c1_i32_7 = arith.constant 1 : i32
    %14 = vector.broadcast %c1_i32_7 : i32 to vector<1x256xi32>
    %15 = arith.muli %10, %14 : vector<1x256xi32>
    %16 = arith.sitofp %15 : vector<1x256xi32> to vector<1x256xf32>
    %17 = vector.extract_strided_slice %5 {offsets = [0, 0], sizes = [9, 256], strides = [1, 1]} : vector<27x256xf32> to vector<9x256xf32>
    %18 = vector.broadcast %13 : vector<1x256xf32> to vector<9x256xf32>
    %19 = arith.addf %18, %17 : vector<9x256xf32>
    %20 = vector.extract_strided_slice %5 {offsets = [9, 0], sizes = [9, 256], strides = [1, 1]} : vector<27x256xf32> to vector<9x256xf32>
    %21 = vector.broadcast %16 : vector<1x256xf32> to vector<9x256xf32>
    %22 = arith.addf %21, %20 : vector<9x256xf32>
    %23 = vector.extract_strided_slice %5 {offsets = [18, 0], sizes = [9, 256], strides = [1, 1]} : vector<27x256xf32> to vector<9x256xf32>
    %cst_8 = arith.constant 0.000000e+00 : f32
    %24 = vector.broadcast %cst_8 : f32 to vector<9x256xf32>
    %25 = arith.subf %24, %23 : vector<9x256xf32>
    %26 = math.exp %25 : vector<9x256xf32>
    %cst_9 = arith.constant 1.000000e+00 : f32
    %27 = vector.broadcast %cst_9 : f32 to vector<9x256xf32>
    %28 = arith.addf %27, %26 : vector<9x256xf32>
    %29 = tpu.reciprocal %28 {approx = true} : vector<9x256xf32> -> vector<9x256xf32>
    %30 = tpu.iota {dimensions = array<i32: 0>} : vector<16x256xi32>
    %31 = arith.sitofp %30 : vector<16x256xi32> to vector<16x256xf32>
    %32 = tpu.iota {dimensions = array<i32: 0>} : vector<16x256xi32>
    %33 = arith.sitofp %32 : vector<16x256xi32> to vector<16x256xf32>
    %34 = vector.extract_strided_slice %19 {offsets = [0, 0], sizes = [1, 256], strides = [1, 1]} : vector<9x256xf32> to vector<1x256xf32>
    %35 = vector.extract_strided_slice %22 {offsets = [0, 0], sizes = [1, 256], strides = [1, 1]} : vector<9x256xf32> to vector<1x256xf32>
    %36 = vector.extract_strided_slice %29 {offsets = [0, 0], sizes = [1, 256], strides = [1, 1]} : vector<9x256xf32> to vector<1x256xf32>
    %37 = vector.broadcast %34 : vector<1x256xf32> to vector<16x256xf32>
    %38 = arith.subf %31, %37 : vector<16x256xf32>
    %39 = math.absf %38 : vector<16x256xf32>
    %cst_10 = arith.constant 1.000000e+00 : f32
    %40 = vector.broadcast %cst_10 : f32 to vector<16x256xf32>
    %41 = arith.subf %40, %39 : vector<16x256xf32>
    %cst_11 = arith.constant 0.000000e+00 : f32
    %42 = vector.broadcast %cst_11 : f32 to vector<16x256xf32>
    %43 = arith.maximumf %41, %42 : vector<16x256xf32>
    %44 = vector.broadcast %35 : vector<1x256xf32> to vector<16x256xf32>
    %45 = arith.subf %33, %44 : vector<16x256xf32>
    %46 = math.absf %45 : vector<16x256xf32>
    %cst_12 = arith.constant 1.000000e+00 : f32
    %47 = vector.broadcast %cst_12 : f32 to vector<16x256xf32>
    %48 = arith.subf %47, %46 : vector<16x256xf32>
    %cst_13 = arith.constant 0.000000e+00 : f32
    %49 = vector.broadcast %cst_13 : f32 to vector<16x256xf32>
    %50 = arith.maximumf %48, %49 : vector<16x256xf32>
    %51 = vector.broadcast %36 : vector<1x256xf32> to vector<16x256xf32>
    %52 = arith.mulf %50, %51 : vector<16x256xf32>
    %53 = arith.truncf %43 : vector<16x256xf32> to vector<16x256xbf16>
    %cst_14 = arith.constant dense<0.000000e+00> : vector<64x256xf32>
    %54 = tpu.matmul %3, %53, %cst_14 {dimension_numbers = #tpu.dot_dimension_numbers<[1], [0], [0], [1], [0, 0, 1, 1], [], []>} : vector<64x16xbf16>, vector<16x256xbf16>, vector<64x256xf32> -> vector<64x256xf32>
    %55 = vector.extract_strided_slice %54 {offsets = [0, 0], sizes = [16, 256], strides = [1, 1]} : vector<64x256xf32> to vector<16x256xf32>
    %56 = arith.mulf %55, %52 : vector<16x256xf32>
    %57 = arith.truncf %56 : vector<16x256xf32> to vector<16x256xbf16>
    %c0_15 = arith.constant 0 : index
    %c0_16 = arith.constant 0 : index
    %58 = vector.load %arg7[%c0_15, %c0_16] : memref<576x256xbf16, #tpu.memory_space<vmem>>, vector<16x256xbf16>
    tpu.vector_store %arg7[%c0_15, %c0_16], %57 {strides = array<i32>} : memref<576x256xbf16, #tpu.memory_space<vmem>>, vector<16x256xbf16>,
    %59 = vector.extract_strided_slice %54 {offsets = [16, 0], sizes = [16, 256], strides = [1, 1]} : vector<64x256xf32> to vector<16x256xf32>
    %60 = arith.mulf %59, %52 : vector<16x256xf32>
    %61 = arith.truncf %60 : vector<16x256xf32> to vector<16x256xbf16>
    %c16 = arith.constant 16 : index
    %c0_17 = arith.constant 0 : index
    %62 = vector.load %arg7[%c16, %c0_17] : memref<576x256xbf16, #tpu.memory_space<vmem>>, vector<16x256xbf16>
    tpu.vector_store %arg7[%c16, %c0_17], %61 {strides = array<i32>} : memref<576x256xbf16, #tpu.memory_space<vmem>>, vector<16x256xbf16>,
    %63 = vector.extract_strided_slice %54 {offsets = [32, 0], sizes = [16, 256], strides = [1, 1]} : vector<64x256xf32> to vector<16x256xf32>
    %64 = arith.mulf %63, %52 : vector<16x256xf32>
    %65 = arith.truncf %64 : vector<16x256xf32> to vector<16x256xbf16>
    %c32 = arith.constant 32 : index
    %c0_18 = arith.constant 0 : index
    %66 = vector.load %arg7[%c32, %c0_18] : memref<576x256xbf16, #tpu.memory_space<vmem>>, vector<16x256xbf16>
    tpu.vector_store %arg7[%c32, %c0_18], %65 {strides = array<i32>} : memref<576x256xbf16, #tpu.memory_space<vmem>>, vector<16x256xbf16>,
    %67 = vector.extract_strided_slice %54 {offsets = [48, 0], sizes = [16, 256], strides = [1, 1]} : vector<64x256xf32> to vector<16x256xf32>
    %68 = arith.mulf %67, %52 : vector<16x256xf32>
    %69 = arith.truncf %68 : vector<16x256xf32> to vector<16x256xbf16>
    %c48 = arith.constant 48 : index
    %c0_19 = arith.constant 0 : index
    %70 = vector.load %arg7[%c48, %c0_19] : memref<576x256xbf16, #tpu.memory_space<vmem>>, vector<16x256xbf16>
    tpu.vector_store %arg7[%c48, %c0_19], %69 {strides = array<i32>} : memref<576x256xbf16, #tpu.memory_space<vmem>>, vector<16x256xbf16>,
    %71 = vector.extract_strided_slice %19 {offsets = [1, 0], sizes = [1, 256], strides = [1, 1]} : vector<9x256xf32> to vector<1x256xf32>
    %72 = vector.extract_strided_slice %22 {offsets = [1, 0], sizes = [1, 256], strides = [1, 1]} : vector<9x256xf32> to vector<1x256xf32>
    %73 = vector.extract_strided_slice %29 {offsets = [1, 0], sizes = [1, 256], strides = [1, 1]} : vector<9x256xf32> to vector<1x256xf32>
    %74 = vector.broadcast %71 : vector<1x256xf32> to vector<16x256xf32>
    %75 = arith.subf %31, %74 : vector<16x256xf32>
    %76 = math.absf %75 : vector<16x256xf32>
    %cst_20 = arith.constant 1.000000e+00 : f32
    %77 = vector.broadcast %cst_20 : f32 to vector<16x256xf32>
    %78 = arith.subf %77, %76 : vector<16x256xf32>
    %cst_21 = arith.constant 0.000000e+00 : f32
    %79 = vector.broadcast %cst_21 : f32 to vector<16x256xf32>
    %80 = arith.maximumf %78, %79 : vector<16x256xf32>
    %81 = vector.broadcast %72 : vector<1x256xf32> to vector<16x256xf32>
    %82 = arith.subf %33, %81 : vector<16x256xf32>
    %83 = math.absf %82 : vector<16x256xf32>
    %cst_22 = arith.constant 1.000000e+00 : f32
    %84 = vector.broadcast %cst_22 : f32 to vector<16x256xf32>
    %85 = arith.subf %84, %83 : vector<16x256xf32>
    %cst_23 = arith.constant 0.000000e+00 : f32
    %86 = vector.broadcast %cst_23 : f32 to vector<16x256xf32>
    %87 = arith.maximumf %85, %86 : vector<16x256xf32>
    %88 = vector.broadcast %73 : vector<1x256xf32> to vector<16x256xf32>
    %89 = arith.mulf %87, %88 : vector<16x256xf32>
    %90 = arith.truncf %80 : vector<16x256xf32> to vector<16x256xbf16>
    %cst_24 = arith.constant dense<0.000000e+00> : vector<64x256xf32>
    %91 = tpu.matmul %3, %90, %cst_24 {dimension_numbers = #tpu.dot_dimension_numbers<[1], [0], [0], [1], [0, 0, 1, 1], [], []>} : vector<64x16xbf16>, vector<16x256xbf16>, vector<64x256xf32> -> vector<64x256xf32>
    %92 = vector.extract_strided_slice %91 {offsets = [0, 0], sizes = [16, 256], strides = [1, 1]} : vector<64x256xf32> to vector<16x256xf32>
    %93 = arith.mulf %92, %89 : vector<16x256xf32>
    %94 = arith.truncf %93 : vector<16x256xf32> to vector<16x256xbf16>
    %c64 = arith.constant 64 : index
    %c0_25 = arith.constant 0 : index
    %95 = vector.load %arg7[%c64, %c0_25] : memref<576x256xbf16, #tpu.memory_space<vmem>>, vector<16x256xbf16>
    tpu.vector_store %arg7[%c64, %c0_25], %94 {strides = array<i32>} : memref<576x256xbf16, #tpu.memory_space<vmem>>, vector<16x256xbf16>,
    %96 = vector.extract_strided_slice %91 {offsets = [16, 0], sizes = [16, 256], strides = [1, 1]} : vector<64x256xf32> to vector<16x256xf32>
    %97 = arith.mulf %96, %89 : vector<16x256xf32>
    %98 = arith.truncf %97 : vector<16x256xf32> to vector<16x256xbf16>
    %c80 = arith.constant 80 : index
    %c0_26 = arith.constant 0 : index
    %99 = vector.load %arg7[%c80, %c0_26] : memref<576x256xbf16, #tpu.memory_space<vmem>>, vector<16x256xbf16>
    tpu.vector_store %arg7[%c80, %c0_26], %98 {strides = array<i32>} : memref<576x256xbf16, #tpu.memory_space<vmem>>, vector<16x256xbf16>,
    %100 = vector.extract_strided_slice %91 {offsets = [32, 0], sizes = [16, 256], strides = [1, 1]} : vector<64x256xf32> to vector<16x256xf32>
    %101 = arith.mulf %100, %89 : vector<16x256xf32>
    %102 = arith.truncf %101 : vector<16x256xf32> to vector<16x256xbf16>
    %c96 = arith.constant 96 : index
    %c0_27 = arith.constant 0 : index
    %103 = vector.load %arg7[%c96, %c0_27] : memref<576x256xbf16, #tpu.memory_space<vmem>>, vector<16x256xbf16>
    tpu.vector_store %arg7[%c96, %c0_27], %102 {strides = array<i32>} : memref<576x256xbf16, #tpu.memory_space<vmem>>, vector<16x256xbf16>,
    %104 = vector.extract_strided_slice %91 {offsets = [48, 0], sizes = [16, 256], strides = [1, 1]} : vector<64x256xf32> to vector<16x256xf32>
    %105 = arith.mulf %104, %89 : vector<16x256xf32>
    %106 = arith.truncf %105 : vector<16x256xf32> to vector<16x256xbf16>
    %c112 = arith.constant 112 : index
    %c0_28 = arith.constant 0 : index
    %107 = vector.load %arg7[%c112, %c0_28] : memref<576x256xbf16, #tpu.memory_space<vmem>>, vector<16x256xbf16>
    tpu.vector_store %arg7[%c112, %c0_28], %106 {strides = array<i32>} : memref<576x256xbf16, #tpu.memory_space<vmem>>, vector<16x256xbf16>,
    %108 = vector.extract_strided_slice %19 {offsets = [2, 0], sizes = [1, 256], strides = [1, 1]} : vector<9x256xf32> to vector<1x256xf32>
    %109 = vector.extract_strided_slice %22 {offsets = [2, 0], sizes = [1, 256], strides = [1, 1]} : vector<9x256xf32> to vector<1x256xf32>
    %110 = vector.extract_strided_slice %29 {offsets = [2, 0], sizes = [1, 256], strides = [1, 1]} : vector<9x256xf32> to vector<1x256xf32>
    %111 = vector.broadcast %108 : vector<1x256xf32> to vector<16x256xf32>
    %112 = arith.subf %31, %111 : vector<16x256xf32>
    %113 = math.absf %112 : vector<16x256xf32>
    %cst_29 = arith.constant 1.000000e+00 : f32
    %114 = vector.broadcast %cst_29 : f32 to vector<16x256xf32>
    %115 = arith.subf %114, %113 : vector<16x256xf32>
    %cst_30 = arith.constant 0.000000e+00 : f32
    %116 = vector.broadcast %cst_30 : f32 to vector<16x256xf32>
    %117 = arith.maximumf %115, %116 : vector<16x256xf32>
    %118 = vector.broadcast %109 : vector<1x256xf32> to vector<16x256xf32>
    %119 = arith.subf %33, %118 : vector<16x256xf32>
    %120 = math.absf %119 : vector<16x256xf32>
    %cst_31 = arith.constant 1.000000e+00 : f32
    %121 = vector.broadcast %cst_31 : f32 to vector<16x256xf32>
    %122 = arith.subf %121, %120 : vector<16x256xf32>
    %cst_32 = arith.constant 0.000000e+00 : f32
    %123 = vector.broadcast %cst_32 : f32 to vector<16x256xf32>
    %124 = arith.maximumf %122, %123 : vector<16x256xf32>
    %125 = vector.broadcast %110 : vector<1x256xf32> to vector<16x256xf32>
    %126 = arith.mulf %124, %125 : vector<16x256xf32>
    %127 = arith.truncf %117 : vector<16x256xf32> to vector<16x256xbf16>
    %cst_33 = arith.constant dense<0.000000e+00> : vector<64x256xf32>
    %128 = tpu.matmul %3, %127, %cst_33 {dimension_numbers = #tpu.dot_dimension_numbers<[1], [0], [0], [1], [0, 0, 1, 1], [], []>} : vector<64x16xbf16>, vector<16x256xbf16>, vector<64x256xf32> -> vector<64x256xf32>
    %129 = vector.extract_strided_slice %128 {offsets = [0, 0], sizes = [16, 256], strides = [1, 1]} : vector<64x256xf32> to vector<16x256xf32>
    %130 = arith.mulf %129, %126 : vector<16x256xf32>
    %131 = arith.truncf %130 : vector<16x256xf32> to vector<16x256xbf16>
    %c128 = arith.constant 128 : index
    %c0_34 = arith.constant 0 : index
    %132 = vector.load %arg7[%c128, %c0_34] : memref<576x256xbf16, #tpu.memory_space<vmem>>, vector<16x256xbf16>
    tpu.vector_store %arg7[%c128, %c0_34], %131 {strides = array<i32>} : memref<576x256xbf16, #tpu.memory_space<vmem>>, vector<16x256xbf16>,
    %133 = vector.extract_strided_slice %128 {offsets = [16, 0], sizes = [16, 256], strides = [1, 1]} : vector<64x256xf32> to vector<16x256xf32>
    %134 = arith.mulf %133, %126 : vector<16x256xf32>
    %135 = arith.truncf %134 : vector<16x256xf32> to vector<16x256xbf16>
    %c144 = arith.constant 144 : index
    %c0_35 = arith.constant 0 : index
    %136 = vector.load %arg7[%c144, %c0_35] : memref<576x256xbf16, #tpu.memory_space<vmem>>, vector<16x256xbf16>
    tpu.vector_store %arg7[%c144, %c0_35], %135 {strides = array<i32>} : memref<576x256xbf16, #tpu.memory_space<vmem>>, vector<16x256xbf16>,
    %137 = vector.extract_strided_slice %128 {offsets = [32, 0], sizes = [16, 256], strides = [1, 1]} : vector<64x256xf32> to vector<16x256xf32>
    %138 = arith.mulf %137, %126 : vector<16x256xf32>
    %139 = arith.truncf %138 : vector<16x256xf32> to vector<16x256xbf16>
    %c160 = arith.constant 160 : index
    %c0_36 = arith.constant 0 : index
    %140 = vector.load %arg7[%c160, %c0_36] : memref<576x256xbf16, #tpu.memory_space<vmem>>, vector<16x256xbf16>
    tpu.vector_store %arg7[%c160, %c0_36], %139 {strides = array<i32>} : memref<576x256xbf16, #tpu.memory_space<vmem>>, vector<16x256xbf16>,
    %141 = vector.extract_strided_slice %128 {offsets = [48, 0], sizes = [16, 256], strides = [1, 1]} : vector<64x256xf32> to vector<16x256xf32>
    %142 = arith.mulf %141, %126 : vector<16x256xf32>
    %143 = arith.truncf %142 : vector<16x256xf32> to vector<16x256xbf16>
    %c176 = arith.constant 176 : index
    %c0_37 = arith.constant 0 : index
    %144 = vector.load %arg7[%c176, %c0_37] : memref<576x256xbf16, #tpu.memory_space<vmem>>, vector<16x256xbf16>
    tpu.vector_store %arg7[%c176, %c0_37], %143 {strides = array<i32>} : memref<576x256xbf16, #tpu.memory_space<vmem>>, vector<16x256xbf16>,
    %145 = vector.extract_strided_slice %19 {offsets = [3, 0], sizes = [1, 256], strides = [1, 1]} : vector<9x256xf32> to vector<1x256xf32>
    %146 = vector.extract_strided_slice %22 {offsets = [3, 0], sizes = [1, 256], strides = [1, 1]} : vector<9x256xf32> to vector<1x256xf32>
    %147 = vector.extract_strided_slice %29 {offsets = [3, 0], sizes = [1, 256], strides = [1, 1]} : vector<9x256xf32> to vector<1x256xf32>
    %148 = vector.broadcast %145 : vector<1x256xf32> to vector<16x256xf32>
    %149 = arith.subf %31, %148 : vector<16x256xf32>
    %150 = math.absf %149 : vector<16x256xf32>
    %cst_38 = arith.constant 1.000000e+00 : f32
    %151 = vector.broadcast %cst_38 : f32 to vector<16x256xf32>
    %152 = arith.subf %151, %150 : vector<16x256xf32>
    %cst_39 = arith.constant 0.000000e+00 : f32
    %153 = vector.broadcast %cst_39 : f32 to vector<16x256xf32>
    %154 = arith.maximumf %152, %153 : vector<16x256xf32>
    %155 = vector.broadcast %146 : vector<1x256xf32> to vector<16x256xf32>
    %156 = arith.subf %33, %155 : vector<16x256xf32>
    %157 = math.absf %156 : vector<16x256xf32>
    %cst_40 = arith.constant 1.000000e+00 : f32
    %158 = vector.broadcast %cst_40 : f32 to vector<16x256xf32>
    %159 = arith.subf %158, %157 : vector<16x256xf32>
    %cst_41 = arith.constant 0.000000e+00 : f32
    %160 = vector.broadcast %cst_41 : f32 to vector<16x256xf32>
    %161 = arith.maximumf %159, %160 : vector<16x256xf32>
    %162 = vector.broadcast %147 : vector<1x256xf32> to vector<16x256xf32>
    %163 = arith.mulf %161, %162 : vector<16x256xf32>
    %164 = arith.truncf %154 : vector<16x256xf32> to vector<16x256xbf16>
    %cst_42 = arith.constant dense<0.000000e+00> : vector<64x256xf32>
    %165 = tpu.matmul %3, %164, %cst_42 {dimension_numbers = #tpu.dot_dimension_numbers<[1], [0], [0], [1], [0, 0, 1, 1], [], []>} : vector<64x16xbf16>, vector<16x256xbf16>, vector<64x256xf32> -> vector<64x256xf32>
    %166 = vector.extract_strided_slice %165 {offsets = [0, 0], sizes = [16, 256], strides = [1, 1]} : vector<64x256xf32> to vector<16x256xf32>
    %167 = arith.mulf %166, %163 : vector<16x256xf32>
    %168 = arith.truncf %167 : vector<16x256xf32> to vector<16x256xbf16>
    %c192 = arith.constant 192 : index
    %c0_43 = arith.constant 0 : index
    %169 = vector.load %arg7[%c192, %c0_43] : memref<576x256xbf16, #tpu.memory_space<vmem>>, vector<16x256xbf16>
    tpu.vector_store %arg7[%c192, %c0_43], %168 {strides = array<i32>} : memref<576x256xbf16, #tpu.memory_space<vmem>>, vector<16x256xbf16>,
    %170 = vector.extract_strided_slice %165 {offsets = [16, 0], sizes = [16, 256], strides = [1, 1]} : vector<64x256xf32> to vector<16x256xf32>
    %171 = arith.mulf %170, %163 : vector<16x256xf32>
    %172 = arith.truncf %171 : vector<16x256xf32> to vector<16x256xbf16>
    %c208 = arith.constant 208 : index
    %c0_44 = arith.constant 0 : index
    %173 = vector.load %arg7[%c208, %c0_44] : memref<576x256xbf16, #tpu.memory_space<vmem>>, vector<16x256xbf16>
    tpu.vector_store %arg7[%c208, %c0_44], %172 {strides = array<i32>} : memref<576x256xbf16, #tpu.memory_space<vmem>>, vector<16x256xbf16>,
    %174 = vector.extract_strided_slice %165 {offsets = [32, 0], sizes = [16, 256], strides = [1, 1]} : vector<64x256xf32> to vector<16x256xf32>
    %175 = arith.mulf %174, %163 : vector<16x256xf32>
    %176 = arith.truncf %175 : vector<16x256xf32> to vector<16x256xbf16>
    %c224 = arith.constant 224 : index
    %c0_45 = arith.constant 0 : index
    %177 = vector.load %arg7[%c224, %c0_45] : memref<576x256xbf16, #tpu.memory_space<vmem>>, vector<16x256xbf16>
    tpu.vector_store %arg7[%c224, %c0_45], %176 {strides = array<i32>} : memref<576x256xbf16, #tpu.memory_space<vmem>>, vector<16x256xbf16>,
    %178 = vector.extract_strided_slice %165 {offsets = [48, 0], sizes = [16, 256], strides = [1, 1]} : vector<64x256xf32> to vector<16x256xf32>
    %179 = arith.mulf %178, %163 : vector<16x256xf32>
    %180 = arith.truncf %179 : vector<16x256xf32> to vector<16x256xbf16>
    %c240 = arith.constant 240 : index
    %c0_46 = arith.constant 0 : index
    %181 = vector.load %arg7[%c240, %c0_46] : memref<576x256xbf16, #tpu.memory_space<vmem>>, vector<16x256xbf16>
    tpu.vector_store %arg7[%c240, %c0_46], %180 {strides = array<i32>} : memref<576x256xbf16, #tpu.memory_space<vmem>>, vector<16x256xbf16>,
    %182 = vector.extract_strided_slice %19 {offsets = [4, 0], sizes = [1, 256], strides = [1, 1]} : vector<9x256xf32> to vector<1x256xf32>
    %183 = vector.extract_strided_slice %22 {offsets = [4, 0], sizes = [1, 256], strides = [1, 1]} : vector<9x256xf32> to vector<1x256xf32>
    %184 = vector.extract_strided_slice %29 {offsets = [4, 0], sizes = [1, 256], strides = [1, 1]} : vector<9x256xf32> to vector<1x256xf32>
    %185 = vector.broadcast %182 : vector<1x256xf32> to vector<16x256xf32>
    %186 = arith.subf %31, %185 : vector<16x256xf32>
    %187 = math.absf %186 : vector<16x256xf32>
    %cst_47 = arith.constant 1.000000e+00 : f32
    %188 = vector.broadcast %cst_47 : f32 to vector<16x256xf32>
    %189 = arith.subf %188, %187 : vector<16x256xf32>
    %cst_48 = arith.constant 0.000000e+00 : f32
    %190 = vector.broadcast %cst_48 : f32 to vector<16x256xf32>
    %191 = arith.maximumf %189, %190 : vector<16x256xf32>
    %192 = vector.broadcast %183 : vector<1x256xf32> to vector<16x256xf32>
    %193 = arith.subf %33, %192 : vector<16x256xf32>
    %194 = math.absf %193 : vector<16x256xf32>
    %cst_49 = arith.constant 1.000000e+00 : f32
    %195 = vector.broadcast %cst_49 : f32 to vector<16x256xf32>
    %196 = arith.subf %195, %194 : vector<16x256xf32>
    %cst_50 = arith.constant 0.000000e+00 : f32
    %197 = vector.broadcast %cst_50 : f32 to vector<16x256xf32>
    %198 = arith.maximumf %196, %197 : vector<16x256xf32>
    %199 = vector.broadcast %184 : vector<1x256xf32> to vector<16x256xf32>
    %200 = arith.mulf %198, %199 : vector<16x256xf32>
    %201 = arith.truncf %191 : vector<16x256xf32> to vector<16x256xbf16>
    %cst_51 = arith.constant dense<0.000000e+00> : vector<64x256xf32>
    %202 = tpu.matmul %3, %201, %cst_51 {dimension_numbers = #tpu.dot_dimension_numbers<[1], [0], [0], [1], [0, 0, 1, 1], [], []>} : vector<64x16xbf16>, vector<16x256xbf16>, vector<64x256xf32> -> vector<64x256xf32>
    %203 = vector.extract_strided_slice %202 {offsets = [0, 0], sizes = [16, 256], strides = [1, 1]} : vector<64x256xf32> to vector<16x256xf32>
    %204 = arith.mulf %203, %200 : vector<16x256xf32>
    %205 = arith.truncf %204 : vector<16x256xf32> to vector<16x256xbf16>
    %c256 = arith.constant 256 : index
    %c0_52 = arith.constant 0 : index
    %206 = vector.load %arg7[%c256, %c0_52] : memref<576x256xbf16, #tpu.memory_space<vmem>>, vector<16x256xbf16>
    tpu.vector_store %arg7[%c256, %c0_52], %205 {strides = array<i32>} : memref<576x256xbf16, #tpu.memory_space<vmem>>, vector<16x256xbf16>,
    %207 = vector.extract_strided_slice %202 {offsets = [16, 0], sizes = [16, 256], strides = [1, 1]} : vector<64x256xf32> to vector<16x256xf32>
    %208 = arith.mulf %207, %200 : vector<16x256xf32>
    %209 = arith.truncf %208 : vector<16x256xf32> to vector<16x256xbf16>
    %c272 = arith.constant 272 : index
    %c0_53 = arith.constant 0 : index
    %210 = vector.load %arg7[%c272, %c0_53] : memref<576x256xbf16, #tpu.memory_space<vmem>>, vector<16x256xbf16>
    tpu.vector_store %arg7[%c272, %c0_53], %209 {strides = array<i32>} : memref<576x256xbf16, #tpu.memory_space<vmem>>, vector<16x256xbf16>,
    %211 = vector.extract_strided_slice %202 {offsets = [32, 0], sizes = [16, 256], strides = [1, 1]} : vector<64x256xf32> to vector<16x256xf32>
    %212 = arith.mulf %211, %200 : vector<16x256xf32>
    %213 = arith.truncf %212 : vector<16x256xf32> to vector<16x256xbf16>
    %c288 = arith.constant 288 : index
    %c0_54 = arith.constant 0 : index
    %214 = vector.load %arg7[%c288, %c0_54] : memref<576x256xbf16, #tpu.memory_space<vmem>>, vector<16x256xbf16>
    tpu.vector_store %arg7[%c288, %c0_54], %213 {strides = array<i32>} : memref<576x256xbf16, #tpu.memory_space<vmem>>, vector<16x256xbf16>,
    %215 = vector.extract_strided_slice %202 {offsets = [48, 0], sizes = [16, 256], strides = [1, 1]} : vector<64x256xf32> to vector<16x256xf32>
    %216 = arith.mulf %215, %200 : vector<16x256xf32>
    %217 = arith.truncf %216 : vector<16x256xf32> to vector<16x256xbf16>
    %c304 = arith.constant 304 : index
    %c0_55 = arith.constant 0 : index
    %218 = vector.load %arg7[%c304, %c0_55] : memref<576x256xbf16, #tpu.memory_space<vmem>>, vector<16x256xbf16>
    tpu.vector_store %arg7[%c304, %c0_55], %217 {strides = array<i32>} : memref<576x256xbf16, #tpu.memory_space<vmem>>, vector<16x256xbf16>,
    %219 = vector.extract_strided_slice %19 {offsets = [5, 0], sizes = [1, 256], strides = [1, 1]} : vector<9x256xf32> to vector<1x256xf32>
    %220 = vector.extract_strided_slice %22 {offsets = [5, 0], sizes = [1, 256], strides = [1, 1]} : vector<9x256xf32> to vector<1x256xf32>
    %221 = vector.extract_strided_slice %29 {offsets = [5, 0], sizes = [1, 256], strides = [1, 1]} : vector<9x256xf32> to vector<1x256xf32>
    %222 = vector.broadcast %219 : vector<1x256xf32> to vector<16x256xf32>
    %223 = arith.subf %31, %222 : vector<16x256xf32>
    %224 = math.absf %223 : vector<16x256xf32>
    %cst_56 = arith.constant 1.000000e+00 : f32
    %225 = vector.broadcast %cst_56 : f32 to vector<16x256xf32>
    %226 = arith.subf %225, %224 : vector<16x256xf32>
    %cst_57 = arith.constant 0.000000e+00 : f32
    %227 = vector.broadcast %cst_57 : f32 to vector<16x256xf32>
    %228 = arith.maximumf %226, %227 : vector<16x256xf32>
    %229 = vector.broadcast %220 : vector<1x256xf32> to vector<16x256xf32>
    %230 = arith.subf %33, %229 : vector<16x256xf32>
    %231 = math.absf %230 : vector<16x256xf32>
    %cst_58 = arith.constant 1.000000e+00 : f32
    %232 = vector.broadcast %cst_58 : f32 to vector<16x256xf32>
    %233 = arith.subf %232, %231 : vector<16x256xf32>
    %cst_59 = arith.constant 0.000000e+00 : f32
    %234 = vector.broadcast %cst_59 : f32 to vector<16x256xf32>
    %235 = arith.maximumf %233, %234 : vector<16x256xf32>
    %236 = vector.broadcast %221 : vector<1x256xf32> to vector<16x256xf32>
    %237 = arith.mulf %235, %236 : vector<16x256xf32>
    %238 = arith.truncf %228 : vector<16x256xf32> to vector<16x256xbf16>
    %cst_60 = arith.constant dense<0.000000e+00> : vector<64x256xf32>
    %239 = tpu.matmul %3, %238, %cst_60 {dimension_numbers = #tpu.dot_dimension_numbers<[1], [0], [0], [1], [0, 0, 1, 1], [], []>} : vector<64x16xbf16>, vector<16x256xbf16>, vector<64x256xf32> -> vector<64x256xf32>
    %240 = vector.extract_strided_slice %239 {offsets = [0, 0], sizes = [16, 256], strides = [1, 1]} : vector<64x256xf32> to vector<16x256xf32>
    %241 = arith.mulf %240, %237 : vector<16x256xf32>
    %242 = arith.truncf %241 : vector<16x256xf32> to vector<16x256xbf16>
    %c320 = arith.constant 320 : index
    %c0_61 = arith.constant 0 : index
    %243 = vector.load %arg7[%c320, %c0_61] : memref<576x256xbf16, #tpu.memory_space<vmem>>, vector<16x256xbf16>
    tpu.vector_store %arg7[%c320, %c0_61], %242 {strides = array<i32>} : memref<576x256xbf16, #tpu.memory_space<vmem>>, vector<16x256xbf16>,
    %244 = vector.extract_strided_slice %239 {offsets = [16, 0], sizes = [16, 256], strides = [1, 1]} : vector<64x256xf32> to vector<16x256xf32>
    %245 = arith.mulf %244, %237 : vector<16x256xf32>
    %246 = arith.truncf %245 : vector<16x256xf32> to vector<16x256xbf16>
    %c336 = arith.constant 336 : index
    %c0_62 = arith.constant 0 : index
    %247 = vector.load %arg7[%c336, %c0_62] : memref<576x256xbf16, #tpu.memory_space<vmem>>, vector<16x256xbf16>
    tpu.vector_store %arg7[%c336, %c0_62], %246 {strides = array<i32>} : memref<576x256xbf16, #tpu.memory_space<vmem>>, vector<16x256xbf16>,
    %248 = vector.extract_strided_slice %239 {offsets = [32, 0], sizes = [16, 256], strides = [1, 1]} : vector<64x256xf32> to vector<16x256xf32>
    %249 = arith.mulf %248, %237 : vector<16x256xf32>
    %250 = arith.truncf %249 : vector<16x256xf32> to vector<16x256xbf16>
    %c352 = arith.constant 352 : index
    %c0_63 = arith.constant 0 : index
    %251 = vector.load %arg7[%c352, %c0_63] : memref<576x256xbf16, #tpu.memory_space<vmem>>, vector<16x256xbf16>
    tpu.vector_store %arg7[%c352, %c0_63], %250 {strides = array<i32>} : memref<576x256xbf16, #tpu.memory_space<vmem>>, vector<16x256xbf16>,
    %252 = vector.extract_strided_slice %239 {offsets = [48, 0], sizes = [16, 256], strides = [1, 1]} : vector<64x256xf32> to vector<16x256xf32>
    %253 = arith.mulf %252, %237 : vector<16x256xf32>
    %254 = arith.truncf %253 : vector<16x256xf32> to vector<16x256xbf16>
    %c368 = arith.constant 368 : index
    %c0_64 = arith.constant 0 : index
    %255 = vector.load %arg7[%c368, %c0_64] : memref<576x256xbf16, #tpu.memory_space<vmem>>, vector<16x256xbf16>
    tpu.vector_store %arg7[%c368, %c0_64], %254 {strides = array<i32>} : memref<576x256xbf16, #tpu.memory_space<vmem>>, vector<16x256xbf16>,
    %256 = vector.extract_strided_slice %19 {offsets = [6, 0], sizes = [1, 256], strides = [1, 1]} : vector<9x256xf32> to vector<1x256xf32>
    %257 = vector.extract_strided_slice %22 {offsets = [6, 0], sizes = [1, 256], strides = [1, 1]} : vector<9x256xf32> to vector<1x256xf32>
    %258 = vector.extract_strided_slice %29 {offsets = [6, 0], sizes = [1, 256], strides = [1, 1]} : vector<9x256xf32> to vector<1x256xf32>
    %259 = vector.broadcast %256 : vector<1x256xf32> to vector<16x256xf32>
    %260 = arith.subf %31, %259 : vector<16x256xf32>
    %261 = math.absf %260 : vector<16x256xf32>
    %cst_65 = arith.constant 1.000000e+00 : f32
    %262 = vector.broadcast %cst_65 : f32 to vector<16x256xf32>
    %263 = arith.subf %262, %261 : vector<16x256xf32>
    %cst_66 = arith.constant 0.000000e+00 : f32
    %264 = vector.broadcast %cst_66 : f32 to vector<16x256xf32>
    %265 = arith.maximumf %263, %264 : vector<16x256xf32>
    %266 = vector.broadcast %257 : vector<1x256xf32> to vector<16x256xf32>
    %267 = arith.subf %33, %266 : vector<16x256xf32>
    %268 = math.absf %267 : vector<16x256xf32>
    %cst_67 = arith.constant 1.000000e+00 : f32
    %269 = vector.broadcast %cst_67 : f32 to vector<16x256xf32>
    %270 = arith.subf %269, %268 : vector<16x256xf32>
    %cst_68 = arith.constant 0.000000e+00 : f32
    %271 = vector.broadcast %cst_68 : f32 to vector<16x256xf32>
    %272 = arith.maximumf %270, %271 : vector<16x256xf32>
    %273 = vector.broadcast %258 : vector<1x256xf32> to vector<16x256xf32>
    %274 = arith.mulf %272, %273 : vector<16x256xf32>
    %275 = arith.truncf %265 : vector<16x256xf32> to vector<16x256xbf16>
    %cst_69 = arith.constant dense<0.000000e+00> : vector<64x256xf32>
    %276 = tpu.matmul %3, %275, %cst_69 {dimension_numbers = #tpu.dot_dimension_numbers<[1], [0], [0], [1], [0, 0, 1, 1], [], []>} : vector<64x16xbf16>, vector<16x256xbf16>, vector<64x256xf32> -> vector<64x256xf32>
    %277 = vector.extract_strided_slice %276 {offsets = [0, 0], sizes = [16, 256], strides = [1, 1]} : vector<64x256xf32> to vector<16x256xf32>
    %278 = arith.mulf %277, %274 : vector<16x256xf32>
    %279 = arith.truncf %278 : vector<16x256xf32> to vector<16x256xbf16>
    %c384 = arith.constant 384 : index
    %c0_70 = arith.constant 0 : index
    %280 = vector.load %arg7[%c384, %c0_70] : memref<576x256xbf16, #tpu.memory_space<vmem>>, vector<16x256xbf16>
    tpu.vector_store %arg7[%c384, %c0_70], %279 {strides = array<i32>} : memref<576x256xbf16, #tpu.memory_space<vmem>>, vector<16x256xbf16>,
    %281 = vector.extract_strided_slice %276 {offsets = [16, 0], sizes = [16, 256], strides = [1, 1]} : vector<64x256xf32> to vector<16x256xf32>
    %282 = arith.mulf %281, %274 : vector<16x256xf32>
    %283 = arith.truncf %282 : vector<16x256xf32> to vector<16x256xbf16>
    %c400 = arith.constant 400 : index
    %c0_71 = arith.constant 0 : index
    %284 = vector.load %arg7[%c400, %c0_71] : memref<576x256xbf16, #tpu.memory_space<vmem>>, vector<16x256xbf16>
    tpu.vector_store %arg7[%c400, %c0_71], %283 {strides = array<i32>} : memref<576x256xbf16, #tpu.memory_space<vmem>>, vector<16x256xbf16>,
    %285 = vector.extract_strided_slice %276 {offsets = [32, 0], sizes = [16, 256], strides = [1, 1]} : vector<64x256xf32> to vector<16x256xf32>
    %286 = arith.mulf %285, %274 : vector<16x256xf32>
    %287 = arith.truncf %286 : vector<16x256xf32> to vector<16x256xbf16>
    %c416 = arith.constant 416 : index
    %c0_72 = arith.constant 0 : index
    %288 = vector.load %arg7[%c416, %c0_72] : memref<576x256xbf16, #tpu.memory_space<vmem>>, vector<16x256xbf16>
    tpu.vector_store %arg7[%c416, %c0_72], %287 {strides = array<i32>} : memref<576x256xbf16, #tpu.memory_space<vmem>>, vector<16x256xbf16>,
    %289 = vector.extract_strided_slice %276 {offsets = [48, 0], sizes = [16, 256], strides = [1, 1]} : vector<64x256xf32> to vector<16x256xf32>
    %290 = arith.mulf %289, %274 : vector<16x256xf32>
    %291 = arith.truncf %290 : vector<16x256xf32> to vector<16x256xbf16>
    %c432 = arith.constant 432 : index
    %c0_73 = arith.constant 0 : index
    %292 = vector.load %arg7[%c432, %c0_73] : memref<576x256xbf16, #tpu.memory_space<vmem>>, vector<16x256xbf16>
    tpu.vector_store %arg7[%c432, %c0_73], %291 {strides = array<i32>} : memref<576x256xbf16, #tpu.memory_space<vmem>>, vector<16x256xbf16>,
    %293 = vector.extract_strided_slice %19 {offsets = [7, 0], sizes = [1, 256], strides = [1, 1]} : vector<9x256xf32> to vector<1x256xf32>
    %294 = vector.extract_strided_slice %22 {offsets = [7, 0], sizes = [1, 256], strides = [1, 1]} : vector<9x256xf32> to vector<1x256xf32>
    %295 = vector.extract_strided_slice %29 {offsets = [7, 0], sizes = [1, 256], strides = [1, 1]} : vector<9x256xf32> to vector<1x256xf32>
    %296 = vector.broadcast %293 : vector<1x256xf32> to vector<16x256xf32>
    %297 = arith.subf %31, %296 : vector<16x256xf32>
    %298 = math.absf %297 : vector<16x256xf32>
    %cst_74 = arith.constant 1.000000e+00 : f32
    %299 = vector.broadcast %cst_74 : f32 to vector<16x256xf32>
    %300 = arith.subf %299, %298 : vector<16x256xf32>
    %cst_75 = arith.constant 0.000000e+00 : f32
    %301 = vector.broadcast %cst_75 : f32 to vector<16x256xf32>
    %302 = arith.maximumf %300, %301 : vector<16x256xf32>
    %303 = vector.broadcast %294 : vector<1x256xf32> to vector<16x256xf32>
    %304 = arith.subf %33, %303 : vector<16x256xf32>
    %305 = math.absf %304 : vector<16x256xf32>
    %cst_76 = arith.constant 1.000000e+00 : f32
    %306 = vector.broadcast %cst_76 : f32 to vector<16x256xf32>
    %307 = arith.subf %306, %305 : vector<16x256xf32>
    %cst_77 = arith.constant 0.000000e+00 : f32
    %308 = vector.broadcast %cst_77 : f32 to vector<16x256xf32>
    %309 = arith.maximumf %307, %308 : vector<16x256xf32>
    %310 = vector.broadcast %295 : vector<1x256xf32> to vector<16x256xf32>
    %311 = arith.mulf %309, %310 : vector<16x256xf32>
    %312 = arith.truncf %302 : vector<16x256xf32> to vector<16x256xbf16>
    %cst_78 = arith.constant dense<0.000000e+00> : vector<64x256xf32>
    %313 = tpu.matmul %3, %312, %cst_78 {dimension_numbers = #tpu.dot_dimension_numbers<[1], [0], [0], [1], [0, 0, 1, 1], [], []>} : vector<64x16xbf16>, vector<16x256xbf16>, vector<64x256xf32> -> vector<64x256xf32>
    %314 = vector.extract_strided_slice %313 {offsets = [0, 0], sizes = [16, 256], strides = [1, 1]} : vector<64x256xf32> to vector<16x256xf32>
    %315 = arith.mulf %314, %311 : vector<16x256xf32>
    %316 = arith.truncf %315 : vector<16x256xf32> to vector<16x256xbf16>
    %c448 = arith.constant 448 : index
    %c0_79 = arith.constant 0 : index
    %317 = vector.load %arg7[%c448, %c0_79] : memref<576x256xbf16, #tpu.memory_space<vmem>>, vector<16x256xbf16>
    tpu.vector_store %arg7[%c448, %c0_79], %316 {strides = array<i32>} : memref<576x256xbf16, #tpu.memory_space<vmem>>, vector<16x256xbf16>,
    %318 = vector.extract_strided_slice %313 {offsets = [16, 0], sizes = [16, 256], strides = [1, 1]} : vector<64x256xf32> to vector<16x256xf32>
    %319 = arith.mulf %318, %311 : vector<16x256xf32>
    %320 = arith.truncf %319 : vector<16x256xf32> to vector<16x256xbf16>
    %c464 = arith.constant 464 : index
    %c0_80 = arith.constant 0 : index
    %321 = vector.load %arg7[%c464, %c0_80] : memref<576x256xbf16, #tpu.memory_space<vmem>>, vector<16x256xbf16>
    tpu.vector_store %arg7[%c464, %c0_80], %320 {strides = array<i32>} : memref<576x256xbf16, #tpu.memory_space<vmem>>, vector<16x256xbf16>,
    %322 = vector.extract_strided_slice %313 {offsets = [32, 0], sizes = [16, 256], strides = [1, 1]} : vector<64x256xf32> to vector<16x256xf32>
    %323 = arith.mulf %322, %311 : vector<16x256xf32>
    %324 = arith.truncf %323 : vector<16x256xf32> to vector<16x256xbf16>
    %c480 = arith.constant 480 : index
    %c0_81 = arith.constant 0 : index
    %325 = vector.load %arg7[%c480, %c0_81] : memref<576x256xbf16, #tpu.memory_space<vmem>>, vector<16x256xbf16>
    tpu.vector_store %arg7[%c480, %c0_81], %324 {strides = array<i32>} : memref<576x256xbf16, #tpu.memory_space<vmem>>, vector<16x256xbf16>,
    %326 = vector.extract_strided_slice %313 {offsets = [48, 0], sizes = [16, 256], strides = [1, 1]} : vector<64x256xf32> to vector<16x256xf32>
    %327 = arith.mulf %326, %311 : vector<16x256xf32>
    %328 = arith.truncf %327 : vector<16x256xf32> to vector<16x256xbf16>
    %c496 = arith.constant 496 : index
    %c0_82 = arith.constant 0 : index
    %329 = vector.load %arg7[%c496, %c0_82] : memref<576x256xbf16, #tpu.memory_space<vmem>>, vector<16x256xbf16>
    tpu.vector_store %arg7[%c496, %c0_82], %328 {strides = array<i32>} : memref<576x256xbf16, #tpu.memory_space<vmem>>, vector<16x256xbf16>,
    %330 = vector.extract_strided_slice %19 {offsets = [8, 0], sizes = [1, 256], strides = [1, 1]} : vector<9x256xf32> to vector<1x256xf32>
    %331 = vector.extract_strided_slice %22 {offsets = [8, 0], sizes = [1, 256], strides = [1, 1]} : vector<9x256xf32> to vector<1x256xf32>
    %332 = vector.extract_strided_slice %29 {offsets = [8, 0], sizes = [1, 256], strides = [1, 1]} : vector<9x256xf32> to vector<1x256xf32>
    %333 = vector.broadcast %330 : vector<1x256xf32> to vector<16x256xf32>
    %334 = arith.subf %31, %333 : vector<16x256xf32>
    %335 = math.absf %334 : vector<16x256xf32>
    %cst_83 = arith.constant 1.000000e+00 : f32
    %336 = vector.broadcast %cst_83 : f32 to vector<16x256xf32>
    %337 = arith.subf %336, %335 : vector<16x256xf32>
    %cst_84 = arith.constant 0.000000e+00 : f32
    %338 = vector.broadcast %cst_84 : f32 to vector<16x256xf32>
    %339 = arith.maximumf %337, %338 : vector<16x256xf32>
    %340 = vector.broadcast %331 : vector<1x256xf32> to vector<16x256xf32>
    %341 = arith.subf %33, %340 : vector<16x256xf32>
    %342 = math.absf %341 : vector<16x256xf32>
    %cst_85 = arith.constant 1.000000e+00 : f32
    %343 = vector.broadcast %cst_85 : f32 to vector<16x256xf32>
    %344 = arith.subf %343, %342 : vector<16x256xf32>
    %cst_86 = arith.constant 0.000000e+00 : f32
    %345 = vector.broadcast %cst_86 : f32 to vector<16x256xf32>
    %346 = arith.maximumf %344, %345 : vector<16x256xf32>
    %347 = vector.broadcast %332 : vector<1x256xf32> to vector<16x256xf32>
    %348 = arith.mulf %346, %347 : vector<16x256xf32>
    %349 = arith.truncf %339 : vector<16x256xf32> to vector<16x256xbf16>
    %cst_87 = arith.constant dense<0.000000e+00> : vector<64x256xf32>
    %350 = tpu.matmul %3, %349, %cst_87 {dimension_numbers = #tpu.dot_dimension_numbers<[1], [0], [0], [1], [0, 0, 1, 1], [], []>} : vector<64x16xbf16>, vector<16x256xbf16>, vector<64x256xf32> -> vector<64x256xf32>
    %351 = vector.extract_strided_slice %350 {offsets = [0, 0], sizes = [16, 256], strides = [1, 1]} : vector<64x256xf32> to vector<16x256xf32>
    %352 = arith.mulf %351, %348 : vector<16x256xf32>
    %353 = arith.truncf %352 : vector<16x256xf32> to vector<16x256xbf16>
    %c512 = arith.constant 512 : index
    %c0_88 = arith.constant 0 : index
    %354 = vector.load %arg7[%c512, %c0_88] : memref<576x256xbf16, #tpu.memory_space<vmem>>, vector<16x256xbf16>
    tpu.vector_store %arg7[%c512, %c0_88], %353 {strides = array<i32>} : memref<576x256xbf16, #tpu.memory_space<vmem>>, vector<16x256xbf16>,
    %355 = vector.extract_strided_slice %350 {offsets = [16, 0], sizes = [16, 256], strides = [1, 1]} : vector<64x256xf32> to vector<16x256xf32>
    %356 = arith.mulf %355, %348 : vector<16x256xf32>
    %357 = arith.truncf %356 : vector<16x256xf32> to vector<16x256xbf16>
    %c528 = arith.constant 528 : index
    %c0_89 = arith.constant 0 : index
    %358 = vector.load %arg7[%c528, %c0_89] : memref<576x256xbf16, #tpu.memory_space<vmem>>, vector<16x256xbf16>
    tpu.vector_store %arg7[%c528, %c0_89], %357 {strides = array<i32>} : memref<576x256xbf16, #tpu.memory_space<vmem>>, vector<16x256xbf16>,
    %359 = vector.extract_strided_slice %350 {offsets = [32, 0], sizes = [16, 256], strides = [1, 1]} : vector<64x256xf32> to vector<16x256xf32>
    %360 = arith.mulf %359, %348 : vector<16x256xf32>
    %361 = arith.truncf %360 : vector<16x256xf32> to vector<16x256xbf16>
    %c544 = arith.constant 544 : index
    %c0_90 = arith.constant 0 : index
    %362 = vector.load %arg7[%c544, %c0_90] : memref<576x256xbf16, #tpu.memory_space<vmem>>, vector<16x256xbf16>
    tpu.vector_store %arg7[%c544, %c0_90], %361 {strides = array<i32>} : memref<576x256xbf16, #tpu.memory_space<vmem>>, vector<16x256xbf16>,
    %363 = vector.extract_strided_slice %350 {offsets = [48, 0], sizes = [16, 256], strides = [1, 1]} : vector<64x256xf32> to vector<16x256xf32>
    %364 = arith.mulf %363, %348 : vector<16x256xf32>
    %365 = arith.truncf %364 : vector<16x256xf32> to vector<16x256xbf16>
    %c560 = arith.constant 560 : index
    %c0_91 = arith.constant 0 : index
    %366 = vector.load %arg7[%c560, %c0_91] : memref<576x256xbf16, #tpu.memory_space<vmem>>, vector<16x256xbf16>
    tpu.vector_store %arg7[%c560, %c0_91], %365 {strides = array<i32>} : memref<576x256xbf16, #tpu.memory_space<vmem>>, vector<16x256xbf16>,
    %c0_92 = arith.constant 0 : index
    %c0_93 = arith.constant 0 : index
    %367 = vector.load %arg4[%c0_92, %c0_93] : memref<8x576xbf16, #tpu.memory_space<vmem>>, vector<8x576xbf16>
    %c0_94 = arith.constant 0 : index
    %c0_95 = arith.constant 0 : index
    %368 = vector.load %arg7[%c0_94, %c0_95] : memref<576x256xbf16, #tpu.memory_space<vmem>>, vector<576x256xbf16>
    %cst_96 = arith.constant dense<0.000000e+00> : vector<8x256xf32>
    %369 = tpu.matmul %367, %368, %cst_96 {dimension_numbers = #tpu.dot_dimension_numbers<[1], [0], [0], [1], [0, 0, 1, 1], [], []>} : vector<8x576xbf16>, vector<576x256xbf16>, vector<8x256xf32> -> vector<8x256xf32>
    %c0_97 = arith.constant 0 : index
    %c0_98 = arith.constant 0 : index
    %370 = vector.load %arg5[%c0_97, %c0_98] : memref<8x2xf32, #tpu.memory_space<vmem>>, vector<8x2xf32>
    %371 = vector.extract_strided_slice %370 {offsets = [0, 0], sizes = [8, 1], strides = [1, 1]} : vector<8x2xf32> to vector<8x1xf32>
    %372 = vector.broadcast %371 : vector<8x1xf32> to vector<8x256xf32>
    %373 = arith.mulf %369, %372 : vector<8x256xf32>
    %374 = vector.extract_strided_slice %370 {offsets = [0, 1], sizes = [8, 1], strides = [1, 1]} : vector<8x2xf32> to vector<8x1xf32>
    %375 = vector.broadcast %374 : vector<8x1xf32> to vector<8x256xf32>
    %376 = arith.addf %373, %375 : vector<8x256xf32>
    %cst_99 = arith.constant 0.000000e+00 : f32
    %377 = vector.broadcast %cst_99 : f32 to vector<8x256xf32>
    %378 = arith.subf %377, %376 : vector<8x256xf32>
    %379 = math.exp %378 : vector<8x256xf32>
    %cst_100 = arith.constant 1.000000e+00 : f32
    %380 = vector.broadcast %cst_100 : f32 to vector<8x256xf32>
    %381 = arith.addf %380, %379 : vector<8x256xf32>
    %382 = tpu.reciprocal %381 {approx = true} : vector<8x256xf32> -> vector<8x256xf32>
    %383 = arith.mulf %376, %382 : vector<8x256xf32>
    %c0_101 = arith.constant 0 : index
    %c0_102 = arith.constant 0 : index
    %c0_103 = arith.constant 0 : index
    %384 = vector.load %arg6[%c0_101, %c0_102, %c0_103] : memref<1x8x256xf32, #tpu.memory_space<vmem>>, vector<1x8x256xf32>
    %385 = vector.shape_cast %384 : vector<1x8x256xf32> to vector<8x256xf32>
    %386 = vector.shape_cast %383 : vector<8x256xf32> to vector<1x8x256xf32>
    tpu.vector_store %arg6[%c0_101, %c0_102, %c0_103], %386 {strides = array<i32>} : memref<1x8x256xf32, #tpu.memory_space<vmem>>, vector<1x8x256xf32>,
    return
  }
  func.func @transform_0(%arg0: i32) -> (i32, i32, i32) {
    %c0_i32 = arith.constant 0 : i32
    %c0_i32_0 = arith.constant 0 : i32
    %c0_i32_1 = arith.constant 0 : i32
    return %arg0, %c0_i32, %c0_i32_0 : i32, i32, i32
  }
  func.func @transform_1(%arg0: i32) -> (i32, i32, i32) {
    %c0_i32 = arith.constant 0 : i32
    %c0_i32_0 = arith.constant 0 : i32
    %c0_i32_1 = arith.constant 0 : i32
    return %arg0, %c0_i32, %c0_i32_0 : i32, i32, i32
  }
  func.func @transform_2(%arg0: i32) -> (i32, i32) {
    %c0_i32 = arith.constant 0 : i32
    %c0_i32_0 = arith.constant 0 : i32
    %c0_i32_1 = arith.constant 0 : i32
    return %c0_i32, %c0_i32_0 : i32, i32
  }
  func.func @transform_3(%arg0: i32) -> (i32, i32) {
    %c0_i32 = arith.constant 0 : i32
    %c0_i32_0 = arith.constant 0 : i32
    %c0_i32_1 = arith.constant 0 : i32
    return %c0_i32, %c0_i32_0 : i32, i32
  }
  func.func @transform_4(%arg0: i32) -> (i32, i32) {
    %c0_i32 = arith.constant 0 : i32
    %c0_i32_0 = arith.constant 0 : i32
    %c0_i32_1 = arith.constant 0 : i32
    return %c0_i32, %c0_i32_0 : i32, i32
  }
  func.func @transform_5(%arg0: i32) -> (i32, i32, i32) {
    %c0_i32 = arith.constant 0 : i32
    %c0_i32_0 = arith.constant 0 : i32
    %c0_i32_1 = arith.constant 0 : i32
    return %arg0, %c0_i32, %c0_i32_0 : i32, i32, i32
  }
}

</mosaic_0001>

<llo_original>
// kernel: dcnv2_forward.1
$region0: #{dcnv2_forward.1}
  #allocation0 [shape = 'u32[]', space=smem, size = 0x4, offset = 0x4, fixed_abs, tag = 'smem constant byte address 0x4 - core index']
  #allocation1 [shape = 'u32[144,128]{1,0:T(1,128)}', space=vmem, size = 0x12000, scoped, tag = 'internal scratch']
  #allocation2 [shape = 'bf16[576,256]{1,0:T(16,128)(2,1)}', space=vmem, size = 0x48000, scoped, tag = 'scratch operand']
  %s0 = inlined_call_operand.vmem [shape: f32[2,37,256], index: 0, kind: input, shape index: {}]
  %s1 = inlined_call_operand.vmem [shape: bf16[2,64,16], index: 1, kind: input, shape index: {}]
  %s2 = inlined_call_operand.vmem [shape: f32[27,37], index: 2, kind: input, shape index: {}]
  %s3 = inlined_call_operand.vmem [shape: bf16[8,576], index: 3, kind: input, shape index: {}]
  %s4 = inlined_call_operand.vmem [shape: f32[8,2], index: 4, kind: input, shape index: {}]
  %s5 = inlined_call_operand.vmem [shape: f32[2,8,256], index: 5, kind: output, shape index: {}]
  %s6 = sld [smem:[#allocation0]]
  $region53: #{dcnv2_forward.1} parent=0
    _
  %s8 = ssub.s32 1, %s6
  %s9 = scalar_select 0, %s8, %s6
  loop: start=0, step=1, limit=4
  $region2: #{dcnv2_forward.1} parent=0 // loop_pre_header
    _
  $region3: #{dcnv2_forward.1} parent=0 // loop_header
    %s11 = sphi 0, %s15
    %p12 = scmp.ge.s32.totalorder %s11, 4
    %s21 = sphi 0, %s23
    %s24 = sphi 0, %s21
    %s25 = sphi 0, %s24
    %s41 = sphi 0, %s25
    %s47 = sphi 0, %s49
    %s50 = sphi 0, %s47
    %s51 = sphi 0, %s50
    %s67 = sphi 0, %s51
    %s71 = sphi 0, %s71
    %s73 = sphi 0, %s71
    %s74 = sphi 0, %s73
    %s88 = sphi 0, %s74
    %s92 = sphi 0, %s92
    %s94 = sphi 0, %s92
    %s95 = sphi 0, %s94
    %s109 = sphi 0, %s95
    %s113 = sphi 0, %s113
    %s115 = sphi 0, %s113
    %s116 = sphi 0, %s115
    %s130 = sphi 0, %s116
    %s136 = sphi 0, %s138
    %s139 = sphi 0, %s136
    %s140 = sphi 0, %s139
    %s156 = sphi 0, %s140
  $region4: #{dcnv2_forward.1} parent=0 // loop_header_branch
    %14 = sbr.rel (%p12) target = $region8
  $region5: #{dcnv2_forward.1} parent=0 // loop_body
    %s16 = ssub.s32 %s11, 1
    %s17 = ssub.s32 %s11, 2
    %s18 = sadd.s32 %s11, 1
    %s19 = ssub.s32 %s11, %s18
    %p20 = scmp.eq.s32.totalorder %s19, 0
    %s22 = sadd.s32 %s21, 1
    %s23 = scalar_select %p20, %s21, %s22
    %p26 = pneg %p20
    %p27 = scmp.eq.s32.totalorder %s11, 1
    %p28 = por %p26, %p27
    %p29 = scmp.ne.s32.totalorder %s21, %s24
    %p30 = scmp.eq.s32.totalorder %s11, 0
    %p31 = por %p29, %p30
    %p32 = scmp.ne.s32.totalorder %s21, %s24
    %p33 = scmp.eq.s32.totalorder %s16, 1
    %p34 = por %p32, %p33
    %p35 = scmp.ne.s32.totalorder %s24, %s25
    %p36 = scmp.eq.s32.totalorder %s16, 0
    %p37 = por %p35, %p36
    %p38 = scmp.ne.s32.totalorder %s24, %s25
    %p39 = scmp.eq.s32.totalorder %s17, 1
    %p40 = por %p38, %p39
    %p42 = scmp.ne.s32.totalorder %s25, %s41
    %p43 = scmp.eq.s32.totalorder %s17, 0
    %p44 = por %p42, %p43
    %s45 = ssub.s32 %s11, %s18
    %p46 = scmp.eq.s32.totalorder %s45, 0
    %s48 = sadd.s32 %s47, 1
    %s49 = scalar_select %p46, %s47, %s48
    %p52 = pneg %p46
    %p53 = scmp.eq.s32.totalorder %s11, 1
    %p54 = por %p52, %p53
    %p55 = scmp.ne.s32.totalorder %s47, %s50
    %p56 = scmp.eq.s32.totalorder %s11, 0
    %p57 = por %p55, %p56
    %p58 = scmp.ne.s32.totalorder %s47, %s50
    %p59 = scmp.eq.s32.totalorder %s16, 1
    %p60 = por %p58, %p59
    %p61 = scmp.ne.s32.totalorder %s50, %s51
    %p62 = scmp.eq.s32.totalorder %s16, 0
    %p63 = por %p61, %p62
    %p64 = scmp.ne.s32.totalorder %s50, %s51
    %p65 = scmp.eq.s32.totalorder %s17, 1
    %p66 = por %p64, %p65
    %p68 = scmp.ne.s32.totalorder %s51, %s67
    %p69 = scmp.eq.s32.totalorder %s17, 0
    %p70 = por %p68, %p69
    %s72 = sadd.s32 %s71, 1
    %p75 = scmp.eq.s32.totalorder %s11, 1
    %p76 = scmp.ne.s32.totalorder %s71, %s73
    %p77 = scmp.eq.s32.totalorder %s11, 0
    %p78 = por %p76, %p77
    %p79 = scmp.ne.s32.totalorder %s71, %s73
    %p80 = scmp.eq.s32.totalorder %s16, 1
    %p81 = por %p79, %p80
    %p82 = scmp.ne.s32.totalorder %s73, %s74
    %p83 = scmp.eq.s32.totalorder %s16, 0
    %p84 = por %p82, %p83
    %p85 = scmp.ne.s32.totalorder %s73, %s74
    %p86 = scmp.eq.s32.totalorder %s17, 1
    %p87 = por %p85, %p86
    %p89 = scmp.ne.s32.totalorder %s74, %s88
    %p90 = scmp.eq.s32.totalorder %s17, 0
    %p91 = por %p89, %p90
    %s93 = sadd.s32 %s92, 1
    %p96 = scmp.eq.s32.totalorder %s11, 1
    %p97 = scmp.ne.s32.totalorder %s92, %s94
    %p98 = scmp.eq.s32.totalorder %s11, 0
    %p99 = por %p97, %p98
    %p100 = scmp.ne.s32.totalorder %s92, %s94
    %p101 = scmp.eq.s32.totalorder %s16, 1
    %p102 = por %p100, %p101
    %p103 = scmp.ne.s32.totalorder %s94, %s95
    %p104 = scmp.eq.s32.totalorder %s16, 0
    %p105 = por %p103, %p104
    %p106 = scmp.ne.s32.totalorder %s94, %s95
    %p107 = scmp.eq.s32.totalorder %s17, 1
    %p108 = por %p106, %p107
    %p110 = scmp.ne.s32.totalorder %s95, %s109
    %p111 = scmp.eq.s32.totalorder %s17, 0
    %p112 = por %p110, %p111
    %s114 = sadd.s32 %s113, 1
    %p117 = scmp.eq.s32.totalorder %s11, 1
    %p118 = scmp.ne.s32.totalorder %s113, %s115
    %p119 = scmp.eq.s32.totalorder %s11, 0
    %p120 = por %p118, %p119
    %p121 = scmp.ne.s32.totalorder %s113, %s115
    %p122 = scmp.eq.s32.totalorder %s16, 1
    %p123 = por %p121, %p122
    %p124 = scmp.ne.s32.totalorder %s115, %s116
    %p125 = scmp.eq.s32.totalorder %s16, 0
    %p126 = por %p124, %p125
    %p127 = scmp.ne.s32.totalorder %s115, %s116
    %p128 = scmp.eq.s32.totalorder %s17, 1
    %p129 = por %p127, %p128
    %p131 = scmp.ne.s32.totalorder %s116, %s130
    %p132 = scmp.eq.s32.totalorder %s17, 0
    %p133 = por %p131, %p132
    %s134 = ssub.s32 %s11, %s18
    %p135 = scmp.eq.s32.totalorder %s134, 0
    %s137 = sadd.s32 %s136, 1
    %s138 = scalar_select %p135, %s136, %s137
    %p141 = pneg %p135
    %p142 = scmp.eq.s32.totalorder %s11, 1
    %p143 = por %p141, %p142
    %p144 = scmp.ne.s32.totalorder %s136, %s139
    %p145 = scmp.eq.s32.totalorder %s11, 0
    %p146 = por %p144, %p145
    %p147 = scmp.ne.s32.totalorder %s136, %s139
    %p148 = scmp.eq.s32.totalorder %s16, 1
    %p149 = por %p147, %p148
    %p150 = scmp.ne.s32.totalorder %s139, %s140
    %p151 = scmp.eq.s32.totalorder %s16, 0
    %p152 = por %p150, %p151
    %p153 = scmp.ne.s32.totalorder %s139, %s140
    %p154 = scmp.eq.s32.totalorder %s17, 1
    %p155 = por %p153, %p154
    %p157 = scmp.ne.s32.totalorder %s140, %s156
    %p158 = scmp.eq.s32.totalorder %s17, 0
    %p159 = por %p157, %p158
    %p160 = scmp.le.s32.totalorder 1, %s11
    %p161 = scmp.lt.s32.totalorder %s11, 3
    %p162 = pnand %p160, %p161
    %p163 = pneg %p162
    // Predicated region
    $region9: #{dcnv2_forward.1} parent=5 // pred_check
      _
    $region10: #{dcnv2_forward.1} parent=5 // pred_check_branch
      %165 = sbr.rel (%p162) target = $region12
    $region11: #{dcnv2_forward.1} parent=5 // pred_region
      %s166 = ssub.s32 %s11, 1
      // Predicated region
      $region13: #{dcnv2_forward.1} parent=11 // pred_check
        %p167 = pneg %p84
      $region14: #{dcnv2_forward.1} parent=11 // pred_check_branch
        %169 = sbr.rel (%p167) target = $region16
      $region15: #{dcnv2_forward.1} parent=11 // pred_region
        _
      $region16: #{dcnv2_forward.1} parent=11 // pred_fallthru
        _
      // Predicated region
      $region17: #{dcnv2_forward.1} parent=11 // pred_check
        %p170 = pneg %p105
      $region18: #{dcnv2_forward.1} parent=11 // pred_check_branch
        %172 = sbr.rel (%p170) target = $region20
      $region19: #{dcnv2_forward.1} parent=11 // pred_region
        _
      $region20: #{dcnv2_forward.1} parent=11 // pred_fallthru
        _
      // Predicated region
      $region21: #{dcnv2_forward.1} parent=11 // pred_check
        %p173 = pneg %p126
      $region22: #{dcnv2_forward.1} parent=11 // pred_check_branch
        %175 = sbr.rel (%p173) target = $region24
      $region23: #{dcnv2_forward.1} parent=11 // pred_region
        _
      $region24: #{dcnv2_forward.1} parent=11 // pred_fallthru
        _
    $region12: #{dcnv2_forward.1} parent=5 // pred_fallthru
      _
    %p176 = scmp.lt.s32.totalorder %s11, 2
    // Predicated region
    $region25: #{dcnv2_forward.1} parent=5 // pred_check
      %p177 = pneg %p176
    $region26: #{dcnv2_forward.1} parent=5 // pred_check_branch
      %179 = sbr.rel (%p177) target = $region28
    $region27: #{dcnv2_forward.1} parent=5 // pred_region
      // Predicated region
      $region29: #{dcnv2_forward.1} parent=27 // pred_check
        %p180 = pneg %p31
      $region30: #{dcnv2_forward.1} parent=27 // pred_check_branch
        %182 = sbr.rel (%p180) target = $region32
      $region31: #{dcnv2_forward.1} parent=27 // pred_region
        %p183 = scmp.lt.s32.totalorder %s11, 1
        %s184 = scalar_select %p183, %s11, 1
        %s185 = smul.addr %s184, 10
        %s186 = smul.addr %s185, 8
        %s187 = scalar_lea.vmem %s0, %s186
      $region32: #{dcnv2_forward.1} parent=27 // pred_fallthru
        _
      // Predicated region
      $region33: #{dcnv2_forward.1} parent=27 // pred_check
        %p188 = pneg %p57
      $region34: #{dcnv2_forward.1} parent=27 // pred_check_branch
        %190 = sbr.rel (%p188) target = $region36
      $region35: #{dcnv2_forward.1} parent=27 // pred_region
        %p191 = scmp.lt.s32.totalorder %s11, 1
        %s192 = scalar_select %p191, %s11, 1
        %s193 = smul.addr %s192, 8
        %s194 = smul.addr %s193, 4
        %s195 = scalar_lea.vmem %s1, %s194
      $region36: #{dcnv2_forward.1} parent=27 // pred_fallthru
        _
    $region28: #{dcnv2_forward.1} parent=5 // pred_fallthru
      _
    %p196 = scmp.le.s32.totalorder 1, %s11
    %p197 = scmp.lt.s32.totalorder %s11, 3
    %p198 = pnand %p196, %p197
    %p199 = pneg %p198
    // Predicated region
    $region37: #{dcnv2_forward.1} parent=5 // pred_check
      _
    $region38: #{dcnv2_forward.1} parent=5 // pred_check_branch
      %201 = sbr.rel (%p198) target = $region40
    $region39: #{dcnv2_forward.1} parent=5 // pred_region
      %s202 = ssub.s32 %s11, 1
      %p203 = scmp.lt.s32.totalorder %s16, 1
      %s204 = scalar_select %p203, %s16, 1
      %s205 = smul.addr %s204, 10
      %s206 = smul.addr %s205, 8
      %s207 = scalar_lea.vmem %s0, %s206
      %p208 = pneg %p37
      %p209 = pneg %p34
      %p210 = scmp.lt.s32.totalorder %s16, 1
      %s211 = scalar_select %p210, %s16, 1
      %s212 = smul.addr %s211, 8
      %s213 = smul.addr %s212, 4
      %s214 = scalar_lea.vmem %s1, %s213
      %p215 = pneg %p63
      %p216 = pneg %p60
      %p217 = pneg %p84
      %p218 = pneg %p81
      %p219 = pneg %p105
      %p220 = pneg %p102
      %p221 = pneg %p126
      %p222 = pneg %p123
      %p223 = pneg %p152
      %p224 = pneg %p149
      %p225 = scmp.lt.s32.totalorder %s16, 1
      %s226 = scalar_select %p225, %s16, 1
      %s227 = smul.addr %s226, 2
      %s228 = smul.addr %s227, 8
      %s229 = scalar_lea.vmem %s5, %s228
      %p230 = scmp.lt.s32.totalorder %s16, 1
      %s231 = scalar_select %p230, %s16, 1
      %s232 = smul.addr %s231, 10
      %s233 = smul.addr %s232, 8
      %s234 = scalar_lea.vmem %s0, %s233
      %p235 = scmp.lt.s32.totalorder %s16, 1
      %s236 = scalar_select %p235, %s16, 1
      %s237 = smul.addr %s236, 8
      %s238 = smul.addr %s237, 4
      %s239 = scalar_lea.vmem %s1, %s238
      %p240 = scmp.lt.s32.totalorder %s16, 1
      %s241 = scalar_select %p240, %s16, 1
      %s242 = smul.addr %s241, 2
      %s243 = smul.addr %s242, 8
      %s244 = scalar_lea.vmem %s5, %s243
      %v246 = vld [vmem:[%s234] sm:$0xff]
      %v247 = vld [vmem:[%s234 + $0x8] sm:$0xff]
      %v248 = vld [vmem:[%s234 + $0x10] sm:$0xff]
      %v249 = vld [vmem:[%s234 + $0x18] sm:$0xff]
      %v250 = vld [vmem:[%s234 + $0x20] sm:$0xff]
      %v251 = vld [vmem:[%s234 + $0x28] sm:$0xff]
      %v252 = vld [vmem:[%s234 + $0x30] sm:$0xff]
      %v253 = vld [vmem:[%s234 + $0x38] sm:$0xff]
      %v254 = vld [vmem:[%s234 + $0x40] sm:$0x1f]
      %v255 = vld [vmem:[%s234 + $0x48] sm:$0x1f]
      %v256 = vld [vmem:[%s239] sm:$0xf]
      %v257 = vld [vmem:[%s239 + $0x4] sm:$0xf]
      %v258 = vld [vmem:[%s239 + $0x8] sm:$0xf]
      %v259 = vld [vmem:[%s239 + $0xc] sm:$0xf]
      %v260 = vld [vmem:[%s239 + $0x10] sm:$0xf]
      %v261 = vld [vmem:[%s239 + $0x14] sm:$0xf]
      %v262 = vld [vmem:[%s239 + $0x18] sm:$0xf]
      %v263 = vld [vmem:[%s239 + $0x1c] sm:$0xf]
      %v264 = vld [vmem:[%s2] sm:$0xff]
      %v265 = vld [vmem:[%s2 + $0x8] sm:$0xff]
      %v266 = vld [vmem:[%s2 + $0x10] sm:$0xff]
      %v267 = vld [vmem:[%s2 + $0x18] sm:$0x7]
      %vm268 = vcmask 302080
      %v270 = vsel %vm268, %v264, 0
      %v273 = vsel %vm268, %v265, 0
      %v276 = vsel %vm268, %v266, 0
      %v279 = vsel %vm268, %v267, 0
      %vm281 = vcmask 1044480
      %v283 = vsel %vm281, %v254, 0
      %v286 = vsel %vm281, %v255, 0
      %288 = vmatprep.subr.mxu0 %v247
      %289 = vmatpush1.msra.mxu0 %v246
      %290 = vmatprep.subr.mxu0 %v249
      %291 = vmatpush1.msra.mxu0 %v248
      %292 = vmatprep.subr.mxu0 %v251
      %293 = vmatpush1.msra.mxu0 %v250
      %294 = vmatprep.subr.mxu0 %v253
      %295 = vmatpush1.msra.mxu0 %v252
      %296 = vmatprep.subr.mxu0 %v286
      %297 = vmatpush1.msra.mxu0 %v283
      %298 = vmatprep.subr.mxu0 0.0
      %299 = vmatpush1.msra.mxu0 0.0
      %300 = vmatprep.subr.mxu0 0.0
      %301 = vmatpush1.msra.mxu0 0.0
      %302 = vmatprep.subr.mxu0 0.0
      %303 = vmatpush1.msra.mxu0 0.0
      %304 = vmatprep.subr.mxu0 0.0
      %305 = vmatpush1.msra.mxu0 0.0
      %306 = vmatprep.subr.mxu0 0.0
      %307 = vmatpush1.msra.mxu0 0.0
      %308 = vmatprep.subr.mxu0 0.0
      %309 = vmatpush1.msra.mxu0 0.0
      %310 = vmatprep.subr.mxu0 0.0
      %311 = vmatpush1.msra.mxu0 0.0
      %312 = vmatprep.subr.mxu0 0.0
      %313 = vmatpush1.msra.mxu0 0.0
      %314 = vmatprep.subr.mxu0 0.0
      %315 = vmatpush1.msra.mxu0 0.0
      %316 = vmatprep.subr.mxu0 0.0
      %317 = vmatpush1.msra.mxu0 0.0
      %318 = vmatprep.subr.mxu0 0.0
      %319 = vmatpush1.msra.mxu0 0.0
      %320 = vmatprep.subr.mxu0 0.0
      %321 = vmatpush1.msra.mxu0 0.0
      %322 = vmatprep.subr.mxu0 0.0
      %323 = vmatpush1.msra.mxu0 0.0
      %324 = vmatprep.subr.mxu0 0.0
      %325 = vmatpush1.msra.mxu0 0.0
      %326 = vmatprep.subr.mxu0 0.0
      %327 = vmatpush1.msra.mxu0 0.0
      %328 = vmatprep.subr.mxu0 0.0
      %329 = vmatpush1.msra.mxu0 0.0
      %330 = vmatprep.subr.mxu0 0.0
      %331 = vmatpush1.msra.mxu0 0.0
      %332 = vmatprep.subr.mxu0 0.0
      %333 = vmatpush1.msra.mxu0 0.0
      %334 = vmatprep.subr.mxu0 0.0
      %335 = vmatpush1.msra.mxu0 0.0
      %336 = vmatprep.subr.mxu0 0.0
      %337 = vmatpush1.msra.mxu0 0.0
      %338 = vmatprep.subr.mxu0 0.0
      %339 = vmatpush1.msra.mxu0 0.0
      %340 = vmatprep.subr.mxu0 0.0
      %341 = vmatpush1.msra.mxu0 0.0
      %342 = vmatprep.subr.mxu0 0.0
      %343 = vmatpush1.msra.mxu0 0.0
      %344 = vmatprep.subr.mxu0 0.0
      %345 = vmatpush1.msra.mxu0 0.0
      %346 = vmatprep.subr.mxu0 0.0
      %347 = vmatpush1.msra.mxu0 0.0
      %348 = vmatprep.subr.mxu0 0.0
      %349 = vmatpush1.msra.mxu0 0.0
      %350 = vmatprep.subr.mxu0 0.0
      %351 = vmatpush1.msra.mxu0 0.0
      %352 = vmatprep.mubr.f32.mxu0 0.0
      %353 = vmatmul.mubr.f32.gmra.mrb[0].mxu0 %v270
      %v354 = vpop.f32.mrb[0].mxu0
      %v355 = vadd.f32 0.0, %v354
      %v356 = vpop.f32.mrb[0].mxu0
      %v357 = vadd.f32 0.0, %v356
      %358 = vmatprep.mubr.f32.mxu0 0.0
      %359 = vmatmul.mubr.f32.gmra.mrb[0].mxu0 %v273
      %v360 = vpop.f32.mrb[0].mxu0
      %v361 = vadd.f32 0.0, %v360
      %v362 = vpop.f32.mrb[0].mxu0
      %v363 = vadd.f32 0.0, %v362
      %364 = vmatprep.mubr.f32.mxu0 0.0
      %365 = vmatmul.mubr.f32.gmra.mrb[0].mxu0 %v276
      %v366 = vpop.f32.mrb[0].mxu0
      %v367 = vadd.f32 0.0, %v366
      %v368 = vpop.f32.mrb[0].mxu0
      %v369 = vadd.f32 0.0, %v368
      %370 = vmatprep.mubr.f32.mxu0 0.0
      %371 = vmatmul.mubr.f32.gmra.mrb[0].mxu0 %v279
      %v372 = vpop.f32.mrb[0].mxu0
      %v373 = vadd.f32 0.0, %v372
      %v374 = vpop.f32.mrb[0].mxu0
      %v375 = vadd.f32 0.0, %v374
      %376 = vdwg.mxu0
      %v377 = vlaneseq
      %v378 = vand.u32 %v377, 127
      %v379 = vadd.s32 %v378, 128
      %v380 = vshra.s32 %v378, 4
      %v381 = vshra.s32 %v379, 4
      %v382 = vand.u32 %v378, 15
      %v383 = vand.u32 %v379, 15
      %v384 = vcvt.s32.f32 %v380
      %v385 = vcvt.s32.f32 %v381
      %v386 = vcvt.s32.f32 %v382
      %v387 = vcvt.s32.f32 %v383
      %v388 = vadd.f32 %v384, %v355
      %v389 = vadd.f32 %v385, %v357
      %v390 = vadd.f32 %v384, %v361
      %v391 = vadd.f32 %v385, %v363
      %v392 = vadd.f32 %v386, %v361
      %v393 = vadd.f32 %v387, %v363
      %v394 = vadd.f32 %v386, %v367
      %v395 = vadd.f32 %v387, %v369
      %v396 = vsub.f32 0.0, %v367
      %v397 = vsub.f32 0.0, %v369
      %v398 = vsub.f32 0.0, %v373
      %v399 = vsub.f32 0.0, %v375
      %v400 = vmul.f32 %v396, 1.442695
      %v401 = vpow.pop %v400
      %v402 = vmul.f32 %v397, 1.442695
      %v403 = vpow.pop %v402
      %v404 = vmul.f32 %v398, 1.442695
      %v405 = vpow.pop %v404
      %v406 = vmul.f32 %v399, 1.442695
      %v407 = vpow.pop %v406
      %v408 = vadd.f32 %v401, 1.0
      %v409 = vadd.f32 %v403, 1.0
      %v410 = vadd.f32 %v405, 1.0
      %v411 = vadd.f32 %v407, 1.0
      %v412 = vrcp.pop %v408
      %v413 = vrcp.pop %v409
      %v414 = vrcp.pop %v410
      %v415 = vrcp.pop %v411
      %v416 = vlaneseq
      %v417 = vshrl.u32 %v416, 7
      %v418 = vadd.s32 %v417, 8
      %v419 = vcvt.s32.f32 %v417
      %v420 = vcvt.s32.f32 %v418
      %v421 = vlaneseq
      %v422 = vshrl.u32 %v421, 7
      %v423 = vsub.s32 0, %v422
      %v424 = vrot.slane %v388, %v423
      %v425 = vlaneseq
      %v426 = vshrl.u32 %v425, 7
      %v427 = vsub.s32 0, %v426
      %v428 = vrot.slane %v389, %v427
      %v429 = vsub.f32 %v419, %v424
      %v430 = vsub.f32 %v419, %v428
      %v431 = vsub.f32 %v420, %v424
      %v432 = vsub.f32 %v420, %v428
      %v433 = vand.u32 2147483647, %v429
      %v434 = vand.u32 2147483647, %v430
      %v435 = vand.u32 2147483647, %v431
      %v436 = vand.u32 2147483647, %v432
      %v437 = vsub.f32 1.0, %v433
      %v438 = vsub.f32 1.0, %v434
      %v439 = vsub.f32 1.0, %v435
      %v440 = vsub.f32 1.0, %v436
      %v441 = vmax.f32 %v437, 0.0
      %v442 = vmax.f32 %v438, 0.0
      %v443 = vmax.f32 %v439, 0.0
      %v444 = vmax.f32 %v440, 0.0
      %v445 = vlaneseq
      %v446 = vshrl.u32 %v445, 7
      %v447 = vsub.s32 1, %v446
      %v448 = vrot.slane %v392, %v447
      %v449 = vlaneseq
      %v450 = vshrl.u32 %v449, 7
      %v451 = vsub.s32 1, %v450
      %v452 = vrot.slane %v393, %v451
      %v453 = vsub.f32 %v419, %v448
      %v454 = vsub.f32 %v419, %v452
      %v455 = vsub.f32 %v420, %v448
      %v456 = vsub.f32 %v420, %v452
      %v457 = vand.u32 2147483647, %v453
      %v458 = vand.u32 2147483647, %v454
      %v459 = vand.u32 2147483647, %v455
      %v460 = vand.u32 2147483647, %v456
      %v461 = vsub.f32 1.0, %v457
      %v462 = vsub.f32 1.0, %v458
      %v463 = vsub.f32 1.0, %v459
      %v464 = vsub.f32 1.0, %v460
      %v465 = vmax.f32 %v461, 0.0
      %v466 = vmax.f32 %v462, 0.0
      %v467 = vmax.f32 %v463, 0.0
      %v468 = vmax.f32 %v464, 0.0
      %v469 = vlaneseq
      %v470 = vshrl.u32 %v469, 7
      %v471 = vsub.s32 2, %v470
      %v472 = vrot.slane %v412, %v471
      %v473 = vlaneseq
      %v474 = vshrl.u32 %v473, 7
      %v475 = vsub.s32 2, %v474
      %v476 = vrot.slane %v413, %v475
      %v477 = vmul.f32 %v465, %v472
      %v478 = vmul.f32 %v466, %v476
      %v479 = vmul.f32 %v467, %v472
      %v480 = vmul.f32 %v468, %v476
      %v481 = vpack.c.bf16 %v443, %v441
      %v482 = vpack.c.bf16 %v444, %v442
      %v491 = vunpack.c.l.b16 %v256
      %v492 = vunpack.c.l.b16 %v257
      %v493 = vunpack.c.l.b16 %v258
      %v494 = vunpack.c.l.b16 %v259
      %v495 = vunpack.c.l.b16 %v260
      %v496 = vunpack.c.l.b16 %v261
      %v497 = vunpack.c.l.b16 %v262
      %v498 = vunpack.c.l.b16 %v263
      %v499 = vpack.c.b16 %v492, %v491
      %v500 = vpack.c.b16 %v494, %v493
      %v501 = vpack.c.b16 %v496, %v495
      %v502 = vpack.c.b16 %v498, %v497
      %vm503 = vcmask 130048
      %v505 = vsel %vm503, %v499, 0
      %v508 = vsel %vm503, %v500, 0
      %v511 = vsel %vm503, %v501, 0
      %v514 = vsel %vm503, %v502, 0
      %516 = vmatprep.subr.bf16.mxu0 %v482
      %517 = vmatpush1.bf16.msra.mxu0 %v481
      %518 = vmatprep.subr.bf16.mxu0 0
      %519 = vmatpush1.bf16.msra.mxu0 0
      %520 = vmatprep.subr.bf16.mxu0 0
      %521 = vmatpush1.bf16.msra.mxu0 0
      %522 = vmatprep.subr.bf16.mxu0 0
      %523 = vmatpush1.bf16.msra.mxu0 0
      %524 = vmatprep.subr.bf16.mxu0 0
      %525 = vmatpush1.bf16.msra.mxu0 0
      %526 = vmatprep.subr.bf16.mxu0 0
      %527 = vmatpush1.bf16.msra.mxu0 0
      %528 = vmatprep.subr.bf16.mxu0 0
      %529 = vmatpush1.bf16.msra.mxu0 0
      %530 = vmatprep.subr.bf16.mxu0 0
      %531 = vmatpush1.bf16.msra.mxu0 0
      %532 = vmatprep.subr.bf16.mxu0 0
      %533 = vmatpush1.bf16.msra.mxu0 0
      %534 = vmatprep.subr.bf16.mxu0 0
      %535 = vmatpush1.bf16.msra.mxu0 0
      %536 = vmatprep.subr.bf16.mxu0 0
      %537 = vmatpush1.bf16.msra.mxu0 0
      %538 = vmatprep.subr.bf16.mxu0 0
      %539 = vmatpush1.bf16.msra.mxu0 0
      %540 = vmatprep.subr.bf16.mxu0 0
      %541 = vmatpush1.bf16.msra.mxu0 0
      %542 = vmatprep.subr.bf16.mxu0 0
      %543 = vmatpush1.bf16.msra.mxu0 0
      %544 = vmatprep.subr.bf16.mxu0 0
      %545 = vmatpush1.bf16.msra.mxu0 0
      %546 = vmatprep.subr.bf16.mxu0 0
      %547 = vmatpush1.bf16.msra.mxu0 0
      %548 = vmatprep.mubr.bf16.mxu0 0
      %549 = vmatmul.mubr.bf16.gmra.mrb[0].mxu0 %v505
      %v550 = vpop.f32.mrb[0].mxu0
      %v551 = vadd.f32 0.0, %v550
      %v552 = vpop.f32.mrb[0].mxu0
      %v553 = vadd.f32 0.0, %v552
      %v554 = vpop.f32.mrb[0].mxu0
      %v555 = vadd.f32 0.0, %v554
      %v556 = vpop.f32.mrb[0].mxu0
      %v557 = vadd.f32 0.0, %v556
      %558 = vmatprep.mubr.bf16.mxu0 0
      %559 = vmatmul.mubr.bf16.gmra.mrb[0].mxu0 %v508
      %v560 = vpop.f32.mrb[0].mxu0
      %v561 = vadd.f32 0.0, %v560
      %v562 = vpop.f32.mrb[0].mxu0
      %v563 = vadd.f32 0.0, %v562
      %v564 = vpop.f32.mrb[0].mxu0
      %v565 = vadd.f32 0.0, %v564
      %v566 = vpop.f32.mrb[0].mxu0
      %v567 = vadd.f32 0.0, %v566
      %568 = vmatprep.mubr.bf16.mxu0 0
      %569 = vmatmul.mubr.bf16.gmra.mrb[0].mxu0 %v511
      %v570 = vpop.f32.mrb[0].mxu0
      %v571 = vadd.f32 0.0, %v570
      %v572 = vpop.f32.mrb[0].mxu0
      %v573 = vadd.f32 0.0, %v572
      %v574 = vpop.f32.mrb[0].mxu0
      %v575 = vadd.f32 0.0, %v574
      %v576 = vpop.f32.mrb[0].mxu0
      %v577 = vadd.f32 0.0, %v576
      %578 = vmatprep.mubr.bf16.mxu0 0
      %579 = vmatmul.mubr.bf16.gmra.mrb[0].mxu0 %v514
      %v580 = vpop.f32.mrb[0].mxu0
      %v581 = vadd.f32 0.0, %v580
      %v582 = vpop.f32.mrb[0].mxu0
      %v583 = vadd.f32 0.0, %v582
      %v584 = vpop.f32.mrb[0].mxu0
      %v585 = vadd.f32 0.0, %v584
      %v586 = vpop.f32.mrb[0].mxu0
      %v587 = vadd.f32 0.0, %v586
      %588 = vdwg.mxu0
      %v589 = vmul.f32 %v551, %v477
      %v590 = vmul.f32 %v553, %v478
      %v591 = vmul.f32 %v555, %v479
      %v592 = vmul.f32 %v557, %v480
      %v593 = vpack.c.bf16 %v591, %v589
      %v594 = vpack.c.bf16 %v592, %v590
      %595 = vst [vmem:[#allocation2] sm:$0xff] %v593
      %596 = vst [vmem:[#allocation2 + $0x8] sm:$0xff] %v594
      %v597 = vmul.f32 %v561, %v477
      %v598 = vmul.f32 %v563, %v478
      %v599 = vmul.f32 %v565, %v479
      %v600 = vmul.f32 %v567, %v480
      %v601 = vpack.c.bf16 %v599, %v597
      %v602 = vpack.c.bf16 %v600, %v598
      %603 = vst [vmem:[#allocation2 + $0x10] sm:$0xff] %v601
      %604 = vst [vmem:[#allocation2 + $0x18] sm:$0xff] %v602
      %v605 = vmul.f32 %v571, %v477
      %v606 = vmul.f32 %v573, %v478
      %v607 = vmul.f32 %v575, %v479
      %v608 = vmul.f32 %v577, %v480
      %v609 = vpack.c.bf16 %v607, %v605
      %v610 = vpack.c.bf16 %v608, %v606
      %611 = vst [vmem:[#allocation2 + $0x20] sm:$0xff] %v609
      %612 = vst [vmem:[#allocation2 + $0x28] sm:$0xff] %v610
      %v613 = vmul.f32 %v581, %v477
      %v614 = vmul.f32 %v583, %v478
      %v615 = vmul.f32 %v585, %v479
      %v616 = vmul.f32 %v587, %v480
      %v617 = vpack.c.bf16 %v615, %v613
      %v618 = vpack.c.bf16 %v616, %v614
      %619 = vst [vmem:[#allocation2 + $0x30] sm:$0xff] %v617
      %620 = vst [vmem:[#allocation2 + $0x38] sm:$0xff] %v618
      %v621 = vlaneseq
      %v622 = vshrl.u32 %v621, 7
      %v623 = vsub.s32 1, %v622
      %v624 = vrot.slane %v388, %v623
      %v625 = vlaneseq
      %v626 = vshrl.u32 %v625, 7
      %v627 = vsub.s32 1, %v626
      %v628 = vrot.slane %v389, %v627
      %v629 = vsub.f32 %v419, %v624
      %v630 = vsub.f32 %v419, %v628
      %v631 = vsub.f32 %v420, %v624
      %v632 = vsub.f32 %v420, %v628
      %v633 = vand.u32 2147483647, %v629
      %v634 = vand.u32 2147483647, %v630
      %v635 = vand.u32 2147483647, %v631
      %v636 = vand.u32 2147483647, %v632
      %v637 = vsub.f32 1.0, %v633
      %v638 = vsub.f32 1.0, %v634
      %v639 = vsub.f32 1.0, %v635
      %v640 = vsub.f32 1.0, %v636
      %v641 = vmax.f32 %v637, 0.0
      %v642 = vmax.f32 %v638, 0.0
      %v643 = vmax.f32 %v639, 0.0
      %v644 = vmax.f32 %v640, 0.0
      %v645 = vlaneseq
      %v646 = vshrl.u32 %v645, 7
      %v647 = vsub.s32 2, %v646
      %v648 = vrot.slane %v392, %v647
      %v649 = vlaneseq
      %v650 = vshrl.u32 %v649, 7
      %v651 = vsub.s32 2, %v650
      %v652 = vrot.slane %v393, %v651
      %v653 = vsub.f32 %v419, %v648
      %v654 = vsub.f32 %v419, %v652
      %v655 = vsub.f32 %v420, %v648
      %v656 = vsub.f32 %v420, %v652
      %v657 = vand.u32 2147483647, %v653
      %v658 = vand.u32 2147483647, %v654
      %v659 = vand.u32 2147483647, %v655
      %v660 = vand.u32 2147483647, %v656
      %v661 = vsub.f32 1.0, %v657
      %v662 = vsub.f32 1.0, %v658
      %v663 = vsub.f32 1.0, %v659
      %v664 = vsub.f32 1.0, %v660
      %v665 = vmax.f32 %v661, 0.0
      %v666 = vmax.f32 %v662, 0.0
      %v667 = vmax.f32 %v663, 0.0
      %v668 = vmax.f32 %v664, 0.0
      %v669 = vlaneseq
      %v670 = vshrl.u32 %v669, 7
      %v671 = vsub.s32 3, %v670
      %v672 = vrot.slane %v412, %v671
      %v673 = vlaneseq
      %v674 = vshrl.u32 %v673, 7
      %v675 = vsub.s32 3, %v674
      %v676 = vrot.slane %v413, %v675
      %v677 = vmul.f32 %v665, %v672
      %v678 = vmul.f32 %v666, %v676
      %v679 = vmul.f32 %v667, %v672
      %v680 = vmul.f32 %v668, %v676
      %v681 = vpack.c.bf16 %v643, %v641
      %v682 = vpack.c.bf16 %v644, %v642
      %683 = vmatprep.subr.bf16.mxu0 %v682
      %684 = vmatpush1.bf16.msra.mxu0 %v681
      %685 = vmatprep.subr.bf16.mxu0 0
      %686 = vmatpush1.bf16.msra.mxu0 0
      %687 = vmatprep.subr.bf16.mxu0 0
      %688 = vmatpush1.bf16.msra.mxu0 0
      %689 = vmatprep.subr.bf16.mxu0 0
      %690 = vmatpush1.bf16.msra.mxu0 0
      %691 = vmatprep.subr.bf16.mxu0 0
      %692 = vmatpush1.bf16.msra.mxu0 0
      %693 = vmatprep.subr.bf16.mxu0 0
      %694 = vmatpush1.bf16.msra.mxu0 0
      %695 = vmatprep.subr.bf16.mxu0 0
      %696 = vmatpush1.bf16.msra.mxu0 0
      %697 = vmatprep.subr.bf16.mxu0 0
      %698 = vmatpush1.bf16.msra.mxu0 0
      %699 = vmatprep.subr.bf16.mxu0 0
      %700 = vmatpush1.bf16.msra.mxu0 0
      %701 = vmatprep.subr.bf16.mxu0 0
      %702 = vmatpush1.bf16.msra.mxu0 0
      %703 = vmatprep.subr.bf16.mxu0 0
      %704 = vmatpush1.bf16.msra.mxu0 0
      %705 = vmatprep.subr.bf16.mxu0 0
      %706 = vmatpush1.bf16.msra.mxu0 0
      %707 = vmatprep.subr.bf16.mxu0 0
      %708 = vmatpush1.bf16.msra.mxu0 0
      %709 = vmatprep.subr.bf16.mxu0 0
      %710 = vmatpush1.bf16.msra.mxu0 0
      %711 = vmatprep.subr.bf16.mxu0 0
      %712 = vmatpush1.bf16.msra.mxu0 0
      %713 = vmatprep.subr.bf16.mxu0 0
      %714 = vmatpush1.bf16.msra.mxu0 0
      %715 = vmatprep.mubr.bf16.mxu0 0
      %716 = vmatmul.mubr.bf16.gmra.mrb[0].mxu0 %v505
      %v717 = vpop.f32.mrb[0].mxu0
      %v718 = vadd.f32 0.0, %v717
      %v719 = vpop.f32.mrb[0].mxu0
      %v720 = vadd.f32 0.0, %v719
      %v721 = vpop.f32.mrb[0].mxu0
      %v722 = vadd.f32 0.0, %v721
      %v723 = vpop.f32.mrb[0].mxu0
      %v724 = vadd.f32 0.0, %v723
      %725 = vmatprep.mubr.bf16.mxu0 0
      %726 = vmatmul.mubr.bf16.gmra.mrb[0].mxu0 %v508
      %v727 = vpop.f32.mrb[0].mxu0
      %v728 = vadd.f32 0.0, %v727
      %v729 = vpop.f32.mrb[0].mxu0
      %v730 = vadd.f32 0.0, %v729
      %v731 = vpop.f32.mrb[0].mxu0
      %v732 = vadd.f32 0.0, %v731
      %v733 = vpop.f32.mrb[0].mxu0
      %v734 = vadd.f32 0.0, %v733
      %735 = vmatprep.mubr.bf16.mxu0 0
      %736 = vmatmul.mubr.bf16.gmra.mrb[0].mxu0 %v511
      %v737 = vpop.f32.mrb[0].mxu0
      %v738 = vadd.f32 0.0, %v737
      %v739 = vpop.f32.mrb[0].mxu0
      %v740 = vadd.f32 0.0, %v739
      %v741 = vpop.f32.mrb[0].mxu0
      %v742 = vadd.f32 0.0, %v741
      %v743 = vpop.f32.mrb[0].mxu0
      %v744 = vadd.f32 0.0, %v743
      %745 = vmatprep.mubr.bf16.mxu0 0
      %746 = vmatmul.mubr.bf16.gmra.mrb[0].mxu0 %v514
      %v747 = vpop.f32.mrb[0].mxu0
      %v748 = vadd.f32 0.0, %v747
      %v749 = vpop.f32.mrb[0].mxu0
      %v750 = vadd.f32 0.0, %v749
      %v751 = vpop.f32.mrb[0].mxu0
      %v752 = vadd.f32 0.0, %v751
      %v753 = vpop.f32.mrb[0].mxu0
      %v754 = vadd.f32 0.0, %v753
      %755 = vdwg.mxu0
      %v756 = vmul.f32 %v718, %v677
      %v757 = vmul.f32 %v720, %v678
      %v758 = vmul.f32 %v722, %v679
      %v759 = vmul.f32 %v724, %v680
      %v760 = vpack.c.bf16 %v758, %v756
      %v761 = vpack.c.bf16 %v759, %v757
      %762 = vst [vmem:[#allocation2 + $0x40] sm:$0xff] %v760
      %763 = vst [vmem:[#allocation2 + $0x48] sm:$0xff] %v761
      %v764 = vmul.f32 %v728, %v677
      %v765 = vmul.f32 %v730, %v678
      %v766 = vmul.f32 %v732, %v679
      %v767 = vmul.f32 %v734, %v680
      %v768 = vpack.c.bf16 %v766, %v764
      %v769 = vpack.c.bf16 %v767, %v765
      %770 = vst [vmem:[#allocation2 + $0x50] sm:$0xff] %v768
      %771 = vst [vmem:[#allocation2 + $0x58] sm:$0xff] %v769
      %v772 = vmul.f32 %v738, %v677
      %v773 = vmul.f32 %v740, %v678
      %v774 = vmul.f32 %v742, %v679
      %v775 = vmul.f32 %v744, %v680
      %v776 = vpack.c.bf16 %v774, %v772
      %v777 = vpack.c.bf16 %v775, %v773
      %778 = vst [vmem:[#allocation2 + $0x60] sm:$0xff] %v776
      %779 = vst [vmem:[#allocation2 + $0x68] sm:$0xff] %v777
      %v780 = vmul.f32 %v748, %v677
      %v781 = vmul.f32 %v750, %v678
      %v782 = vmul.f32 %v752, %v679
      %v783 = vmul.f32 %v754, %v680
      %v784 = vpack.c.bf16 %v782, %v780
      %v785 = vpack.c.bf16 %v783, %v781
      %786 = vst [vmem:[#allocation2 + $0x70] sm:$0xff] %v784
      %787 = vst [vmem:[#allocation2 + $0x78] sm:$0xff] %v785
      %v788 = vlaneseq
      %v789 = vshrl.u32 %v788, 7
      %v790 = vsub.s32 2, %v789
      %v791 = vrot.slane %v388, %v790
      %v792 = vlaneseq
      %v793 = vshrl.u32 %v792, 7
      %v794 = vsub.s32 2, %v793
      %v795 = vrot.slane %v389, %v794
      %v796 = vsub.f32 %v419, %v791
      %v797 = vsub.f32 %v419, %v795
      %v798 = vsub.f32 %v420, %v791
      %v799 = vsub.f32 %v420, %v795
      %v800 = vand.u32 2147483647, %v796
      %v801 = vand.u32 2147483647, %v797
      %v802 = vand.u32 2147483647, %v798
      %v803 = vand.u32 2147483647, %v799
      %v804 = vsub.f32 1.0, %v800
      %v805 = vsub.f32 1.0, %v801
      %v806 = vsub.f32 1.0, %v802
      %v807 = vsub.f32 1.0, %v803
      %v808 = vmax.f32 %v804, 0.0
      %v809 = vmax.f32 %v805, 0.0
      %v810 = vmax.f32 %v806, 0.0
      %v811 = vmax.f32 %v807, 0.0
      %v812 = vlaneseq
      %v813 = vshrl.u32 %v812, 7
      %v814 = vsub.s32 3, %v813
      %v815 = vrot.slane %v392, %v814
      %v816 = vlaneseq
      %v817 = vshrl.u32 %v816, 7
      %v818 = vsub.s32 3, %v817
      %v819 = vrot.slane %v393, %v818
      %v820 = vsub.f32 %v419, %v815
      %v821 = vsub.f32 %v419, %v819
      %v822 = vsub.f32 %v420, %v815
      %v823 = vsub.f32 %v420, %v819
      %v824 = vand.u32 2147483647, %v820
      %v825 = vand.u32 2147483647, %v821
      %v826 = vand.u32 2147483647, %v822
      %v827 = vand.u32 2147483647, %v823
      %v828 = vsub.f32 1.0, %v824
      %v829 = vsub.f32 1.0, %v825
      %v830 = vsub.f32 1.0, %v826
      %v831 = vsub.f32 1.0, %v827
      %v832 = vmax.f32 %v828, 0.0
      %v833 = vmax.f32 %v829, 0.0
      %v834 = vmax.f32 %v830, 0.0
      %v835 = vmax.f32 %v831, 0.0
      %v836 = vlaneseq
      %v837 = vshrl.u32 %v836, 7
      %v838 = vsub.s32 4, %v837
      %v839 = vrot.slane %v412, %v838
      %v840 = vlaneseq
      %v841 = vshrl.u32 %v840, 7
      %v842 = vsub.s32 4, %v841
      %v843 = vrot.slane %v413, %v842
      %v844 = vmul.f32 %v832, %v839
      %v845 = vmul.f32 %v833, %v843
      %v846 = vmul.f32 %v834, %v839
      %v847 = vmul.f32 %v835, %v843
      %v848 = vpack.c.bf16 %v810, %v808
      %v849 = vpack.c.bf16 %v811, %v809
      %850 = vmatprep.subr.bf16.mxu0 %v849
      %851 = vmatpush1.bf16.msra.mxu0 %v848
      %852 = vmatprep.subr.bf16.mxu0 0
      %853 = vmatpush1.bf16.msra.mxu0 0
      %854 = vmatprep.subr.bf16.mxu0 0
      %855 = vmatpush1.bf16.msra.mxu0 0
      %856 = vmatprep.subr.bf16.mxu0 0
      %857 = vmatpush1.bf16.msra.mxu0 0
      %858 = vmatprep.subr.bf16.mxu0 0
      %859 = vmatpush1.bf16.msra.mxu0 0
      %860 = vmatprep.subr.bf16.mxu0 0
      %861 = vmatpush1.bf16.msra.mxu0 0
      %862 = vmatprep.subr.bf16.mxu0 0
      %863 = vmatpush1.bf16.msra.mxu0 0
      %864 = vmatprep.subr.bf16.mxu0 0
      %865 = vmatpush1.bf16.msra.mxu0 0
      %866 = vmatprep.subr.bf16.mxu0 0
      %867 = vmatpush1.bf16.msra.mxu0 0
      %868 = vmatprep.subr.bf16.mxu0 0
      %869 = vmatpush1.bf16.msra.mxu0 0
      %870 = vmatprep.subr.bf16.mxu0 0
      %871 = vmatpush1.bf16.msra.mxu0 0
      %872 = vmatprep.subr.bf16.mxu0 0
      %873 = vmatpush1.bf16.msra.mxu0 0
      %874 = vmatprep.subr.bf16.mxu0 0
      %875 = vmatpush1.bf16.msra.mxu0 0
      %876 = vmatprep.subr.bf16.mxu0 0
      %877 = vmatpush1.bf16.msra.mxu0 0
      %878 = vmatprep.subr.bf16.mxu0 0
      %879 = vmatpush1.bf16.msra.mxu0 0
      %880 = vmatprep.subr.bf16.mxu0 0
      %881 = vmatpush1.bf16.msra.mxu0 0
      %882 = vmatprep.mubr.bf16.mxu0 0
      %883 = vmatmul.mubr.bf16.gmra.mrb[0].mxu0 %v505
      %v884 = vpop.f32.mrb[0].mxu0
      %v885 = vadd.f32 0.0, %v884
      %v886 = vpop.f32.mrb[0].mxu0
      %v887 = vadd.f32 0.0, %v886
      %v888 = vpop.f32.mrb[0].mxu0
      %v889 = vadd.f32 0.0, %v888
      %v890 = vpop.f32.mrb[0].mxu0
      %v891 = vadd.f32 0.0, %v890
      %892 = vmatprep.mubr.bf16.mxu0 0
      %893 = vmatmul.mubr.bf16.gmra.mrb[0].mxu0 %v508
      %v894 = vpop.f32.mrb[0].mxu0
      %v895 = vadd.f32 0.0, %v894
      %v896 = vpop.f32.mrb[0].mxu0
      %v897 = vadd.f32 0.0, %v896
      %v898 = vpop.f32.mrb[0].mxu0
      %v899 = vadd.f32 0.0, %v898
      %v900 = vpop.f32.mrb[0].mxu0
      %v901 = vadd.f32 0.0, %v900
      %902 = vmatprep.mubr.bf16.mxu0 0
      %903 = vmatmul.mubr.bf16.gmra.mrb[0].mxu0 %v511
      %v904 = vpop.f32.mrb[0].mxu0
      %v905 = vadd.f32 0.0, %v904
      %v906 = vpop.f32.mrb[0].mxu0
      %v907 = vadd.f32 0.0, %v906
      %v908 = vpop.f32.mrb[0].mxu0
      %v909 = vadd.f32 0.0, %v908
      %v910 = vpop.f32.mrb[0].mxu0
      %v911 = vadd.f32 0.0, %v910
      %912 = vmatprep.mubr.bf16.mxu0 0
      %913 = vmatmul.mubr.bf16.gmra.mrb[0].mxu0 %v514
      %v914 = vpop.f32.mrb[0].mxu0
      %v915 = vadd.f32 0.0, %v914
      %v916 = vpop.f32.mrb[0].mxu0
      %v917 = vadd.f32 0.0, %v916
      %v918 = vpop.f32.mrb[0].mxu0
      %v919 = vadd.f32 0.0, %v918
      %v920 = vpop.f32.mrb[0].mxu0
      %v921 = vadd.f32 0.0, %v920
      %922 = vdwg.mxu0
      %v923 = vmul.f32 %v885, %v844
      %v924 = vmul.f32 %v887, %v845
      %v925 = vmul.f32 %v889, %v846
      %v926 = vmul.f32 %v891, %v847
      %v927 = vpack.c.bf16 %v925, %v923
      %v928 = vpack.c.bf16 %v926, %v924
      %929 = vst [vmem:[#allocation2 + $0x80] sm:$0xff] %v927
      %930 = vst [vmem:[#allocation2 + $0x88] sm:$0xff] %v928
      %v931 = vmul.f32 %v895, %v844
      %v932 = vmul.f32 %v897, %v845
      %v933 = vmul.f32 %v899, %v846
      %v934 = vmul.f32 %v901, %v847
      %v935 = vpack.c.bf16 %v933, %v931
      %v936 = vpack.c.bf16 %v934, %v932
      %937 = vst [vmem:[#allocation2 + $0x90] sm:$0xff] %v935
      %938 = vst [vmem:[#allocation2 + $0x98] sm:$0xff] %v936
      %v939 = vmul.f32 %v905, %v844
      %v940 = vmul.f32 %v907, %v845
      %v941 = vmul.f32 %v909, %v846
      %v942 = vmul.f32 %v911, %v847
      %v943 = vpack.c.bf16 %v941, %v939
      %v944 = vpack.c.bf16 %v942, %v940
      %945 = vst [vmem:[#allocation2 + $0xa0] sm:$0xff] %v943
      %946 = vst [vmem:[#allocation2 + $0xa8] sm:$0xff] %v944
      %v947 = vmul.f32 %v915, %v844
      %v948 = vmul.f32 %v917, %v845
      %v949 = vmul.f32 %v919, %v846
      %v950 = vmul.f32 %v921, %v847
      %v951 = vpack.c.bf16 %v949, %v947
      %v952 = vpack.c.bf16 %v950, %v948
      %953 = vst [vmem:[#allocation2 + $0xb0] sm:$0xff] %v951
      %954 = vst [vmem:[#allocation2 + $0xb8] sm:$0xff] %v952
      %v955 = vlaneseq
      %v956 = vshrl.u32 %v955, 7
      %v957 = vsub.s32 3, %v956
      %v958 = vrot.slane %v388, %v957
      %v959 = vlaneseq
      %v960 = vshrl.u32 %v959, 7
      %v961 = vsub.s32 3, %v960
      %v962 = vrot.slane %v389, %v961
      %v963 = vsub.f32 %v419, %v958
      %v964 = vsub.f32 %v419, %v962
      %v965 = vsub.f32 %v420, %v958
      %v966 = vsub.f32 %v420, %v962
      %v967 = vand.u32 2147483647, %v963
      %v968 = vand.u32 2147483647, %v964
      %v969 = vand.u32 2147483647, %v965
      %v970 = vand.u32 2147483647, %v966
      %v971 = vsub.f32 1.0, %v967
      %v972 = vsub.f32 1.0, %v968
      %v973 = vsub.f32 1.0, %v969
      %v974 = vsub.f32 1.0, %v970
      %v975 = vmax.f32 %v971, 0.0
      %v976 = vmax.f32 %v972, 0.0
      %v977 = vmax.f32 %v973, 0.0
      %v978 = vmax.f32 %v974, 0.0
      %v979 = vlaneseq
      %v980 = vshrl.u32 %v979, 7
      %v981 = vsub.s32 4, %v980
      %v982 = vrot.slane %v392, %v981
      %v983 = vlaneseq
      %v984 = vshrl.u32 %v983, 7
      %v985 = vsub.s32 4, %v984
      %v986 = vrot.slane %v393, %v985
      %v987 = vsub.f32 %v419, %v982
      %v988 = vsub.f32 %v419, %v986
      %v989 = vsub.f32 %v420, %v982
      %v990 = vsub.f32 %v420, %v986
      %v991 = vand.u32 2147483647, %v987
      %v992 = vand.u32 2147483647, %v988
      %v993 = vand.u32 2147483647, %v989
      %v994 = vand.u32 2147483647, %v990
      %v995 = vsub.f32 1.0, %v991
      %v996 = vsub.f32 1.0, %v992
      %v997 = vsub.f32 1.0, %v993
      %v998 = vsub.f32 1.0, %v994
      %v999 = vmax.f32 %v995, 0.0
      %v1000 = vmax.f32 %v996, 0.0
      %v1001 = vmax.f32 %v997, 0.0
      %v1002 = vmax.f32 %v998, 0.0
      %v1003 = vlaneseq
      %v1004 = vshrl.u32 %v1003, 7
      %v1005 = vsub.s32 5, %v1004
      %v1006 = vrot.slane %v412, %v1005
      %v1007 = vlaneseq
      %v1008 = vshrl.u32 %v1007, 7
      %v1009 = vsub.s32 5, %v1008
      %v1010 = vrot.slane %v413, %v1009
      %v1011 = vmul.f32 %v999, %v1006
      %v1012 = vmul.f32 %v1000, %v1010
      %v1013 = vmul.f32 %v1001, %v1006
      %v1014 = vmul.f32 %v1002, %v1010
      %v1015 = vpack.c.bf16 %v977, %v975
      %v1016 = vpack.c.bf16 %v978, %v976
      %1017 = vmatprep.subr.bf16.mxu0 %v1016
      %1018 = vmatpush1.bf16.msra.mxu0 %v1015
      %1019 = vmatprep.subr.bf16.mxu0 0
      %1020 = vmatpush1.bf16.msra.mxu0 0
      %1021 = vmatprep.subr.bf16.mxu0 0
      %1022 = vmatpush1.bf16.msra.mxu0 0
      %1023 = vmatprep.subr.bf16.mxu0 0
      %1024 = vmatpush1.bf16.msra.mxu0 0
      %1025 = vmatprep.subr.bf16.mxu0 0
      %1026 = vmatpush1.bf16.msra.mxu0 0
      %1027 = vmatprep.subr.bf16.mxu0 0
      %1028 = vmatpush1.bf16.msra.mxu0 0
      %1029 = vmatprep.subr.bf16.mxu0 0
      %1030 = vmatpush1.bf16.msra.mxu0 0
      %1031 = vmatprep.subr.bf16.mxu0 0
      %1032 = vmatpush1.bf16.msra.mxu0 0
      %1033 = vmatprep.subr.bf16.mxu0 0
      %1034 = vmatpush1.bf16.msra.mxu0 0
      %1035 = vmatprep.subr.bf16.mxu0 0
      %1036 = vmatpush1.bf16.msra.mxu0 0
      %1037 = vmatprep.subr.bf16.mxu0 0
      %1038 = vmatpush1.bf16.msra.mxu0 0
      %1039 = vmatprep.subr.bf16.mxu0 0
      %1040 = vmatpush1.bf16.msra.mxu0 0
      %1041 = vmatprep.subr.bf16.mxu0 0
      %1042 = vmatpush1.bf16.msra.mxu0 0
      %1043 = vmatprep.subr.bf16.mxu0 0
      %1044 = vmatpush1.bf16.msra.mxu0 0
      %1045 = vmatprep.subr.bf16.mxu0 0
      %1046 = vmatpush1.bf16.msra.mxu0 0
      %1047 = vmatprep.subr.bf16.mxu0 0
      %1048 = vmatpush1.bf16.msra.mxu0 0
      %1049 = vmatprep.mubr.bf16.mxu0 0
      %1050 = vmatmul.mubr.bf16.gmra.mrb[0].mxu0 %v505
      %v1051 = vpop.f32.mrb[0].mxu0
      %v1052 = vadd.f32 0.0, %v1051
      %v1053 = vpop.f32.mrb[0].mxu0
      %v1054 = vadd.f32 0.0, %v1053
      %v1055 = vpop.f32.mrb[0].mxu0
      %v1056 = vadd.f32 0.0, %v1055
      %v1057 = vpop.f32.mrb[0].mxu0
      %v1058 = vadd.f32 0.0, %v1057
      %1059 = vmatprep.mubr.bf16.mxu0 0
      %1060 = vmatmul.mubr.bf16.gmra.mrb[0].mxu0 %v508
      %v1061 = vpop.f32.mrb[0].mxu0
      %v1062 = vadd.f32 0.0, %v1061
      %v1063 = vpop.f32.mrb[0].mxu0
      %v1064 = vadd.f32 0.0, %v1063
      %v1065 = vpop.f32.mrb[0].mxu0
      %v1066 = vadd.f32 0.0, %v1065
      %v1067 = vpop.f32.mrb[0].mxu0
      %v1068 = vadd.f32 0.0, %v1067
      %1069 = vmatprep.mubr.bf16.mxu0 0
      %1070 = vmatmul.mubr.bf16.gmra.mrb[0].mxu0 %v511
      %v1071 = vpop.f32.mrb[0].mxu0
      %v1072 = vadd.f32 0.0, %v1071
      %v1073 = vpop.f32.mrb[0].mxu0
      %v1074 = vadd.f32 0.0, %v1073
      %v1075 = vpop.f32.mrb[0].mxu0
      %v1076 = vadd.f32 0.0, %v1075
      %v1077 = vpop.f32.mrb[0].mxu0
      %v1078 = vadd.f32 0.0, %v1077
      %1079 = vmatprep.mubr.bf16.mxu0 0
      %1080 = vmatmul.mubr.bf16.gmra.mrb[0].mxu0 %v514
      %v1081 = vpop.f32.mrb[0].mxu0
      %v1082 = vadd.f32 0.0, %v1081
      %v1083 = vpop.f32.mrb[0].mxu0
      %v1084 = vadd.f32 0.0, %v1083
      %v1085 = vpop.f32.mrb[0].mxu0
      %v1086 = vadd.f32 0.0, %v1085
      %v1087 = vpop.f32.mrb[0].mxu0
      %v1088 = vadd.f32 0.0, %v1087
      %1089 = vdwg.mxu0
      %v1090 = vmul.f32 %v1052, %v1011
      %v1091 = vmul.f32 %v1054, %v1012
      %v1092 = vmul.f32 %v1056, %v1013
      %v1093 = vmul.f32 %v1058, %v1014
      %v1094 = vpack.c.bf16 %v1092, %v1090
      %v1095 = vpack.c.bf16 %v1093, %v1091
      %1096 = vst [vmem:[#allocation2 + $0xc0] sm:$0xff] %v1094
      %1097 = vst [vmem:[#allocation2 + $0xc8] sm:$0xff] %v1095
      %v1098 = vmul.f32 %v1062, %v1011
      %v1099 = vmul.f32 %v1064, %v1012
      %v1100 = vmul.f32 %v1066, %v1013
      %v1101 = vmul.f32 %v1068, %v1014
      %v1102 = vpack.c.bf16 %v1100, %v1098
      %v1103 = vpack.c.bf16 %v1101, %v1099
      %1104 = vst [vmem:[#allocation2 + $0xd0] sm:$0xff] %v1102
      %1105 = vst [vmem:[#allocation2 + $0xd8] sm:$0xff] %v1103
      %v1106 = vmul.f32 %v1072, %v1011
      %v1107 = vmul.f32 %v1074, %v1012
      %v1108 = vmul.f32 %v1076, %v1013
      %v1109 = vmul.f32 %v1078, %v1014
      %v1110 = vpack.c.bf16 %v1108, %v1106
      %v1111 = vpack.c.bf16 %v1109, %v1107
      %1112 = vst [vmem:[#allocation2 + $0xe0] sm:$0xff] %v1110
      %1113 = vst [vmem:[#allocation2 + $0xe8] sm:$0xff] %v1111
      %v1114 = vmul.f32 %v1082, %v1011
      %v1115 = vmul.f32 %v1084, %v1012
      %v1116 = vmul.f32 %v1086, %v1013
      %v1117 = vmul.f32 %v1088, %v1014
      %v1118 = vpack.c.bf16 %v1116, %v1114
      %v1119 = vpack.c.bf16 %v1117, %v1115
      %1120 = vst [vmem:[#allocation2 + $0xf0] sm:$0xff] %v1118
      %1121 = vst [vmem:[#allocation2 + $0xf8] sm:$0xff] %v1119
      %v1122 = vlaneseq
      %v1123 = vshrl.u32 %v1122, 7
      %v1124 = vsub.s32 4, %v1123
      %v1125 = vrot.slane %v388, %v1124
      %v1126 = vlaneseq
      %v1127 = vshrl.u32 %v1126, 7
      %v1128 = vsub.s32 4, %v1127
      %v1129 = vrot.slane %v389, %v1128
      %v1130 = vsub.f32 %v419, %v1125
      %v1131 = vsub.f32 %v419, %v1129
      %v1132 = vsub.f32 %v420, %v1125
      %v1133 = vsub.f32 %v420, %v1129
      %v1134 = vand.u32 2147483647, %v1130
      %v1135 = vand.u32 2147483647, %v1131
      %v1136 = vand.u32 2147483647, %v1132
      %v1137 = vand.u32 2147483647, %v1133
      %v1138 = vsub.f32 1.0, %v1134
      %v1139 = vsub.f32 1.0, %v1135
      %v1140 = vsub.f32 1.0, %v1136
      %v1141 = vsub.f32 1.0, %v1137
      %v1142 = vmax.f32 %v1138, 0.0
      %v1143 = vmax.f32 %v1139, 0.0
      %v1144 = vmax.f32 %v1140, 0.0
      %v1145 = vmax.f32 %v1141, 0.0
      %v1146 = vlaneseq
      %v1147 = vshrl.u32 %v1146, 7
      %v1148 = vsub.s32 5, %v1147
      %v1149 = vrot.slane %v392, %v1148
      %v1150 = vlaneseq
      %v1151 = vshrl.u32 %v1150, 7
      %v1152 = vsub.s32 5, %v1151
      %v1153 = vrot.slane %v393, %v1152
      %v1154 = vsub.f32 %v419, %v1149
      %v1155 = vsub.f32 %v419, %v1153
      %v1156 = vsub.f32 %v420, %v1149
      %v1157 = vsub.f32 %v420, %v1153
      %v1158 = vand.u32 2147483647, %v1154
      %v1159 = vand.u32 2147483647, %v1155
      %v1160 = vand.u32 2147483647, %v1156
      %v1161 = vand.u32 2147483647, %v1157
      %v1162 = vsub.f32 1.0, %v1158
      %v1163 = vsub.f32 1.0, %v1159
      %v1164 = vsub.f32 1.0, %v1160
      %v1165 = vsub.f32 1.0, %v1161
      %v1166 = vmax.f32 %v1162, 0.0
      %v1167 = vmax.f32 %v1163, 0.0
      %v1168 = vmax.f32 %v1164, 0.0
      %v1169 = vmax.f32 %v1165, 0.0
      %v1170 = vlaneseq
      %v1171 = vshrl.u32 %v1170, 7
      %v1172 = vsub.s32 6, %v1171
      %v1173 = vrot.slane %v412, %v1172
      %v1174 = vlaneseq
      %v1175 = vshrl.u32 %v1174, 7
      %v1176 = vsub.s32 6, %v1175
      %v1177 = vrot.slane %v413, %v1176
      %v1178 = vmul.f32 %v1166, %v1173
      %v1179 = vmul.f32 %v1167, %v1177
      %v1180 = vmul.f32 %v1168, %v1173
      %v1181 = vmul.f32 %v1169, %v1177
      %v1182 = vpack.c.bf16 %v1144, %v1142
      %v1183 = vpack.c.bf16 %v1145, %v1143
      %1184 = vmatprep.subr.bf16.mxu0 %v1183
      %1185 = vmatpush1.bf16.msra.mxu0 %v1182
      %1186 = vmatprep.subr.bf16.mxu0 0
      %1187 = vmatpush1.bf16.msra.mxu0 0
      %1188 = vmatprep.subr.bf16.mxu0 0
      %1189 = vmatpush1.bf16.msra.mxu0 0
      %1190 = vmatprep.subr.bf16.mxu0 0
      %1191 = vmatpush1.bf16.msra.mxu0 0
      %1192 = vmatprep.subr.bf16.mxu0 0
      %1193 = vmatpush1.bf16.msra.mxu0 0
      %1194 = vmatprep.subr.bf16.mxu0 0
      %1195 = vmatpush1.bf16.msra.mxu0 0
      %1196 = vmatprep.subr.bf16.mxu0 0
      %1197 = vmatpush1.bf16.msra.mxu0 0
      %1198 = vmatprep.subr.bf16.mxu0 0
      %1199 = vmatpush1.bf16.msra.mxu0 0
      %1200 = vmatprep.subr.bf16.mxu0 0
      %1201 = vmatpush1.bf16.msra.mxu0 0
      %1202 = vmatprep.subr.bf16.mxu0 0
      %1203 = vmatpush1.bf16.msra.mxu0 0
      %1204 = vmatprep.subr.bf16.mxu0 0
      %1205 = vmatpush1.bf16.msra.mxu0 0
      %1206 = vmatprep.subr.bf16.mxu0 0
      %1207 = vmatpush1.bf16.msra.mxu0 0
      %1208 = vmatprep.subr.bf16.mxu0 0
      %1209 = vmatpush1.bf16.msra.mxu0 0
      %1210 = vmatprep.subr.bf16.mxu0 0
      %1211 = vmatpush1.bf16.msra.mxu0 0
      %1212 = vmatprep.subr.bf16.mxu0 0
      %1213 = vmatpush1.bf16.msra.mxu0 0
      %1214 = vmatprep.subr.bf16.mxu0 0
      %1215 = vmatpush1.bf16.msra.mxu0 0
      %1216 = vmatprep.mubr.bf16.mxu0 0
      %1217 = vmatmul.mubr.bf16.gmra.mrb[0].mxu0 %v505
      %v1218 = vpop.f32.mrb[0].mxu0
      %v1219 = vadd.f32 0.0, %v1218
      %v1220 = vpop.f32.mrb[0].mxu0
      %v1221 = vadd.f32 0.0, %v1220
      %v1222 = vpop.f32.mrb[0].mxu0
      %v1223 = vadd.f32 0.0, %v1222
      %v1224 = vpop.f32.mrb[0].mxu0
      %v1225 = vadd.f32 0.0, %v1224
      %1226 = vmatprep.mubr.bf16.mxu0 0
      %1227 = vmatmul.mubr.bf16.gmra.mrb[0].mxu0 %v508
      %v1228 = vpop.f32.mrb[0].mxu0
      %v1229 = vadd.f32 0.0, %v1228
      %v1230 = vpop.f32.mrb[0].mxu0
      %v1231 = vadd.f32 0.0, %v1230
      %v1232 = vpop.f32.mrb[0].mxu0
      %v1233 = vadd.f32 0.0, %v1232
      %v1234 = vpop.f32.mrb[0].mxu0
      %v1235 = vadd.f32 0.0, %v1234
      %1236 = vmatprep.mubr.bf16.mxu0 0
      %1237 = vmatmul.mubr.bf16.gmra.mrb[0].mxu0 %v511
      %v1238 = vpop.f32.mrb[0].mxu0
      %v1239 = vadd.f32 0.0, %v1238
      %v1240 = vpop.f32.mrb[0].mxu0
      %v1241 = vadd.f32 0.0, %v1240
      %v1242 = vpop.f32.mrb[0].mxu0
      %v1243 = vadd.f32 0.0, %v1242
      %v1244 = vpop.f32.mrb[0].mxu0
      %v1245 = vadd.f32 0.0, %v1244
      %1246 = vmatprep.mubr.bf16.mxu0 0
      %1247 = vmatmul.mubr.bf16.gmra.mrb[0].mxu0 %v514
      %v1248 = vpop.f32.mrb[0].mxu0
      %v1249 = vadd.f32 0.0, %v1248
      %v1250 = vpop.f32.mrb[0].mxu0
      %v1251 = vadd.f32 0.0, %v1250
      %v1252 = vpop.f32.mrb[0].mxu0
      %v1253 = vadd.f32 0.0, %v1252
      %v1254 = vpop.f32.mrb[0].mxu0
      %v1255 = vadd.f32 0.0, %v1254
      %1256 = vdwg.mxu0
      %v1257 = vmul.f32 %v1219, %v1178
      %v1258 = vmul.f32 %v1221, %v1179
      %v1259 = vmul.f32 %v1223, %v1180
      %v1260 = vmul.f32 %v1225, %v1181
      %v1261 = vpack.c.bf16 %v1259, %v1257
      %v1262 = vpack.c.bf16 %v1260, %v1258
      %1263 = vst [vmem:[#allocation2 + $0x100] sm:$0xff] %v1261
      %1264 = vst [vmem:[#allocation2 + $0x108] sm:$0xff] %v1262
      %v1265 = vmul.f32 %v1229, %v1178
      %v1266 = vmul.f32 %v1231, %v1179
      %v1267 = vmul.f32 %v1233, %v1180
      %v1268 = vmul.f32 %v1235, %v1181
      %v1269 = vpack.c.bf16 %v1267, %v1265
      %v1270 = vpack.c.bf16 %v1268, %v1266
      %1271 = vst [vmem:[#allocation2 + $0x110] sm:$0xff] %v1269
      %1272 = vst [vmem:[#allocation2 + $0x118] sm:$0xff] %v1270
      %v1273 = vmul.f32 %v1239, %v1178
      %v1274 = vmul.f32 %v1241, %v1179
      %v1275 = vmul.f32 %v1243, %v1180
      %v1276 = vmul.f32 %v1245, %v1181
      %v1277 = vpack.c.bf16 %v1275, %v1273
      %v1278 = vpack.c.bf16 %v1276, %v1274
      %1279 = vst [vmem:[#allocation2 + $0x120] sm:$0xff] %v1277
      %1280 = vst [vmem:[#allocation2 + $0x128] sm:$0xff] %v1278
      %v1281 = vmul.f32 %v1249, %v1178
      %v1282 = vmul.f32 %v1251, %v1179
      %v1283 = vmul.f32 %v1253, %v1180
      %v1284 = vmul.f32 %v1255, %v1181
      %v1285 = vpack.c.bf16 %v1283, %v1281
      %v1286 = vpack.c.bf16 %v1284, %v1282
      %1287 = vst [vmem:[#allocation2 + $0x130] sm:$0xff] %v1285
      %1288 = vst [vmem:[#allocation2 + $0x138] sm:$0xff] %v1286
      %v1289 = vlaneseq
      %v1290 = vshrl.u32 %v1289, 7
      %v1291 = vsub.s32 5, %v1290
      %v1292 = vrot.slane %v388, %v1291
      %v1293 = vlaneseq
      %v1294 = vshrl.u32 %v1293, 7
      %v1295 = vsub.s32 5, %v1294
      %v1296 = vrot.slane %v389, %v1295
      %v1297 = vsub.f32 %v419, %v1292
      %v1298 = vsub.f32 %v419, %v1296
      %v1299 = vsub.f32 %v420, %v1292
      %v1300 = vsub.f32 %v420, %v1296
      %v1301 = vand.u32 2147483647, %v1297
      %v1302 = vand.u32 2147483647, %v1298
      %v1303 = vand.u32 2147483647, %v1299
      %v1304 = vand.u32 2147483647, %v1300
      %v1305 = vsub.f32 1.0, %v1301
      %v1306 = vsub.f32 1.0, %v1302
      %v1307 = vsub.f32 1.0, %v1303
      %v1308 = vsub.f32 1.0, %v1304
      %v1309 = vmax.f32 %v1305, 0.0
      %v1310 = vmax.f32 %v1306, 0.0
      %v1311 = vmax.f32 %v1307, 0.0
      %v1312 = vmax.f32 %v1308, 0.0
      %v1313 = vlaneseq
      %v1314 = vshrl.u32 %v1313, 7
      %v1315 = vsub.s32 6, %v1314
      %v1316 = vrot.slane %v392, %v1315
      %v1317 = vlaneseq
      %v1318 = vshrl.u32 %v1317, 7
      %v1319 = vsub.s32 6, %v1318
      %v1320 = vrot.slane %v393, %v1319
      %v1321 = vsub.f32 %v419, %v1316
      %v1322 = vsub.f32 %v419, %v1320
      %v1323 = vsub.f32 %v420, %v1316
      %v1324 = vsub.f32 %v420, %v1320
      %v1325 = vand.u32 2147483647, %v1321
      %v1326 = vand.u32 2147483647, %v1322
      %v1327 = vand.u32 2147483647, %v1323
      %v1328 = vand.u32 2147483647, %v1324
      %v1329 = vsub.f32 1.0, %v1325
      %v1330 = vsub.f32 1.0, %v1326
      %v1331 = vsub.f32 1.0, %v1327
      %v1332 = vsub.f32 1.0, %v1328
      %v1333 = vmax.f32 %v1329, 0.0
      %v1334 = vmax.f32 %v1330, 0.0
      %v1335 = vmax.f32 %v1331, 0.0
      %v1336 = vmax.f32 %v1332, 0.0
      %v1337 = vlaneseq
      %v1338 = vshrl.u32 %v1337, 7
      %v1339 = vsub.s32 7, %v1338
      %v1340 = vrot.slane %v412, %v1339
      %v1341 = vlaneseq
      %v1342 = vshrl.u32 %v1341, 7
      %v1343 = vsub.s32 7, %v1342
      %v1344 = vrot.slane %v413, %v1343
      %v1345 = vmul.f32 %v1333, %v1340
      %v1346 = vmul.f32 %v1334, %v1344
      %v1347 = vmul.f32 %v1335, %v1340
      %v1348 = vmul.f32 %v1336, %v1344
      %v1349 = vpack.c.bf16 %v1311, %v1309
      %v1350 = vpack.c.bf16 %v1312, %v1310
      %1351 = vmatprep.subr.bf16.mxu0 %v1350
      %1352 = vmatpush1.bf16.msra.mxu0 %v1349
      %1353 = vmatprep.subr.bf16.mxu0 0
      %1354 = vmatpush1.bf16.msra.mxu0 0
      %1355 = vmatprep.subr.bf16.mxu0 0
      %1356 = vmatpush1.bf16.msra.mxu0 0
      %1357 = vmatprep.subr.bf16.mxu0 0
      %1358 = vmatpush1.bf16.msra.mxu0 0
      %1359 = vmatprep.subr.bf16.mxu0 0
      %1360 = vmatpush1.bf16.msra.mxu0 0
      %1361 = vmatprep.subr.bf16.mxu0 0
      %1362 = vmatpush1.bf16.msra.mxu0 0
      %1363 = vmatprep.subr.bf16.mxu0 0
      %1364 = vmatpush1.bf16.msra.mxu0 0
      %1365 = vmatprep.subr.bf16.mxu0 0
      %1366 = vmatpush1.bf16.msra.mxu0 0
      %1367 = vmatprep.subr.bf16.mxu0 0
      %1368 = vmatpush1.bf16.msra.mxu0 0
      %1369 = vmatprep.subr.bf16.mxu0 0
      %1370 = vmatpush1.bf16.msra.mxu0 0
      %1371 = vmatprep.subr.bf16.mxu0 0
      %1372 = vmatpush1.bf16.msra.mxu0 0
      %1373 = vmatprep.subr.bf16.mxu0 0
      %1374 = vmatpush1.bf16.msra.mxu0 0
      %1375 = vmatprep.subr.bf16.mxu0 0
      %1376 = vmatpush1.bf16.msra.mxu0 0
      %1377 = vmatprep.subr.bf16.mxu0 0
      %1378 = vmatpush1.bf16.msra.mxu0 0
      %1379 = vmatprep.subr.bf16.mxu0 0
      %1380 = vmatpush1.bf16.msra.mxu0 0
      %1381 = vmatprep.subr.bf16.mxu0 0
      %1382 = vmatpush1.bf16.msra.mxu0 0
      %1383 = vmatprep.mubr.bf16.mxu0 0
      %1384 = vmatmul.mubr.bf16.gmra.mrb[0].mxu0 %v505
      %v1385 = vpop.f32.mrb[0].mxu0
      %v1386 = vadd.f32 0.0, %v1385
      %v1387 = vpop.f32.mrb[0].mxu0
      %v1388 = vadd.f32 0.0, %v1387
      %v1389 = vpop.f32.mrb[0].mxu0
      %v1390 = vadd.f32 0.0, %v1389
      %v1391 = vpop.f32.mrb[0].mxu0
      %v1392 = vadd.f32 0.0, %v1391
      %1393 = vmatprep.mubr.bf16.mxu0 0
      %1394 = vmatmul.mubr.bf16.gmra.mrb[0].mxu0 %v508
      %v1395 = vpop.f32.mrb[0].mxu0
      %v1396 = vadd.f32 0.0, %v1395
      %v1397 = vpop.f32.mrb[0].mxu0
      %v1398 = vadd.f32 0.0, %v1397
      %v1399 = vpop.f32.mrb[0].mxu0
      %v1400 = vadd.f32 0.0, %v1399
      %v1401 = vpop.f32.mrb[0].mxu0
      %v1402 = vadd.f32 0.0, %v1401
      %1403 = vmatprep.mubr.bf16.mxu0 0
      %1404 = vmatmul.mubr.bf16.gmra.mrb[0].mxu0 %v511
      %v1405 = vpop.f32.mrb[0].mxu0
      %v1406 = vadd.f32 0.0, %v1405
      %v1407 = vpop.f32.mrb[0].mxu0
      %v1408 = vadd.f32 0.0, %v1407
      %v1409 = vpop.f32.mrb[0].mxu0
      %v1410 = vadd.f32 0.0, %v1409
      %v1411 = vpop.f32.mrb[0].mxu0
      %v1412 = vadd.f32 0.0, %v1411
      %1413 = vmatprep.mubr.bf16.mxu0 0
      %1414 = vmatmul.mubr.bf16.gmra.mrb[0].mxu0 %v514
      %v1415 = vpop.f32.mrb[0].mxu0
      %v1416 = vadd.f32 0.0, %v1415
      %v1417 = vpop.f32.mrb[0].mxu0
      %v1418 = vadd.f32 0.0, %v1417
      %v1419 = vpop.f32.mrb[0].mxu0
      %v1420 = vadd.f32 0.0, %v1419
      %v1421 = vpop.f32.mrb[0].mxu0
      %v1422 = vadd.f32 0.0, %v1421
      %1423 = vdwg.mxu0
      %v1424 = vmul.f32 %v1386, %v1345
      %v1425 = vmul.f32 %v1388, %v1346
      %v1426 = vmul.f32 %v1390, %v1347
      %v1427 = vmul.f32 %v1392, %v1348
      %v1428 = vpack.c.bf16 %v1426, %v1424
      %v1429 = vpack.c.bf16 %v1427, %v1425
      %1430 = vst [vmem:[#allocation2 + $0x140] sm:$0xff] %v1428
      %1431 = vst [vmem:[#allocation2 + $0x148] sm:$0xff] %v1429
      %v1432 = vmul.f32 %v1396, %v1345
      %v1433 = vmul.f32 %v1398, %v1346
      %v1434 = vmul.f32 %v1400, %v1347
      %v1435 = vmul.f32 %v1402, %v1348
      %v1436 = vpack.c.bf16 %v1434, %v1432
      %v1437 = vpack.c.bf16 %v1435, %v1433
      %1438 = vst [vmem:[#allocation2 + $0x150] sm:$0xff] %v1436
      %1439 = vst [vmem:[#allocation2 + $0x158] sm:$0xff] %v1437
      %v1440 = vmul.f32 %v1406, %v1345
      %v1441 = vmul.f32 %v1408, %v1346
      %v1442 = vmul.f32 %v1410, %v1347
      %v1443 = vmul.f32 %v1412, %v1348
      %v1444 = vpack.c.bf16 %v1442, %v1440
      %v1445 = vpack.c.bf16 %v1443, %v1441
      %1446 = vst [vmem:[#allocation2 + $0x160] sm:$0xff] %v1444
      %1447 = vst [vmem:[#allocation2 + $0x168] sm:$0xff] %v1445
      %v1448 = vmul.f32 %v1416, %v1345
      %v1449 = vmul.f32 %v1418, %v1346
      %v1450 = vmul.f32 %v1420, %v1347
      %v1451 = vmul.f32 %v1422, %v1348
      %v1452 = vpack.c.bf16 %v1450, %v1448
      %v1453 = vpack.c.bf16 %v1451, %v1449
      %1454 = vst [vmem:[#allocation2 + $0x170] sm:$0xff] %v1452
      %1455 = vst [vmem:[#allocation2 + $0x178] sm:$0xff] %v1453
      %v1456 = vlaneseq
      %v1457 = vshrl.u32 %v1456, 7
      %v1458 = vsub.s32 6, %v1457
      %v1459 = vrot.slane %v388, %v1458
      %v1460 = vlaneseq
      %v1461 = vshrl.u32 %v1460, 7
      %v1462 = vsub.s32 6, %v1461
      %v1463 = vrot.slane %v389, %v1462
      %v1464 = vsub.f32 %v419, %v1459
      %v1465 = vsub.f32 %v419, %v1463
      %v1466 = vsub.f32 %v420, %v1459
      %v1467 = vsub.f32 %v420, %v1463
      %v1468 = vand.u32 2147483647, %v1464
      %v1469 = vand.u32 2147483647, %v1465
      %v1470 = vand.u32 2147483647, %v1466
      %v1471 = vand.u32 2147483647, %v1467
      %v1472 = vsub.f32 1.0, %v1468
      %v1473 = vsub.f32 1.0, %v1469
      %v1474 = vsub.f32 1.0, %v1470
      %v1475 = vsub.f32 1.0, %v1471
      %v1476 = vmax.f32 %v1472, 0.0
      %v1477 = vmax.f32 %v1473, 0.0
      %v1478 = vmax.f32 %v1474, 0.0
      %v1479 = vmax.f32 %v1475, 0.0
      %v1480 = vlaneseq
      %v1481 = vshrl.u32 %v1480, 7
      %v1482 = vsub.s32 7, %v1481
      %v1483 = vrot.slane %v392, %v1482
      %v1484 = vlaneseq
      %v1485 = vshrl.u32 %v1484, 7
      %v1486 = vsub.s32 7, %v1485
      %v1487 = vrot.slane %v393, %v1486
      %v1488 = vsub.f32 %v419, %v1483
      %v1489 = vsub.f32 %v419, %v1487
      %v1490 = vsub.f32 %v420, %v1483
      %v1491 = vsub.f32 %v420, %v1487
      %v1492 = vand.u32 2147483647, %v1488
      %v1493 = vand.u32 2147483647, %v1489
      %v1494 = vand.u32 2147483647, %v1490
      %v1495 = vand.u32 2147483647, %v1491
      %v1496 = vsub.f32 1.0, %v1492
      %v1497 = vsub.f32 1.0, %v1493
      %v1498 = vsub.f32 1.0, %v1494
      %v1499 = vsub.f32 1.0, %v1495
      %v1500 = vmax.f32 %v1496, 0.0
      %v1501 = vmax.f32 %v1497, 0.0
      %v1502 = vmax.f32 %v1498, 0.0
      %v1503 = vmax.f32 %v1499, 0.0
      %v1504 = vlaneseq
      %v1505 = vshrl.u32 %v1504, 7
      %v1506 = vsub.s32 0, %v1505
      %v1507 = vrot.slane %v414, %v1506
      %v1508 = vlaneseq
      %v1509 = vshrl.u32 %v1508, 7
      %v1510 = vsub.s32 0, %v1509
      %v1511 = vrot.slane %v415, %v1510
      %v1512 = vmul.f32 %v1500, %v1507
      %v1513 = vmul.f32 %v1501, %v1511
      %v1514 = vmul.f32 %v1502, %v1507
      %v1515 = vmul.f32 %v1503, %v1511
      %v1516 = vpack.c.bf16 %v1478, %v1476
      %v1517 = vpack.c.bf16 %v1479, %v1477
      %1518 = vmatprep.subr.bf16.mxu0 %v1517
      %1519 = vmatpush1.bf16.msra.mxu0 %v1516
      %1520 = vmatprep.subr.bf16.mxu0 0
      %1521 = vmatpush1.bf16.msra.mxu0 0
      %1522 = vmatprep.subr.bf16.mxu0 0
      %1523 = vmatpush1.bf16.msra.mxu0 0
      %1524 = vmatprep.subr.bf16.mxu0 0
      %1525 = vmatpush1.bf16.msra.mxu0 0
      %1526 = vmatprep.subr.bf16.mxu0 0
      %1527 = vmatpush1.bf16.msra.mxu0 0
      %1528 = vmatprep.subr.bf16.mxu0 0
      %1529 = vmatpush1.bf16.msra.mxu0 0
      %1530 = vmatprep.subr.bf16.mxu0 0
      %1531 = vmatpush1.bf16.msra.mxu0 0
      %1532 = vmatprep.subr.bf16.mxu0 0
      %1533 = vmatpush1.bf16.msra.mxu0 0
      %1534 = vmatprep.subr.bf16.mxu0 0
      %1535 = vmatpush1.bf16.msra.mxu0 0
      %1536 = vmatprep.subr.bf16.mxu0 0
      %1537 = vmatpush1.bf16.msra.mxu0 0
      %1538 = vmatprep.subr.bf16.mxu0 0
      %1539 = vmatpush1.bf16.msra.mxu0 0
      %1540 = vmatprep.subr.bf16.mxu0 0
      %1541 = vmatpush1.bf16.msra.mxu0 0
      %1542 = vmatprep.subr.bf16.mxu0 0
      %1543 = vmatpush1.bf16.msra.mxu0 0
      %1544 = vmatprep.subr.bf16.mxu0 0
      %1545 = vmatpush1.bf16.msra.mxu0 0
      %1546 = vmatprep.subr.bf16.mxu0 0
      %1547 = vmatpush1.bf16.msra.mxu0 0
      %1548 = vmatprep.subr.bf16.mxu0 0
      %1549 = vmatpush1.bf16.msra.mxu0 0
      %1550 = vmatprep.mubr.bf16.mxu0 0
      %1551 = vmatmul.mubr.bf16.gmra.mrb[0].mxu0 %v505
      %v1552 = vpop.f32.mrb[0].mxu0
      %v1553 = vadd.f32 0.0, %v1552
      %v1554 = vpop.f32.mrb[0].mxu0
      %v1555 = vadd.f32 0.0, %v1554
      %v1556 = vpop.f32.mrb[0].mxu0
      %v1557 = vadd.f32 0.0, %v1556
      %v1558 = vpop.f32.mrb[0].mxu0
      %v1559 = vadd.f32 0.0, %v1558
      %1560 = vmatprep.mubr.bf16.mxu0 0
      %1561 = vmatmul.mubr.bf16.gmra.mrb[0].mxu0 %v508
      %v1562 = vpop.f32.mrb[0].mxu0
      %v1563 = vadd.f32 0.0, %v1562
      %v1564 = vpop.f32.mrb[0].mxu0
      %v1565 = vadd.f32 0.0, %v1564
      %v1566 = vpop.f32.mrb[0].mxu0
      %v1567 = vadd.f32 0.0, %v1566
      %v1568 = vpop.f32.mrb[0].mxu0
      %v1569 = vadd.f32 0.0, %v1568
      %1570 = vmatprep.mubr.bf16.mxu0 0
      %1571 = vmatmul.mubr.bf16.gmra.mrb[0].mxu0 %v511
      %v1572 = vpop.f32.mrb[0].mxu0
      %v1573 = vadd.f32 0.0, %v1572
      %v1574 = vpop.f32.mrb[0].mxu0
      %v1575 = vadd.f32 0.0, %v1574
      %v1576 = vpop.f32.mrb[0].mxu0
      %v1577 = vadd.f32 0.0, %v1576
      %v1578 = vpop.f32.mrb[0].mxu0
      %v1579 = vadd.f32 0.0, %v1578
      %1580 = vmatprep.mubr.bf16.mxu0 0
      %1581 = vmatmul.mubr.bf16.gmra.mrb[0].mxu0 %v514
      %v1582 = vpop.f32.mrb[0].mxu0
      %v1583 = vadd.f32 0.0, %v1582
      %v1584 = vpop.f32.mrb[0].mxu0
      %v1585 = vadd.f32 0.0, %v1584
      %v1586 = vpop.f32.mrb[0].mxu0
      %v1587 = vadd.f32 0.0, %v1586
      %v1588 = vpop.f32.mrb[0].mxu0
      %v1589 = vadd.f32 0.0, %v1588
      %1590 = vdwg.mxu0
      %v1591 = vmul.f32 %v1553, %v1512
      %v1592 = vmul.f32 %v1555, %v1513
      %v1593 = vmul.f32 %v1557, %v1514
      %v1594 = vmul.f32 %v1559, %v1515
      %v1595 = vpack.c.bf16 %v1593, %v1591
      %v1596 = vpack.c.bf16 %v1594, %v1592
      %1597 = vst [vmem:[#allocation2 + $0x180] sm:$0xff] %v1595
      %1598 = vst [vmem:[#allocation2 + $0x188] sm:$0xff] %v1596
      %v1599 = vmul.f32 %v1563, %v1512
      %v1600 = vmul.f32 %v1565, %v1513
      %v1601 = vmul.f32 %v1567, %v1514
      %v1602 = vmul.f32 %v1569, %v1515
      %v1603 = vpack.c.bf16 %v1601, %v1599
      %v1604 = vpack.c.bf16 %v1602, %v1600
      %1605 = vst [vmem:[#allocation2 + $0x190] sm:$0xff] %v1603
      %1606 = vst [vmem:[#allocation2 + $0x198] sm:$0xff] %v1604
      %v1607 = vmul.f32 %v1573, %v1512
      %v1608 = vmul.f32 %v1575, %v1513
      %v1609 = vmul.f32 %v1577, %v1514
      %v1610 = vmul.f32 %v1579, %v1515
      %v1611 = vpack.c.bf16 %v1609, %v1607
      %v1612 = vpack.c.bf16 %v1610, %v1608
      %1613 = vst [vmem:[#allocation2 + $0x1a0] sm:$0xff] %v1611
      %1614 = vst [vmem:[#allocation2 + $0x1a8] sm:$0xff] %v1612
      %v1615 = vmul.f32 %v1583, %v1512
      %v1616 = vmul.f32 %v1585, %v1513
      %v1617 = vmul.f32 %v1587, %v1514
      %v1618 = vmul.f32 %v1589, %v1515
      %v1619 = vpack.c.bf16 %v1617, %v1615
      %v1620 = vpack.c.bf16 %v1618, %v1616
      %1621 = vst [vmem:[#allocation2 + $0x1b0] sm:$0xff] %v1619
      %1622 = vst [vmem:[#allocation2 + $0x1b8] sm:$0xff] %v1620
      %v1623 = vlaneseq
      %v1624 = vshrl.u32 %v1623, 7
      %v1625 = vsub.s32 7, %v1624
      %v1626 = vrot.slane %v388, %v1625
      %v1627 = vlaneseq
      %v1628 = vshrl.u32 %v1627, 7
      %v1629 = vsub.s32 7, %v1628
      %v1630 = vrot.slane %v389, %v1629
      %v1631 = vsub.f32 %v419, %v1626
      %v1632 = vsub.f32 %v419, %v1630
      %v1633 = vsub.f32 %v420, %v1626
      %v1634 = vsub.f32 %v420, %v1630
      %v1635 = vand.u32 2147483647, %v1631
      %v1636 = vand.u32 2147483647, %v1632
      %v1637 = vand.u32 2147483647, %v1633
      %v1638 = vand.u32 2147483647, %v1634
      %v1639 = vsub.f32 1.0, %v1635
      %v1640 = vsub.f32 1.0, %v1636
      %v1641 = vsub.f32 1.0, %v1637
      %v1642 = vsub.f32 1.0, %v1638
      %v1643 = vmax.f32 %v1639, 0.0
      %v1644 = vmax.f32 %v1640, 0.0
      %v1645 = vmax.f32 %v1641, 0.0
      %v1646 = vmax.f32 %v1642, 0.0
      %v1647 = vlaneseq
      %v1648 = vshrl.u32 %v1647, 7
      %v1649 = vsub.s32 0, %v1648
      %v1650 = vrot.slane %v394, %v1649
      %v1651 = vlaneseq
      %v1652 = vshrl.u32 %v1651, 7
      %v1653 = vsub.s32 0, %v1652
      %v1654 = vrot.slane %v395, %v1653
      %v1655 = vsub.f32 %v419, %v1650
      %v1656 = vsub.f32 %v419, %v1654
      %v1657 = vsub.f32 %v420, %v1650
      %v1658 = vsub.f32 %v420, %v1654
      %v1659 = vand.u32 2147483647, %v1655
      %v1660 = vand.u32 2147483647, %v1656
      %v1661 = vand.u32 2147483647, %v1657
      %v1662 = vand.u32 2147483647, %v1658
      %v1663 = vsub.f32 1.0, %v1659
      %v1664 = vsub.f32 1.0, %v1660
      %v1665 = vsub.f32 1.0, %v1661
      %v1666 = vsub.f32 1.0, %v1662
      %v1667 = vmax.f32 %v1663, 0.0
      %v1668 = vmax.f32 %v1664, 0.0
      %v1669 = vmax.f32 %v1665, 0.0
      %v1670 = vmax.f32 %v1666, 0.0
      %v1671 = vlaneseq
      %v1672 = vshrl.u32 %v1671, 7
      %v1673 = vsub.s32 1, %v1672
      %v1674 = vrot.slane %v414, %v1673
      %v1675 = vlaneseq
      %v1676 = vshrl.u32 %v1675, 7
      %v1677 = vsub.s32 1, %v1676
      %v1678 = vrot.slane %v415, %v1677
      %v1679 = vmul.f32 %v1667, %v1674
      %v1680 = vmul.f32 %v1668, %v1678
      %v1681 = vmul.f32 %v1669, %v1674
      %v1682 = vmul.f32 %v1670, %v1678
      %v1683 = vpack.c.bf16 %v1645, %v1643
      %v1684 = vpack.c.bf16 %v1646, %v1644
      %1685 = vmatprep.subr.bf16.mxu0 %v1684
      %1686 = vmatpush1.bf16.msra.mxu0 %v1683
      %1687 = vmatprep.subr.bf16.mxu0 0
      %1688 = vmatpush1.bf16.msra.mxu0 0
      %1689 = vmatprep.subr.bf16.mxu0 0
      %1690 = vmatpush1.bf16.msra.mxu0 0
      %1691 = vmatprep.subr.bf16.mxu0 0
      %1692 = vmatpush1.bf16.msra.mxu0 0
      %1693 = vmatprep.subr.bf16.mxu0 0
      %1694 = vmatpush1.bf16.msra.mxu0 0
      %1695 = vmatprep.subr.bf16.mxu0 0
      %1696 = vmatpush1.bf16.msra.mxu0 0
      %1697 = vmatprep.subr.bf16.mxu0 0
      %1698 = vmatpush1.bf16.msra.mxu0 0
      %1699 = vmatprep.subr.bf16.mxu0 0
      %1700 = vmatpush1.bf16.msra.mxu0 0
      %1701 = vmatprep.subr.bf16.mxu0 0
      %1702 = vmatpush1.bf16.msra.mxu0 0
      %1703 = vmatprep.subr.bf16.mxu0 0
      %1704 = vmatpush1.bf16.msra.mxu0 0
      %1705 = vmatprep.subr.bf16.mxu0 0
      %1706 = vmatpush1.bf16.msra.mxu0 0
      %1707 = vmatprep.subr.bf16.mxu0 0
      %1708 = vmatpush1.bf16.msra.mxu0 0
      %1709 = vmatprep.subr.bf16.mxu0 0
      %1710 = vmatpush1.bf16.msra.mxu0 0
      %1711 = vmatprep.subr.bf16.mxu0 0
      %1712 = vmatpush1.bf16.msra.mxu0 0
      %1713 = vmatprep.subr.bf16.mxu0 0
      %1714 = vmatpush1.bf16.msra.mxu0 0
      %1715 = vmatprep.subr.bf16.mxu0 0
      %1716 = vmatpush1.bf16.msra.mxu0 0
      %1717 = vmatprep.mubr.bf16.mxu0 0
      %1718 = vmatmul.mubr.bf16.gmra.mrb[0].mxu0 %v505
      %v1719 = vpop.f32.mrb[0].mxu0
      %v1720 = vadd.f32 0.0, %v1719
      %v1721 = vpop.f32.mrb[0].mxu0
      %v1722 = vadd.f32 0.0, %v1721
      %v1723 = vpop.f32.mrb[0].mxu0
      %v1724 = vadd.f32 0.0, %v1723
      %v1725 = vpop.f32.mrb[0].mxu0
      %v1726 = vadd.f32 0.0, %v1725
      %1727 = vmatprep.mubr.bf16.mxu0 0
      %1728 = vmatmul.mubr.bf16.gmra.mrb[0].mxu0 %v508
      %v1729 = vpop.f32.mrb[0].mxu0
      %v1730 = vadd.f32 0.0, %v1729
      %v1731 = vpop.f32.mrb[0].mxu0
      %v1732 = vadd.f32 0.0, %v1731
      %v1733 = vpop.f32.mrb[0].mxu0
      %v1734 = vadd.f32 0.0, %v1733
      %v1735 = vpop.f32.mrb[0].mxu0
      %v1736 = vadd.f32 0.0, %v1735
      %1737 = vmatprep.mubr.bf16.mxu0 0
      %1738 = vmatmul.mubr.bf16.gmra.mrb[0].mxu0 %v511
      %v1739 = vpop.f32.mrb[0].mxu0
      %v1740 = vadd.f32 0.0, %v1739
      %v1741 = vpop.f32.mrb[0].mxu0
      %v1742 = vadd.f32 0.0, %v1741
      %v1743 = vpop.f32.mrb[0].mxu0
      %v1744 = vadd.f32 0.0, %v1743
      %v1745 = vpop.f32.mrb[0].mxu0
      %v1746 = vadd.f32 0.0, %v1745
      %1747 = vmatprep.mubr.bf16.mxu0 0
      %1748 = vmatmul.mubr.bf16.gmra.mrb[0].mxu0 %v514
      %v1749 = vpop.f32.mrb[0].mxu0
      %v1750 = vadd.f32 0.0, %v1749
      %v1751 = vpop.f32.mrb[0].mxu0
      %v1752 = vadd.f32 0.0, %v1751
      %v1753 = vpop.f32.mrb[0].mxu0
      %v1754 = vadd.f32 0.0, %v1753
      %v1755 = vpop.f32.mrb[0].mxu0
      %v1756 = vadd.f32 0.0, %v1755
      %1757 = vdwg.mxu0
      %v1758 = vmul.f32 %v1720, %v1679
      %v1759 = vmul.f32 %v1722, %v1680
      %v1760 = vmul.f32 %v1724, %v1681
      %v1761 = vmul.f32 %v1726, %v1682
      %v1762 = vpack.c.bf16 %v1760, %v1758
      %v1763 = vpack.c.bf16 %v1761, %v1759
      %1764 = vst [vmem:[#allocation2 + $0x1c0] sm:$0xff] %v1762
      %1765 = vst [vmem:[#allocation2 + $0x1c8] sm:$0xff] %v1763
      %v1766 = vmul.f32 %v1730, %v1679
      %v1767 = vmul.f32 %v1732, %v1680
      %v1768 = vmul.f32 %v1734, %v1681
      %v1769 = vmul.f32 %v1736, %v1682
      %v1770 = vpack.c.bf16 %v1768, %v1766
      %v1771 = vpack.c.bf16 %v1769, %v1767
      %1772 = vst [vmem:[#allocation2 + $0x1d0] sm:$0xff] %v1770
      %1773 = vst [vmem:[#allocation2 + $0x1d8] sm:$0xff] %v1771
      %v1774 = vmul.f32 %v1740, %v1679
      %v1775 = vmul.f32 %v1742, %v1680
      %v1776 = vmul.f32 %v1744, %v1681
      %v1777 = vmul.f32 %v1746, %v1682
      %v1778 = vpack.c.bf16 %v1776, %v1774
      %v1779 = vpack.c.bf16 %v1777, %v1775
      %1780 = vst [vmem:[#allocation2 + $0x1e0] sm:$0xff] %v1778
      %1781 = vst [vmem:[#allocation2 + $0x1e8] sm:$0xff] %v1779
      %v1782 = vmul.f32 %v1750, %v1679
      %v1783 = vmul.f32 %v1752, %v1680
      %v1784 = vmul.f32 %v1754, %v1681
      %v1785 = vmul.f32 %v1756, %v1682
      %v1786 = vpack.c.bf16 %v1784, %v1782
      %v1787 = vpack.c.bf16 %v1785, %v1783
      %1788 = vst [vmem:[#allocation2 + $0x1f0] sm:$0xff] %v1786
      %1789 = vst [vmem:[#allocation2 + $0x1f8] sm:$0xff] %v1787
      %v1790 = vlaneseq
      %v1791 = vshrl.u32 %v1790, 7
      %v1792 = vsub.s32 0, %v1791
      %v1793 = vrot.slane %v390, %v1792
      %v1794 = vlaneseq
      %v1795 = vshrl.u32 %v1794, 7
      %v1796 = vsub.s32 0, %v1795
      %v1797 = vrot.slane %v391, %v1796
      %v1798 = vsub.f32 %v419, %v1793
      %v1799 = vsub.f32 %v419, %v1797
      %v1800 = vsub.f32 %v420, %v1793
      %v1801 = vsub.f32 %v420, %v1797
      %v1802 = vand.u32 2147483647, %v1798
      %v1803 = vand.u32 2147483647, %v1799
      %v1804 = vand.u32 2147483647, %v1800
      %v1805 = vand.u32 2147483647, %v1801
      %v1806 = vsub.f32 1.0, %v1802
      %v1807 = vsub.f32 1.0, %v1803
      %v1808 = vsub.f32 1.0, %v1804
      %v1809 = vsub.f32 1.0, %v1805
      %v1810 = vmax.f32 %v1806, 0.0
      %v1811 = vmax.f32 %v1807, 0.0
      %v1812 = vmax.f32 %v1808, 0.0
      %v1813 = vmax.f32 %v1809, 0.0
      %v1814 = vlaneseq
      %v1815 = vshrl.u32 %v1814, 7
      %v1816 = vsub.s32 1, %v1815
      %v1817 = vrot.slane %v394, %v1816
      %v1818 = vlaneseq
      %v1819 = vshrl.u32 %v1818, 7
      %v1820 = vsub.s32 1, %v1819
      %v1821 = vrot.slane %v395, %v1820
      %v1822 = vsub.f32 %v419, %v1817
      %v1823 = vsub.f32 %v419, %v1821
      %v1824 = vsub.f32 %v420, %v1817
      %v1825 = vsub.f32 %v420, %v1821
      %v1826 = vand.u32 2147483647, %v1822
      %v1827 = vand.u32 2147483647, %v1823
      %v1828 = vand.u32 2147483647, %v1824
      %v1829 = vand.u32 2147483647, %v1825
      %v1830 = vsub.f32 1.0, %v1826
      %v1831 = vsub.f32 1.0, %v1827
      %v1832 = vsub.f32 1.0, %v1828
      %v1833 = vsub.f32 1.0, %v1829
      %v1834 = vmax.f32 %v1830, 0.0
      %v1835 = vmax.f32 %v1831, 0.0
      %v1836 = vmax.f32 %v1832, 0.0
      %v1837 = vmax.f32 %v1833, 0.0
      %v1838 = vlaneseq
      %v1839 = vshrl.u32 %v1838, 7
      %v1840 = vsub.s32 2, %v1839
      %v1841 = vrot.slane %v414, %v1840
      %v1842 = vlaneseq
      %v1843 = vshrl.u32 %v1842, 7
      %v1844 = vsub.s32 2, %v1843
      %v1845 = vrot.slane %v415, %v1844
      %v1846 = vmul.f32 %v1834, %v1841
      %v1847 = vmul.f32 %v1835, %v1845
      %v1848 = vmul.f32 %v1836, %v1841
      %v1849 = vmul.f32 %v1837, %v1845
      %v1850 = vpack.c.bf16 %v1812, %v1810
      %v1851 = vpack.c.bf16 %v1813, %v1811
      %1852 = vmatprep.subr.bf16.mxu0 %v1851
      %1853 = vmatpush1.bf16.msra.mxu0 %v1850
      %1854 = vmatprep.subr.bf16.mxu0 0
      %1855 = vmatpush1.bf16.msra.mxu0 0
      %1856 = vmatprep.subr.bf16.mxu0 0
      %1857 = vmatpush1.bf16.msra.mxu0 0
      %1858 = vmatprep.subr.bf16.mxu0 0
      %1859 = vmatpush1.bf16.msra.mxu0 0
      %1860 = vmatprep.subr.bf16.mxu0 0
      %1861 = vmatpush1.bf16.msra.mxu0 0
      %1862 = vmatprep.subr.bf16.mxu0 0
      %1863 = vmatpush1.bf16.msra.mxu0 0
      %1864 = vmatprep.subr.bf16.mxu0 0
      %1865 = vmatpush1.bf16.msra.mxu0 0
      %1866 = vmatprep.subr.bf16.mxu0 0
      %1867 = vmatpush1.bf16.msra.mxu0 0
      %1868 = vmatprep.subr.bf16.mxu0 0
      %1869 = vmatpush1.bf16.msra.mxu0 0
      %1870 = vmatprep.subr.bf16.mxu0 0
      %1871 = vmatpush1.bf16.msra.mxu0 0
      %1872 = vmatprep.subr.bf16.mxu0 0
      %1873 = vmatpush1.bf16.msra.mxu0 0
      %1874 = vmatprep.subr.bf16.mxu0 0
      %1875 = vmatpush1.bf16.msra.mxu0 0
      %1876 = vmatprep.subr.bf16.mxu0 0
      %1877 = vmatpush1.bf16.msra.mxu0 0
      %1878 = vmatprep.subr.bf16.mxu0 0
      %1879 = vmatpush1.bf16.msra.mxu0 0
      %1880 = vmatprep.subr.bf16.mxu0 0
      %1881 = vmatpush1.bf16.msra.mxu0 0
      %1882 = vmatprep.subr.bf16.mxu0 0
      %1883 = vmatpush1.bf16.msra.mxu0 0
      %1884 = vmatprep.mubr.bf16.mxu0 0
      %1885 = vmatmul.mubr.bf16.gmra.mrb[0].mxu0 %v505
      %v1886 = vpop.f32.mrb[0].mxu0
      %v1887 = vadd.f32 0.0, %v1886
      %v1888 = vpop.f32.mrb[0].mxu0
      %v1889 = vadd.f32 0.0, %v1888
      %v1890 = vpop.f32.mrb[0].mxu0
      %v1891 = vadd.f32 0.0, %v1890
      %v1892 = vpop.f32.mrb[0].mxu0
      %v1893 = vadd.f32 0.0, %v1892
      %1894 = vmatprep.mubr.bf16.mxu0 0
      %1895 = vmatmul.mubr.bf16.gmra.mrb[0].mxu0 %v508
      %v1896 = vpop.f32.mrb[0].mxu0
      %v1897 = vadd.f32 0.0, %v1896
      %v1898 = vpop.f32.mrb[0].mxu0
      %v1899 = vadd.f32 0.0, %v1898
      %v1900 = vpop.f32.mrb[0].mxu0
      %v1901 = vadd.f32 0.0, %v1900
      %v1902 = vpop.f32.mrb[0].mxu0
      %v1903 = vadd.f32 0.0, %v1902
      %1904 = vmatprep.mubr.bf16.mxu0 0
      %1905 = vmatmul.mubr.bf16.gmra.mrb[0].mxu0 %v511
      %v1906 = vpop.f32.mrb[0].mxu0
      %v1907 = vadd.f32 0.0, %v1906
      %v1908 = vpop.f32.mrb[0].mxu0
      %v1909 = vadd.f32 0.0, %v1908
      %v1910 = vpop.f32.mrb[0].mxu0
      %v1911 = vadd.f32 0.0, %v1910
      %v1912 = vpop.f32.mrb[0].mxu0
      %v1913 = vadd.f32 0.0, %v1912
      %1914 = vmatprep.mubr.bf16.mxu0 0
      %1915 = vmatmul.mubr.bf16.gmra.mrb[0].mxu0 %v514
      %v1916 = vpop.f32.mrb[0].mxu0
      %v1917 = vadd.f32 0.0, %v1916
      %v1918 = vpop.f32.mrb[0].mxu0
      %v1919 = vadd.f32 0.0, %v1918
      %v1920 = vpop.f32.mrb[0].mxu0
      %v1921 = vadd.f32 0.0, %v1920
      %v1922 = vpop.f32.mrb[0].mxu0
      %v1923 = vadd.f32 0.0, %v1922
      %1924 = vdwg.mxu0
      %v1925 = vmul.f32 %v1887, %v1846
      %v1926 = vmul.f32 %v1889, %v1847
      %v1927 = vmul.f32 %v1891, %v1848
      %v1928 = vmul.f32 %v1893, %v1849
      %v1929 = vpack.c.bf16 %v1927, %v1925
      %v1930 = vpack.c.bf16 %v1928, %v1926
      %1931 = vst [vmem:[#allocation2 + $0x200] sm:$0xff] %v1929
      %1932 = vst [vmem:[#allocation2 + $0x208] sm:$0xff] %v1930
      %v1933 = vmul.f32 %v1897, %v1846
      %v1934 = vmul.f32 %v1899, %v1847
      %v1935 = vmul.f32 %v1901, %v1848
      %v1936 = vmul.f32 %v1903, %v1849
      %v1937 = vpack.c.bf16 %v1935, %v1933
      %v1938 = vpack.c.bf16 %v1936, %v1934
      %1939 = vst [vmem:[#allocation2 + $0x210] sm:$0xff] %v1937
      %1940 = vst [vmem:[#allocation2 + $0x218] sm:$0xff] %v1938
      %v1941 = vmul.f32 %v1907, %v1846
      %v1942 = vmul.f32 %v1909, %v1847
      %v1943 = vmul.f32 %v1911, %v1848
      %v1944 = vmul.f32 %v1913, %v1849
      %v1945 = vpack.c.bf16 %v1943, %v1941
      %v1946 = vpack.c.bf16 %v1944, %v1942
      %1947 = vst [vmem:[#allocation2 + $0x220] sm:$0xff] %v1945
      %1948 = vst [vmem:[#allocation2 + $0x228] sm:$0xff] %v1946
      %v1949 = vmul.f32 %v1917, %v1846
      %v1950 = vmul.f32 %v1919, %v1847
      %v1951 = vmul.f32 %v1921, %v1848
      %v1952 = vmul.f32 %v1923, %v1849
      %v1953 = vpack.c.bf16 %v1951, %v1949
      %v1954 = vpack.c.bf16 %v1952, %v1950
      %1955 = vst [vmem:[#allocation2 + $0x230] sm:$0xff] %v1953
      %1956 = vst [vmem:[#allocation2 + $0x238] sm:$0xff] %v1954
      %v1957 = vld [vmem:[%s3] sm:$0xff]
      %v1958 = vld [vmem:[%s3 + $0x8] sm:$0xff]
      %v1959 = vld [vmem:[%s3 + $0x10] sm:$0xf]
      %v1960 = vld [vmem:[#allocation2] sm:$0xff]
      %v1961 = vld [vmem:[#allocation2 + $0x8] sm:$0xff]
      %v1962 = vld [vmem:[#allocation2 + $0x10] sm:$0xff]
      %v1963 = vld [vmem:[#allocation2 + $0x18] sm:$0xff]
      %v1964 = vld [vmem:[#allocation2 + $0x20] sm:$0xff]
      %v1965 = vld [vmem:[#allocation2 + $0x28] sm:$0xff]
      %v1966 = vld [vmem:[#allocation2 + $0x30] sm:$0xff]
      %v1967 = vld [vmem:[#allocation2 + $0x38] sm:$0xff]
      %v1968 = vld [vmem:[#allocation2 + $0x40] sm:$0xff]
      %v1969 = vld [vmem:[#allocation2 + $0x48] sm:$0xff]
      %v1970 = vld [vmem:[#allocation2 + $0x50] sm:$0xff]
      %v1971 = vld [vmem:[#allocation2 + $0x58] sm:$0xff]
      %v1972 = vld [vmem:[#allocation2 + $0x60] sm:$0xff]
      %v1973 = vld [vmem:[#allocation2 + $0x68] sm:$0xff]
      %v1974 = vld [vmem:[#allocation2 + $0x70] sm:$0xff]
      %v1975 = vld [vmem:[#allocation2 + $0x78] sm:$0xff]
      %v1976 = vld [vmem:[#allocation2 + $0x80] sm:$0xff]
      %v1977 = vld [vmem:[#allocation2 + $0x88] sm:$0xff]
      %v1978 = vld [vmem:[#allocation2 + $0x90] sm:$0xff]
      %v1979 = vld [vmem:[#allocation2 + $0x98] sm:$0xff]
      %v1980 = vld [vmem:[#allocation2 + $0xa0] sm:$0xff]
      %v1981 = vld [vmem:[#allocation2 + $0xa8] sm:$0xff]
      %v1982 = vld [vmem:[#allocation2 + $0xb0] sm:$0xff]
      %v1983 = vld [vmem:[#allocation2 + $0xb8] sm:$0xff]
      %v1984 = vld [vmem:[#allocation2 + $0xc0] sm:$0xff]
      %v1985 = vld [vmem:[#allocation2 + $0xc8] sm:$0xff]
      %v1986 = vld [vmem:[#allocation2 + $0xd0] sm:$0xff]
      %v1987 = vld [vmem:[#allocation2 + $0xd8] sm:$0xff]
      %v1988 = vld [vmem:[#allocation2 + $0xe0] sm:$0xff]
      %v1989 = vld [vmem:[#allocation2 + $0xe8] sm:$0xff]
      %v1990 = vld [vmem:[#allocation2 + $0xf0] sm:$0xff]
      %v1991 = vld [vmem:[#allocation2 + $0xf8] sm:$0xff]
      %v1992 = vld [vmem:[#allocation2 + $0x100] sm:$0xff]
      %v1993 = vld [vmem:[#allocation2 + $0x108] sm:$0xff]
      %v1994 = vld [vmem:[#allocation2 + $0x110] sm:$0xff]
      %v1995 = vld [vmem:[#allocation2 + $0x118] sm:$0xff]
      %v1996 = vld [vmem:[#allocation2 + $0x120] sm:$0xff]
      %v1997 = vld [vmem:[#allocation2 + $0x128] sm:$0xff]
      %v1998 = vld [vmem:[#allocation2 + $0x130] sm:$0xff]
      %v1999 = vld [vmem:[#allocation2 + $0x138] sm:$0xff]
      %v2000 = vld [vmem:[#allocation2 + $0x140] sm:$0xff]
      %v2001 = vld [vmem:[#allocation2 + $0x148] sm:$0xff]
      %v2002 = vld [vmem:[#allocation2 + $0x150] sm:$0xff]
      %v2003 = vld [vmem:[#allocation2 + $0x158] sm:$0xff]
      %v2004 = vld [vmem:[#allocation2 + $0x160] sm:$0xff]
      %v2005 = vld [vmem:[#allocation2 + $0x168] sm:$0xff]
      %v2006 = vld [vmem:[#allocation2 + $0x170] sm:$0xff]
      %v2007 = vld [vmem:[#allocation2 + $0x178] sm:$0xff]
      %v2008 = vld [vmem:[#allocation2 + $0x180] sm:$0xff]
      %v2009 = vld [vmem:[#allocation2 + $0x188] sm:$0xff]
      %v2010 = vld [vmem:[#allocation2 + $0x190] sm:$0xff]
      %v2011 = vld [vmem:[#allocation2 + $0x198] sm:$0xff]
      %v2012 = vld [vmem:[#allocation2 + $0x1a0] sm:$0xff]
      %v2013 = vld [vmem:[#allocation2 + $0x1a8] sm:$0xff]
      %v2014 = vld [vmem:[#allocation2 + $0x1b0] sm:$0xff]
      %v2015 = vld [vmem:[#allocation2 + $0x1b8] sm:$0xff]
      %v2016 = vld [vmem:[#allocation2 + $0x1c0] sm:$0xff]
      %v2017 = vld [vmem:[#allocation2 + $0x1c8] sm:$0xff]
      %v2018 = vld [vmem:[#allocation2 + $0x1d0] sm:$0xff]
      %v2019 = vld [vmem:[#allocation2 + $0x1d8] sm:$0xff]
      %v2020 = vld [vmem:[#allocation2 + $0x1e0] sm:$0xff]
      %v2021 = vld [vmem:[#allocation2 + $0x1e8] sm:$0xff]
      %v2022 = vld [vmem:[#allocation2 + $0x1f0] sm:$0xff]
      %v2023 = vld [vmem:[#allocation2 + $0x1f8] sm:$0xff]
      %v2024 = vld [vmem:[#allocation2 + $0x200] sm:$0xff]
      %v2025 = vld [vmem:[#allocation2 + $0x208] sm:$0xff]
      %v2026 = vld [vmem:[#allocation2 + $0x210] sm:$0xff]
      %v2027 = vld [vmem:[#allocation2 + $0x218] sm:$0xff]
      %v2028 = vld [vmem:[#allocation2 + $0x220] sm:$0xff]
      %v2029 = vld [vmem:[#allocation2 + $0x228] sm:$0xff]
      %v2030 = vld [vmem:[#allocation2 + $0x230] sm:$0xff]
      %v2031 = vld [vmem:[#allocation2 + $0x238] sm:$0xff]
      %v2035 = vunpack.c.l.b16 %v1957
      %v2036 = vunpack.c.h.b16 %v1957
      %v2037 = vunpack.c.l.b16 %v1958
      %v2038 = vunpack.c.h.b16 %v1958
      %v2039 = vunpack.c.l.b16 %v1959
      %v2040 = vpack.c.b16 %v2035, %v2035
      %v2041 = vpack.c.b16 %v2036, %v2036
      %v2042 = vpack.c.b16 %v2037, %v2037
      %v2043 = vpack.c.b16 %v2038, %v2038
      %v2044 = vpack.c.b16 %v2039, %v2039
      %vm2049 = vcmask 523264
      %v2051 = vsel %vm2049, %v2044, 0
      %2053 = vmatprep.subr.bf16.mxu0 %v1961
      %2054 = vmatpush1.bf16.msra.mxu0 %v1960
      %2055 = vmatprep.subr.bf16.mxu0 %v1963
      %2056 = vmatpush1.bf16.msra.mxu0 %v1962
      %2057 = vmatprep.subr.bf16.mxu0 %v1965
      %2058 = vmatpush1.bf16.msra.mxu0 %v1964
      %2059 = vmatprep.subr.bf16.mxu0 %v1967
      %2060 = vmatpush1.bf16.msra.mxu0 %v1966
      %2061 = vmatprep.subr.bf16.mxu0 %v1969
      %2062 = vmatpush1.bf16.msra.mxu0 %v1968
      %2063 = vmatprep.subr.bf16.mxu0 %v1971
      %2064 = vmatpush1.bf16.msra.mxu0 %v1970
      %2065 = vmatprep.subr.bf16.mxu0 %v1973
      %2066 = vmatpush1.bf16.msra.mxu0 %v1972
      %2067 = vmatprep.subr.bf16.mxu0 %v1975
      %2068 = vmatpush1.bf16.msra.mxu0 %v1974
      %2069 = vmatprep.subr.bf16.mxu0 %v1977
      %2070 = vmatpush1.bf16.msra.mxu0 %v1976
      %2071 = vmatprep.subr.bf16.mxu0 %v1979
      %2072 = vmatpush1.bf16.msra.mxu0 %v1978
      %2073 = vmatprep.subr.bf16.mxu0 %v1981
      %2074 = vmatpush1.bf16.msra.mxu0 %v1980
      %2075 = vmatprep.subr.bf16.mxu0 %v1983
      %2076 = vmatpush1.bf16.msra.mxu0 %v1982
      %2077 = vmatprep.subr.bf16.mxu0 %v1985
      %2078 = vmatpush1.bf16.msra.mxu0 %v1984
      %2079 = vmatprep.subr.bf16.mxu0 %v1987
      %2080 = vmatpush1.bf16.msra.mxu0 %v1986
      %2081 = vmatprep.subr.bf16.mxu0 %v1989
      %2082 = vmatpush1.bf16.msra.mxu0 %v1988
      %2083 = vmatprep.subr.bf16.mxu0 %v1991
      %2084 = vmatpush1.bf16.msra.mxu0 %v1990
      %2085 = vmatprep.mubr.bf16.mxu0 %v2041
      %2086 = vmatmul.mubr.bf16.gmra.mrb[0].mxu0 %v2040
      %v2087 = vpop.f32.mrb[0].mxu0
      %v2088 = vadd.f32 0.0, %v2087
      %v2089 = vpop.f32.mrb[0].mxu0
      %v2090 = vadd.f32 0.0, %v2089
      %v2091 = vpop.f32.mrb[0].mxu0
      %v2092 = vpop.f32.mrb[0].mxu0
      %2093 = vdwg.mxu0
      %2094 = vmatprep.subr.bf16.mxu0 %v1993
      %2095 = vmatpush1.bf16.msra.mxu0 %v1992
      %2096 = vmatprep.subr.bf16.mxu0 %v1995
      %2097 = vmatpush1.bf16.msra.mxu0 %v1994
      %2098 = vmatprep.subr.bf16.mxu0 %v1997
      %2099 = vmatpush1.bf16.msra.mxu0 %v1996
      %2100 = vmatprep.subr.bf16.mxu0 %v1999
      %2101 = vmatpush1.bf16.msra.mxu0 %v1998
      %2102 = vmatprep.subr.bf16.mxu0 %v2001
      %2103 = vmatpush1.bf16.msra.mxu0 %v2000
      %2104 = vmatprep.subr.bf16.mxu0 %v2003
      %2105 = vmatpush1.bf16.msra.mxu0 %v2002
      %2106 = vmatprep.subr.bf16.mxu0 %v2005
      %2107 = vmatpush1.bf16.msra.mxu0 %v2004
      %2108 = vmatprep.subr.bf16.mxu0 %v2007
      %2109 = vmatpush1.bf16.msra.mxu0 %v2006
      %2110 = vmatprep.subr.bf16.mxu0 %v2009
      %2111 = vmatpush1.bf16.msra.mxu0 %v2008
      %2112 = vmatprep.subr.bf16.mxu0 %v2011
      %2113 = vmatpush1.bf16.msra.mxu0 %v2010
      %2114 = vmatprep.subr.bf16.mxu0 %v2013
      %2115 = vmatpush1.bf16.msra.mxu0 %v2012
      %2116 = vmatprep.subr.bf16.mxu0 %v2015
      %2117 = vmatpush1.bf16.msra.mxu0 %v2014
      %2118 = vmatprep.subr.bf16.mxu0 %v2017
      %2119 = vmatpush1.bf16.msra.mxu0 %v2016
      %2120 = vmatprep.subr.bf16.mxu0 %v2019
      %2121 = vmatpush1.bf16.msra.mxu0 %v2018
      %2122 = vmatprep.subr.bf16.mxu0 %v2021
      %2123 = vmatpush1.bf16.msra.mxu0 %v2020
      %2124 = vmatprep.subr.bf16.mxu0 %v2023
      %2125 = vmatpush1.bf16.msra.mxu0 %v2022
      %2126 = vmatprep.mubr.bf16.mxu0 %v2043
      %2127 = vmatmul.mubr.bf16.gmra.mrb[0].mxu0 %v2042
      %v2128 = vpop.f32.mrb[0].mxu0
      %v2129 = vadd.f32 %v2088, %v2128
      %v2130 = vpop.f32.mrb[0].mxu0
      %v2131 = vadd.f32 %v2090, %v2130
      %v2132 = vpop.f32.mrb[0].mxu0
      %v2133 = vpop.f32.mrb[0].mxu0
      %2134 = vdwg.mxu0
      %2135 = vmatprep.subr.bf16.mxu0 %v2025
      %2136 = vmatpush1.bf16.msra.mxu0 %v2024
      %2137 = vmatprep.subr.bf16.mxu0 %v2027
      %2138 = vmatpush1.bf16.msra.mxu0 %v2026
      %2139 = vmatprep.subr.bf16.mxu0 %v2029
      %2140 = vmatpush1.bf16.msra.mxu0 %v2028
      %2141 = vmatprep.subr.bf16.mxu0 %v2031
      %2142 = vmatpush1.bf16.msra.mxu0 %v2030
      %2143 = vmatprep.subr.bf16.mxu0 0
      %2144 = vmatpush1.bf16.msra.mxu0 0
      %2145 = vmatprep.subr.bf16.mxu0 0
      %2146 = vmatpush1.bf16.msra.mxu0 0
      %2147 = vmatprep.subr.bf16.mxu0 0
      %2148 = vmatpush1.bf16.msra.mxu0 0
      %2149 = vmatprep.subr.bf16.mxu0 0
      %2150 = vmatpush1.bf16.msra.mxu0 0
      %2151 = vmatprep.subr.bf16.mxu0 0
      %2152 = vmatpush1.bf16.msra.mxu0 0
      %2153 = vmatprep.subr.bf16.mxu0 0
      %2154 = vmatpush1.bf16.msra.mxu0 0
      %2155 = vmatprep.subr.bf16.mxu0 0
      %2156 = vmatpush1.bf16.msra.mxu0 0
      %2157 = vmatprep.subr.bf16.mxu0 0
      %2158 = vmatpush1.bf16.msra.mxu0 0
      %2159 = vmatprep.subr.bf16.mxu0 0
      %2160 = vmatpush1.bf16.msra.mxu0 0
      %2161 = vmatprep.subr.bf16.mxu0 0
      %2162 = vmatpush1.bf16.msra.mxu0 0
      %2163 = vmatprep.subr.bf16.mxu0 0
      %2164 = vmatpush1.bf16.msra.mxu0 0
      %2165 = vmatprep.subr.bf16.mxu0 0
      %2166 = vmatpush1.bf16.msra.mxu0 0
      %2167 = vmatprep.mubr.bf16.mxu0 0
      %2168 = vmatmul.mubr.bf16.gmra.mrb[0].mxu0 %v2051
      %v2169 = vpop.f32.mrb[0].mxu0
      %v2170 = vadd.f32 %v2129, %v2169
      %v2171 = vpop.f32.mrb[0].mxu0
      %v2172 = vadd.f32 %v2131, %v2171
      %v2173 = vpop.f32.mrb[0].mxu0
      %v2174 = vpop.f32.mrb[0].mxu0
      %2175 = vdwg.mxu0
      %v2176 = vld [vmem:[%s4] sm:$0xff]
      %2178 = vset.pattern.permute.xlu0 0
      %2179 = vperm.xlu0 %2178, %v2176
      %v2180 = vpop.permute.xlu0 %2179
      %v2182 = vmul.f32 %v2170, %v2180
      %v2183 = vmul.f32 %v2172, %v2180
      %2184 = vset.pattern.permute.xlu0 1
      %2185 = vperm.xlu0 %2184, %v2176
      %v2186 = vpop.permute.xlu0 %2185
      %v2188 = vadd.f32 %v2182, %v2186
      %v2189 = vadd.f32 %v2183, %v2186
      %v2190 = vsub.f32 0.0, %v2188
      %v2191 = vsub.f32 0.0, %v2189
      %v2192 = vmul.f32 %v2190, 1.442695
      %v2193 = vpow.pop %v2192
      %v2194 = vmul.f32 %v2191, 1.442695
      %v2195 = vpow.pop %v2194
      %v2196 = vadd.f32 %v2193, 1.0
      %v2197 = vadd.f32 %v2195, 1.0
      %v2198 = vrcp.pop %v2196
      %v2199 = vrcp.pop %v2197
      %v2200 = vmul.f32 %v2188, %v2198
      %v2201 = vmul.f32 %v2189, %v2199
      %2202 = vst [vmem:[%s244] sm:$0xff] %v2200
      %2203 = vst [vmem:[%s244 + $0x8] sm:$0xff] %v2201
      %p2204 = scmp.lt.s32.totalorder %s16, 1
      %s2205 = scalar_select %p2204, %s16, 1
      %s2206 = smul.addr %s2205, 2
      %s2207 = smul.addr %s2206, 8
      %s2208 = scalar_lea.vmem %s5, %s2207
      // Predicated region
      $region41: #{dcnv2_forward.1} parent=39 // pred_check
        %p2209 = pneg %p149
      $region42: #{dcnv2_forward.1} parent=39 // pred_check_branch
        %2211 = sbr.rel (%p2209) target = $region44
      $region43: #{dcnv2_forward.1} parent=39 // pred_region
        _
      $region44: #{dcnv2_forward.1} parent=39 // pred_fallthru
        _
    $region40: #{dcnv2_forward.1} parent=5 // pred_fallthru
      _
    %p2212 = scmp.le.s32.totalorder 2, %s11
    // Predicated region
    $region45: #{dcnv2_forward.1} parent=5 // pred_check
      %p2213 = pneg %p2212
    $region46: #{dcnv2_forward.1} parent=5 // pred_check_branch
      %2215 = sbr.rel (%p2213) target = $region48
    $region47: #{dcnv2_forward.1} parent=5 // pred_region
      %s2216 = ssub.s32 %s11, 2
      // Predicated region
      $region49: #{dcnv2_forward.1} parent=47 // pred_check
        %p2217 = pneg %p155
      $region50: #{dcnv2_forward.1} parent=47 // pred_check_branch
        %2219 = sbr.rel (%p2217) target = $region52
      $region51: #{dcnv2_forward.1} parent=47 // pred_region
        %p2220 = scmp.lt.s32.totalorder %s17, 1
        %s2221 = scalar_select %p2220, %s17, 1
        %s2222 = smul.addr %s2221, 2
        %s2223 = smul.addr %s2222, 8
        %s2224 = scalar_lea.vmem %s5, %s2223
      $region52: #{dcnv2_forward.1} parent=47 // pred_fallthru
        _
    $region48: #{dcnv2_forward.1} parent=5 // pred_fallthru
      _
  $region6: #{dcnv2_forward.1} parent=0 // loop_footer
    %s15 = sadd.s32 1, %s11
  $region7: #{dcnv2_forward.1} parent=0 // loop_footer_branch
    %10 = sbr.rel target = $region3
  $region8: #{dcnv2_forward.1} parent=0 // loop_exit
    _

</llo_original>
